<compile_context>
chip_gen: v7x
topology: tpu7x:2x2x1
jax: 0.10.0
libtpu: 0.0.40
codegen_flags: <defaults>
</compile_context>

<pallas_src>
import jax
import jax.numpy as jnp
from jax.experimental import pallas as pl
from jax.experimental.pallas import tpu as pltpu


def _round_up(x, m):
    return (x + m - 1) // m * m


# ----------------------------------------------------------------------------
# Kernel: one DilConv block (minus its trailing BatchNorm), fully fused:
#   act = relu(x * scale + shift)                (scale/shift = previous BN)
#   y   = sum_k shift_k(act) @ (dw_k (x) pw)      (9 accumulating MXU matmuls)
#   also emits per-image per-channel sum / sum-of-squares of y for the BN.
# ----------------------------------------------------------------------------
def dilconv_kernel(x_ref, scale_ref, shift_ref, w_ref, y_ref, stats_ref,
                   pad_ref):
    # x_ref:     (1, H, W, Ci)      f32   input for one image
    # scale_ref: (1, Ci)            f32   previous-BN scale (ones for block 1)
    # shift_ref: (1, Ci)            f32   previous-BN shift (zeros for block 1)
    # w_ref:     (9, Ci, Co)        bf16  fused tap weights, row k = kh*3 + kw
    # y_ref:     (1, H, W, Co)      f32   conv output (pre-BN)
    # stats_ref: (1, 8, Co)         f32   row0 = sum(y), row1 = sum(y*y)
    # pad_ref:   (H+2, W+16, Ci)    bf16  VMEM scratch; interior at cols [8, 8+W)
    H, W, Co = y_ref.shape[1], y_ref.shape[2], y_ref.shape[3]
    Ci = x_ref.shape[3]
    SW = pad_ref.shape[1]

    # fused previous-BN affine + ReLU (f32 on the VPU), single cast to bf16
    act = jnp.maximum(
        x_ref[0] * scale_ref[...].reshape(1, 1, Ci)
        + shift_ref[...].reshape(1, 1, Ci), 0.0).astype(jnp.bfloat16)

    # zero only the 1-px halo (aligned 8-wide bands); the interior is fully
    # rewritten every step, so no full-buffer memset is needed.
    pad_ref[0:1, :, :] = jnp.zeros((1, SW, Ci), jnp.bfloat16)
    pad_ref[H + 1:H + 2, :, :] = jnp.zeros((1, SW, Ci), jnp.bfloat16)
    pad_ref[1:H + 1, 0:8, :] = jnp.zeros((H, 8, Ci), jnp.bfloat16)
    pad_ref[1:H + 1, 8 + W:SW, :] = jnp.zeros((H, 8, Ci), jnp.bfloat16)

    # sublane-aligned interior store (column offset 8, W assumed multiple of 8)
    pad_ref[1:H + 1, 8:8 + W, :] = act

    # strip-tiled depthwise+pointwise: 9 accumulating bf16 MXU matmuls / strip
    SH = 8 if H % 8 == 0 else H          # sublane-aligned row strips
    ssum = jnp.zeros((1, Co), jnp.float32)
    ssq = jnp.zeros((1, Co), jnp.float32)
    for r0 in range(0, H, SH):
        acc = jnp.zeros((SH * W, Co), jnp.float32)
        for kh in range(3):
            for kw in range(3):
                blk = pad_ref[r0 + kh:r0 + kh + SH, 7 + kw:7 + kw + W, :]
                acc = acc + jnp.dot(blk.reshape(SH * W, Ci),
                                    w_ref[kh * 3 + kw],
                                    preferred_element_type=jnp.float32)
        y_ref[:, r0:r0 + SH, :, :] = acc.reshape(1, SH, W, Co)
        ssum = ssum + jnp.sum(acc, axis=0, keepdims=True)
        ssq = ssq + jnp.sum(acc * acc, axis=0, keepdims=True)

    # per-image BatchNorm partial statistics (finished in the wrapper).
    # NOTE: E[y^2] - E[y]^2 in f32 is fine at this scale / tolerance.
    row = jax.lax.broadcasted_iota(jnp.int32, (8, Co), 0)
    stats_ref[...] = jnp.where(row == 0, ssum,
                               jnp.where(row == 1, ssq, 0.0)).reshape(1, 8, Co)


def dilconv_pallas(x, scale, shift, w9):
    N, H, W, Ci = x.shape
    Co = w9.shape[2]
    SW = W + 16                      # 8-col aligned left halo + W + right band

    # explicit VMEM budget: double-buffered in/out blocks + weights + scratch
    est = (2 * (H * W * Ci * 4)                       # input block
           + 2 * (H * W * Co * 4 + 8 * Co * 4)        # output blocks
           + 2 * (9 * Ci * Co * 2 + 2 * Ci * 4)       # fused taps, scale, shift
           + (H + 2) * SW * Ci * 2)                   # bf16 pad scratch
    vmem_limit = min(100 << 20, max(16 << 20, 3 * int(est) + (4 << 20)))

    return pl.pallas_call(
        dilconv_kernel,
        out_shape=(jax.ShapeDtypeStruct((N, H, W, Co), jnp.float32),
                   jax.ShapeDtypeStruct((N, 8, Co), jnp.float32)),
        grid_spec=pltpu.PrefetchScalarGridSpec(
            num_scalar_prefetch=0,
            grid=(N,),
            in_specs=[
                pl.BlockSpec((1, H, W, Ci), lambda n: (n, 0, 0, 0)),
                pl.BlockSpec((1, Ci), lambda n: (0, 0)),
                pl.BlockSpec((1, Ci), lambda n: (0, 0)),
                pl.BlockSpec((9, Ci, Co), lambda n: (0, 0, 0)),
            ],
            out_specs=[
                pl.BlockSpec((1, H, W, Co), lambda n: (n, 0, 0, 0)),
                pl.BlockSpec((1, 8, Co), lambda n: (n, 0, 0)),
            ],
            scratch_shapes=[pltpu.VMEM((H + 2, SW, Ci), jnp.bfloat16)],
        ),
        compiler_params=pltpu.CompilerParams(
            dimension_semantics=("parallel",),
            vmem_limit_bytes=vmem_limit),
    )(x, scale, shift, w9)


# ----------------------------------------------------------------------------
# SepConv forward (PyTorch NCHW in / NCHW out, training-mode BatchNorm).
# ----------------------------------------------------------------------------
def sepconv_forward(x_nchw, params, eps=1e-5):
    dw1, pw1, g1, b1 = params["dw1"], params["pw1"], params["g1"], params["b1"]
    dw2, pw2, g2, b2 = params["dw2"], params["pw2"], params["g2"], params["b2"]
    N, Cin, H, W = x_nchw.shape
    Cout = pw2.shape[0]
    Cpi = _round_up(Cin, 128)        # lane-dense padded channel counts
    Cpo = _round_up(Cout, 128)

    # NCHW -> NHWC, channels padded up to a multiple of 128 (lane-dense layout).
    x = jnp.transpose(x_nchw, (0, 2, 3, 1)).astype(jnp.float32)
    x = jnp.pad(x, ((0, 0), (0, 0), (0, 0), (0, Cpi - Cin)))

    def prep_taps(dw, pw, ci_p, co_p):
        # dw: (C,1,3,3) depthwise (groups=C), pw: (Co,Ci,1,1) pointwise
        # fused per-tap weight W_k[c, co] = dw[c,0,kh,kw] * pw[co,c]
        Ci, Co = dw.shape[0], pw.shape[0]
        dw9 = jnp.transpose(dw[:, 0], (1, 2, 0)).reshape(9, Ci)      # (9, Ci)
        pwm = jnp.transpose(pw[:, :, 0, 0], (1, 0))                  # (Ci, Co)
        w9 = dw9[:, :, None].astype(jnp.float32) * pwm[None].astype(jnp.float32)
        w9 = jnp.pad(w9, ((0, 0), (0, ci_p - Ci), (0, co_p - Co)))
        return w9.astype(jnp.bfloat16)                               # (9,Ci,Co)

    def pad_vec(v, cp):
        return jnp.pad(v.astype(jnp.float32), (0, cp - v.shape[0]))

    w9_1 = prep_taps(dw1, pw1, Cpi, Cpi)
    w9_2 = prep_taps(dw2, pw2, Cpi, Cpo)
    g1_p, b1_p = pad_vec(g1, Cpi), pad_vec(b1, Cpi)
    g2_p, b2_p = pad_vec(g2, Cpo), pad_vec(b2, Cpo)

    ones = jnp.ones((1, Cpi), jnp.float32)
    zeros = jnp.zeros((1, Cpi), jnp.float32)
    cnt = N * H * W

    # ---- DilConv block 1: ReLU -> dw3x3 -> pw1x1 (+ BN1 partial stats) ------
    y1, st1 = dilconv_pallas(x, ones, zeros, w9_1)
    mean1 = jnp.sum(st1[:, 0, :], axis=0) / cnt
    var1 = jnp.sum(st1[:, 1, :], axis=0) / cnt - mean1 * mean1
    scale1 = g1_p * jax.lax.rsqrt(var1 + eps)
    shift1 = b1_p - mean1 * scale1

    # ---- DilConv block 2: BN1 + ReLU fused into the conv kernel -------------
    y2, st2 = dilconv_pallas(y1, scale1.reshape(1, -1), shift1.reshape(1, -1),
                             w9_2)
    mean2 = jnp.sum(st2[:, 0, :], axis=0) / cnt
    var2 = jnp.sum(st2[:, 1, :], axis=0) / cnt - mean2 * mean2
    scale2 = g2_p * jax.lax.rsqrt(var2 + eps)
    shift2 = b2_p - mean2 * scale2

    # ---- final BatchNorm of block 2 (no ReLU) as plain jnp: XLA fuses it ----
    # ---- with the channel slice and the NCHW transpose.                  ----
    out = y2 * scale2.reshape(1, 1, 1, -1) + shift2.reshape(1, 1, 1, -1)
    return jnp.transpose(out[..., :Cout], (0, 3, 1, 2))


# ----------------------------------------------------------------------------
# Pure-JAX reference (mirrors PyTorch SepConv in training mode).
# ----------------------------------------------------------------------------
def _dilconv_ref(x, dw, pw, gamma, beta, eps=1e-5):
    a = jnp.maximum(x, 0.0)
    y = jax.lax.conv_general_dilated(
        a, dw, window_strides=(1, 1), padding=((1, 1), (1, 1)),
        dimension_numbers=("NCHW", "OIHW", "NCHW"),
        feature_group_count=x.shape[1])
    y = jax.lax.conv_general_dilated(
        y, pw, window_strides=(1, 1), padding="VALID",
        dimension_numbers=("NCHW", "OIHW", "NCHW"))
    mean = jnp.mean(y, axis=(0, 2, 3), keepdims=True)
    var = jnp.mean((y - mean) ** 2, axis=(0, 2, 3), keepdims=True)  # biased
    yn = (y - mean) / jnp.sqrt(var + eps)
    return yn * gamma.reshape(1, -1, 1, 1) + beta.reshape(1, -1, 1, 1)


def _sepconv_ref(x, p):
    h = _dilconv_ref(x, p["dw1"], p["pw1"], p["g1"], p["b1"])
    return _dilconv_ref(h, p["dw2"], p["pw2"], p["g2"], p["b2"])


if __name__ == "__main__":
    key = jax.random.PRNGKey(0)
    N, C_in, C_out, H, W = 2, 4, 8, 16, 16
    ks = jax.random.split(key, 9)
    x = jax.random.normal(ks[0], (N, C_in, H, W), dtype=jnp.float32)

    def conv_init(k, shape):
        # PyTorch Conv2d default: kaiming_uniform(a=sqrt(5)) -> U(+-1/sqrt(fan_in))
        fan_in = shape[1] * shape[2] * shape[3]
        bound = float(fan_in) ** -0.5
        return jax.random.uniform(k, shape, jnp.float32, -bound, bound)

    params = {
        "dw1": conv_init(ks[1], (C_in, 1, 3, 3)),        # depthwise, groups=C_in
        "pw1": conv_init(ks[2], (C_in, C_in, 1, 1)),     # pointwise
        "g1": 1.0 + 0.1 * jax.random.normal(ks[5], (C_in,), jnp.float32),
        "b1": 0.1 * jax.random.normal(ks[6], (C_in,), jnp.float32),
        "dw2": conv_init(ks[3], (C_in, 1, 3, 3)),
        "pw2": conv_init(ks[4], (C_out, C_in, 1, 1)),
        "g2": 1.0 + 0.1 * jax.random.normal(ks[7], (C_out,), jnp.float32),
        "b2": 0.1 * jax.random.normal(ks[8], (C_out,), jnp.float32),
    }

    fwd = jax.jit(sepconv_forward)
    out = jax.block_until_ready(fwd(x, params))
    ref = jax.block_until_ready(_sepconv_ref(x, params))

    assert out.shape == (N, C_out, H, W)
    err = float(jnp.max(jnp.abs(out - ref)))
    # bf16 activations + fused bf16 tap weights (f32 MXU accumulation) ->
    # slightly looser than pure-f32 tolerance on the BN-normalized output.
    assert err < 5e-2, f"max abs err = {err}"
    print("KERNEL_OK")
</pallas_src>

<mosaic_0001>
module attributes {stable_mosaic.version = 11 : i64} {
  func.func @dilconv_kernel(%arg0: i32, %arg1: memref<1x16x16x128xf32, #tpu.memory_space<vmem>>, %arg2: memref<1x128xf32, #tpu.memory_space<vmem>>, %arg3: memref<1x128xf32, #tpu.memory_space<vmem>>, %arg4: memref<9x128x128xbf16, #tpu.memory_space<vmem>>, %arg5: memref<1x16x16x128xf32, #tpu.memory_space<vmem>>, %arg6: memref<1x8x128xf32, #tpu.memory_space<vmem>>, %arg7: memref<18x32x128xbf16, #tpu.memory_space<vmem>>) attributes {dimension_semantics = [#tpu.dimension_semantics<parallel>], iteration_bounds = array<i64: 2>, scalar_prefetch = 0 : i64, scratch_operands = 1 : i64, tpu.core_type = #tpu.core_type<tc>, window_params = [{transform_indices = @transform_0, window_bounds = array<i64: 1, 16, 16, 128>}, {pipeline_mode = #tpu.pipeline_mode<synchronous>, transform_indices = @transform_1, window_bounds = array<i64: 1, 128>}, {pipeline_mode = #tpu.pipeline_mode<synchronous>, transform_indices = @transform_2, window_bounds = array<i64: 1, 128>}, {pipeline_mode = #tpu.pipeline_mode<synchronous>, transform_indices = @transform_3, window_bounds = array<i64: 9, 128, 128>}, {transform_indices = @transform_4, window_bounds = array<i64: 1, 16, 16, 128>}, {transform_indices = @transform_5, window_bounds = array<i64: 1, 8, 128>}]} {
    %c0 = arith.constant 0 : index
    %c0_0 = arith.constant 0 : index
    %c0_1 = arith.constant 0 : index
    %c0_2 = arith.constant 0 : index
    %0 = vector.load %arg1[%c0, %c0_0, %c0_1, %c0_2] : memref<1x16x16x128xf32, #tpu.memory_space<vmem>>, vector<1x16x16x128xf32>
    %1 = vector.shape_cast %0 : vector<1x16x16x128xf32> to vector<16x16x128xf32>
    %c0_3 = arith.constant 0 : index
    %c0_4 = arith.constant 0 : index
    %2 = vector.load %arg2[%c0_3, %c0_4] : memref<1x128xf32, #tpu.memory_space<vmem>>, vector<1x128xf32>
    %3 = vector.shape_cast %2 : vector<1x128xf32> to vector<1x1x128xf32>
    %4 = vector.broadcast %3 : vector<1x1x128xf32> to vector<16x16x128xf32>
    %5 = arith.mulf %1, %4 : vector<16x16x128xf32>
    %c0_5 = arith.constant 0 : index
    %c0_6 = arith.constant 0 : index
    %6 = vector.load %arg3[%c0_5, %c0_6] : memref<1x128xf32, #tpu.memory_space<vmem>>, vector<1x128xf32>
    %7 = vector.shape_cast %6 : vector<1x128xf32> to vector<1x1x128xf32>
    %8 = vector.broadcast %7 : vector<1x1x128xf32> to vector<16x16x128xf32>
    %9 = arith.addf %5, %8 : vector<16x16x128xf32>
    %cst = arith.constant 0.000000e+00 : f32
    %10 = vector.broadcast %cst : f32 to vector<16x16x128xf32>
    %11 = arith.maximumf %9, %10 : vector<16x16x128xf32>
    %12 = arith.truncf %11 : vector<16x16x128xf32> to vector<16x16x128xbf16>
    %cst_7 = arith.constant 0.000000e+00 : bf16
    %13 = vector.broadcast %cst_7 : bf16 to vector<1x32x128xbf16>
    %c0_8 = arith.constant 0 : index
    %c0_9 = arith.constant 0 : index
    %c0_10 = arith.constant 0 : index
    %14 = vector.load %arg7[%c0_8, %c0_9, %c0_10] : memref<18x32x128xbf16, #tpu.memory_space<vmem>>, vector<1x32x128xbf16>
    tpu.vector_store %arg7[%c0_8, %c0_9, %c0_10], %13 {strides = array<i32>} : memref<18x32x128xbf16, #tpu.memory_space<vmem>>, vector<1x32x128xbf16>,
    %cst_11 = arith.constant 0.000000e+00 : bf16
    %15 = vector.broadcast %cst_11 : bf16 to vector<1x32x128xbf16>
    %c17 = arith.constant 17 : index
    %c0_12 = arith.constant 0 : index
    %c0_13 = arith.constant 0 : index
    %16 = vector.load %arg7[%c17, %c0_12, %c0_13] : memref<18x32x128xbf16, #tpu.memory_space<vmem>>, vector<1x32x128xbf16>
    tpu.vector_store %arg7[%c17, %c0_12, %c0_13], %15 {strides = array<i32>} : memref<18x32x128xbf16, #tpu.memory_space<vmem>>, vector<1x32x128xbf16>,
    %cst_14 = arith.constant 0.000000e+00 : bf16
    %17 = vector.broadcast %cst_14 : bf16 to vector<16x8x128xbf16>
    %c1 = arith.constant 1 : index
    %c0_15 = arith.constant 0 : index
    %c0_16 = arith.constant 0 : index
    %18 = vector.load %arg7[%c1, %c0_15, %c0_16] : memref<18x32x128xbf16, #tpu.memory_space<vmem>>, vector<16x8x128xbf16>
    tpu.vector_store %arg7[%c1, %c0_15, %c0_16], %17 {strides = array<i32>} : memref<18x32x128xbf16, #tpu.memory_space<vmem>>, vector<16x8x128xbf16>,
    %cst_17 = arith.constant 0.000000e+00 : bf16
    %19 = vector.broadcast %cst_17 : bf16 to vector<16x8x128xbf16>
    %c1_18 = arith.constant 1 : index
    %c24 = arith.constant 24 : index
    %c0_19 = arith.constant 0 : index
    %20 = vector.load %arg7[%c1_18, %c24, %c0_19] : memref<18x32x128xbf16, #tpu.memory_space<vmem>>, vector<16x8x128xbf16>
    tpu.vector_store %arg7[%c1_18, %c24, %c0_19], %19 {strides = array<i32>} : memref<18x32x128xbf16, #tpu.memory_space<vmem>>, vector<16x8x128xbf16>,
    %c1_20 = arith.constant 1 : index
    %c8 = arith.constant 8 : index
    %c0_21 = arith.constant 0 : index
    %21 = vector.load %arg7[%c1_20, %c8, %c0_21] : memref<18x32x128xbf16, #tpu.memory_space<vmem>>, vector<16x16x128xbf16>
    tpu.vector_store %arg7[%c1_20, %c8, %c0_21], %12 {strides = array<i32>} : memref<18x32x128xbf16, #tpu.memory_space<vmem>>, vector<16x16x128xbf16>,
    %cst_22 = arith.constant 0.000000e+00 : f32
    %22 = vector.broadcast %cst_22 : f32 to vector<1x128xf32>
    %cst_23 = arith.constant 0.000000e+00 : f32
    %23 = vector.broadcast %cst_23 : f32 to vector<1x128xf32>
    %cst_24 = arith.constant 0.000000e+00 : f32
    %24 = vector.broadcast %cst_24 : f32 to vector<128x128xf32>
    %c0_25 = arith.constant 0 : index
    %c7 = arith.constant 7 : index
    %c0_26 = arith.constant 0 : index
    %25 = vector.load %arg7[%c0_25, %c7, %c0_26] : memref<18x32x128xbf16, #tpu.memory_space<vmem>>, vector<8x16x128xbf16>
    %26 = vector.shape_cast %25 : vector<8x16x128xbf16> to vector<128x128xbf16>
    %c0_27 = arith.constant 0 : index
    %c0_28 = arith.constant 0 : index
    %c0_29 = arith.constant 0 : index
    %27 = vector.load %arg4[%c0_27, %c0_28, %c0_29] : memref<9x128x128xbf16, #tpu.memory_space<vmem>>, vector<1x128x128xbf16>
    %28 = vector.shape_cast %27 : vector<1x128x128xbf16> to vector<128x128xbf16>
    %cst_30 = arith.constant dense<0.000000e+00> : vector<128x128xf32>
    %29 = tpu.matmul %26, %28, %cst_30 {dimension_numbers = #tpu.dot_dimension_numbers<[1], [0], [0], [1], [0, 0, 1, 1], [], []>} : vector<128x128xbf16>, vector<128x128xbf16>, vector<128x128xf32> -> vector<128x128xf32>
    %30 = arith.addf %24, %29 : vector<128x128xf32>
    %c0_31 = arith.constant 0 : index
    %c8_32 = arith.constant 8 : index
    %c0_33 = arith.constant 0 : index
    %31 = vector.load %arg7[%c0_31, %c8_32, %c0_33] : memref<18x32x128xbf16, #tpu.memory_space<vmem>>, vector<8x16x128xbf16>
    %32 = vector.shape_cast %31 : vector<8x16x128xbf16> to vector<128x128xbf16>
    %c1_34 = arith.constant 1 : index
    %c0_35 = arith.constant 0 : index
    %c0_36 = arith.constant 0 : index
    %33 = vector.load %arg4[%c1_34, %c0_35, %c0_36] : memref<9x128x128xbf16, #tpu.memory_space<vmem>>, vector<1x128x128xbf16>
    %34 = vector.shape_cast %33 : vector<1x128x128xbf16> to vector<128x128xbf16>
    %cst_37 = arith.constant dense<0.000000e+00> : vector<128x128xf32>
    %35 = tpu.matmul %32, %34, %cst_37 {dimension_numbers = #tpu.dot_dimension_numbers<[1], [0], [0], [1], [0, 0, 1, 1], [], []>} : vector<128x128xbf16>, vector<128x128xbf16>, vector<128x128xf32> -> vector<128x128xf32>
    %36 = arith.addf %30, %35 : vector<128x128xf32>
    %c0_38 = arith.constant 0 : index
    %c9 = arith.constant 9 : index
    %c0_39 = arith.constant 0 : index
    %37 = vector.load %arg7[%c0_38, %c9, %c0_39] : memref<18x32x128xbf16, #tpu.memory_space<vmem>>, vector<8x16x128xbf16>
    %38 = vector.shape_cast %37 : vector<8x16x128xbf16> to vector<128x128xbf16>
    %c2 = arith.constant 2 : index
    %c0_40 = arith.constant 0 : index
    %c0_41 = arith.constant 0 : index
    %39 = vector.load %arg4[%c2, %c0_40, %c0_41] : memref<9x128x128xbf16, #tpu.memory_space<vmem>>, vector<1x128x128xbf16>
    %40 = vector.shape_cast %39 : vector<1x128x128xbf16> to vector<128x128xbf16>
    %cst_42 = arith.constant dense<0.000000e+00> : vector<128x128xf32>
    %41 = tpu.matmul %38, %40, %cst_42 {dimension_numbers = #tpu.dot_dimension_numbers<[1], [0], [0], [1], [0, 0, 1, 1], [], []>} : vector<128x128xbf16>, vector<128x128xbf16>, vector<128x128xf32> -> vector<128x128xf32>
    %42 = arith.addf %36, %41 : vector<128x128xf32>
    %c1_43 = arith.constant 1 : index
    %c7_44 = arith.constant 7 : index
    %c0_45 = arith.constant 0 : index
    %43 = vector.load %arg7[%c1_43, %c7_44, %c0_45] : memref<18x32x128xbf16, #tpu.memory_space<vmem>>, vector<8x16x128xbf16>
    %44 = vector.shape_cast %43 : vector<8x16x128xbf16> to vector<128x128xbf16>
    %c3 = arith.constant 3 : index
    %c0_46 = arith.constant 0 : index
    %c0_47 = arith.constant 0 : index
    %45 = vector.load %arg4[%c3, %c0_46, %c0_47] : memref<9x128x128xbf16, #tpu.memory_space<vmem>>, vector<1x128x128xbf16>
    %46 = vector.shape_cast %45 : vector<1x128x128xbf16> to vector<128x128xbf16>
    %cst_48 = arith.constant dense<0.000000e+00> : vector<128x128xf32>
    %47 = tpu.matmul %44, %46, %cst_48 {dimension_numbers = #tpu.dot_dimension_numbers<[1], [0], [0], [1], [0, 0, 1, 1], [], []>} : vector<128x128xbf16>, vector<128x128xbf16>, vector<128x128xf32> -> vector<128x128xf32>
    %48 = arith.addf %42, %47 : vector<128x128xf32>
    %c1_49 = arith.constant 1 : index
    %c8_50 = arith.constant 8 : index
    %c0_51 = arith.constant 0 : index
    %49 = vector.load %arg7[%c1_49, %c8_50, %c0_51] : memref<18x32x128xbf16, #tpu.memory_space<vmem>>, vector<8x16x128xbf16>
    %50 = vector.shape_cast %49 : vector<8x16x128xbf16> to vector<128x128xbf16>
    %c4 = arith.constant 4 : index
    %c0_52 = arith.constant 0 : index
    %c0_53 = arith.constant 0 : index
    %51 = vector.load %arg4[%c4, %c0_52, %c0_53] : memref<9x128x128xbf16, #tpu.memory_space<vmem>>, vector<1x128x128xbf16>
    %52 = vector.shape_cast %51 : vector<1x128x128xbf16> to vector<128x128xbf16>
    %cst_54 = arith.constant dense<0.000000e+00> : vector<128x128xf32>
    %53 = tpu.matmul %50, %52, %cst_54 {dimension_numbers = #tpu.dot_dimension_numbers<[1], [0], [0], [1], [0, 0, 1, 1], [], []>} : vector<128x128xbf16>, vector<128x128xbf16>, vector<128x128xf32> -> vector<128x128xf32>
    %54 = arith.addf %48, %53 : vector<128x128xf32>
    %c1_55 = arith.constant 1 : index
    %c9_56 = arith.constant 9 : index
    %c0_57 = arith.constant 0 : index
    %55 = vector.load %arg7[%c1_55, %c9_56, %c0_57] : memref<18x32x128xbf16, #tpu.memory_space<vmem>>, vector<8x16x128xbf16>
    %56 = vector.shape_cast %55 : vector<8x16x128xbf16> to vector<128x128xbf16>
    %c5 = arith.constant 5 : index
    %c0_58 = arith.constant 0 : index
    %c0_59 = arith.constant 0 : index
    %57 = vector.load %arg4[%c5, %c0_58, %c0_59] : memref<9x128x128xbf16, #tpu.memory_space<vmem>>, vector<1x128x128xbf16>
    %58 = vector.shape_cast %57 : vector<1x128x128xbf16> to vector<128x128xbf16>
    %cst_60 = arith.constant dense<0.000000e+00> : vector<128x128xf32>
    %59 = tpu.matmul %56, %58, %cst_60 {dimension_numbers = #tpu.dot_dimension_numbers<[1], [0], [0], [1], [0, 0, 1, 1], [], []>} : vector<128x128xbf16>, vector<128x128xbf16>, vector<128x128xf32> -> vector<128x128xf32>
    %60 = arith.addf %54, %59 : vector<128x128xf32>
    %c2_61 = arith.constant 2 : index
    %c7_62 = arith.constant 7 : index
    %c0_63 = arith.constant 0 : index
    %61 = vector.load %arg7[%c2_61, %c7_62, %c0_63] : memref<18x32x128xbf16, #tpu.memory_space<vmem>>, vector<8x16x128xbf16>
    %62 = vector.shape_cast %61 : vector<8x16x128xbf16> to vector<128x128xbf16>
    %c6 = arith.constant 6 : index
    %c0_64 = arith.constant 0 : index
    %c0_65 = arith.constant 0 : index
    %63 = vector.load %arg4[%c6, %c0_64, %c0_65] : memref<9x128x128xbf16, #tpu.memory_space<vmem>>, vector<1x128x128xbf16>
    %64 = vector.shape_cast %63 : vector<1x128x128xbf16> to vector<128x128xbf16>
    %cst_66 = arith.constant dense<0.000000e+00> : vector<128x128xf32>
    %65 = tpu.matmul %62, %64, %cst_66 {dimension_numbers = #tpu.dot_dimension_numbers<[1], [0], [0], [1], [0, 0, 1, 1], [], []>} : vector<128x128xbf16>, vector<128x128xbf16>, vector<128x128xf32> -> vector<128x128xf32>
    %66 = arith.addf %60, %65 : vector<128x128xf32>
    %c2_67 = arith.constant 2 : index
    %c8_68 = arith.constant 8 : index
    %c0_69 = arith.constant 0 : index
    %67 = vector.load %arg7[%c2_67, %c8_68, %c0_69] : memref<18x32x128xbf16, #tpu.memory_space<vmem>>, vector<8x16x128xbf16>
    %68 = vector.shape_cast %67 : vector<8x16x128xbf16> to vector<128x128xbf16>
    %c7_70 = arith.constant 7 : index
    %c0_71 = arith.constant 0 : index
    %c0_72 = arith.constant 0 : index
    %69 = vector.load %arg4[%c7_70, %c0_71, %c0_72] : memref<9x128x128xbf16, #tpu.memory_space<vmem>>, vector<1x128x128xbf16>
    %70 = vector.shape_cast %69 : vector<1x128x128xbf16> to vector<128x128xbf16>
    %cst_73 = arith.constant dense<0.000000e+00> : vector<128x128xf32>
    %71 = tpu.matmul %68, %70, %cst_73 {dimension_numbers = #tpu.dot_dimension_numbers<[1], [0], [0], [1], [0, 0, 1, 1], [], []>} : vector<128x128xbf16>, vector<128x128xbf16>, vector<128x128xf32> -> vector<128x128xf32>
    %72 = arith.addf %66, %71 : vector<128x128xf32>
    %c2_74 = arith.constant 2 : index
    %c9_75 = arith.constant 9 : index
    %c0_76 = arith.constant 0 : index
    %73 = vector.load %arg7[%c2_74, %c9_75, %c0_76] : memref<18x32x128xbf16, #tpu.memory_space<vmem>>, vector<8x16x128xbf16>
    %74 = vector.shape_cast %73 : vector<8x16x128xbf16> to vector<128x128xbf16>
    %c8_77 = arith.constant 8 : index
    %c0_78 = arith.constant 0 : index
    %c0_79 = arith.constant 0 : index
    %75 = vector.load %arg4[%c8_77, %c0_78, %c0_79] : memref<9x128x128xbf16, #tpu.memory_space<vmem>>, vector<1x128x128xbf16>
    %76 = vector.shape_cast %75 : vector<1x128x128xbf16> to vector<128x128xbf16>
    %cst_80 = arith.constant dense<0.000000e+00> : vector<128x128xf32>
    %77 = tpu.matmul %74, %76, %cst_80 {dimension_numbers = #tpu.dot_dimension_numbers<[1], [0], [0], [1], [0, 0, 1, 1], [], []>} : vector<128x128xbf16>, vector<128x128xbf16>, vector<128x128xf32> -> vector<128x128xf32>
    %78 = arith.addf %72, %77 : vector<128x128xf32>
    %79 = vector.shape_cast %78 : vector<128x128xf32> to vector<1x8x16x128xf32>
    %c0_81 = arith.constant 0 : index
    %c0_82 = arith.constant 0 : index
    %c0_83 = arith.constant 0 : index
    %c0_84 = arith.constant 0 : index
    %80 = vector.load %arg5[%c0_81, %c0_82, %c0_83, %c0_84] : memref<1x16x16x128xf32, #tpu.memory_space<vmem>>, vector<1x8x16x128xf32>
    tpu.vector_store %arg5[%c0_81, %c0_82, %c0_83, %c0_84], %79 {strides = array<i32>} : memref<1x16x16x128xf32, #tpu.memory_space<vmem>>, vector<1x8x16x128xf32>,
    %cst_85 = arith.constant dense<0.000000e+00> : vector<128xf32>
    %81 = vector.multi_reduction <add>, %78, %cst_85 [0] : vector<128x128xf32> to vector<128xf32>
    %82 = vector.shape_cast %81 : vector<128xf32> to vector<1x128xf32>
    %83 = arith.addf %22, %82 : vector<1x128xf32>
    %84 = arith.mulf %78, %78 : vector<128x128xf32>
    %cst_86 = arith.constant dense<0.000000e+00> : vector<128xf32>
    %85 = vector.multi_reduction <add>, %84, %cst_86 [0] : vector<128x128xf32> to vector<128xf32>
    %86 = vector.shape_cast %85 : vector<128xf32> to vector<1x128xf32>
    %87 = arith.addf %23, %86 : vector<1x128xf32>
    %cst_87 = arith.constant 0.000000e+00 : f32
    %88 = vector.broadcast %cst_87 : f32 to vector<128x128xf32>
    %c8_88 = arith.constant 8 : index
    %c7_89 = arith.constant 7 : index
    %c0_90 = arith.constant 0 : index
    %89 = vector.load %arg7[%c8_88, %c7_89, %c0_90] : memref<18x32x128xbf16, #tpu.memory_space<vmem>>, vector<8x16x128xbf16>
    %90 = vector.shape_cast %89 : vector<8x16x128xbf16> to vector<128x128xbf16>
    %c0_91 = arith.constant 0 : index
    %c0_92 = arith.constant 0 : index
    %c0_93 = arith.constant 0 : index
    %91 = vector.load %arg4[%c0_91, %c0_92, %c0_93] : memref<9x128x128xbf16, #tpu.memory_space<vmem>>, vector<1x128x128xbf16>
    %92 = vector.shape_cast %91 : vector<1x128x128xbf16> to vector<128x128xbf16>
    %cst_94 = arith.constant dense<0.000000e+00> : vector<128x128xf32>
    %93 = tpu.matmul %90, %92, %cst_94 {dimension_numbers = #tpu.dot_dimension_numbers<[1], [0], [0], [1], [0, 0, 1, 1], [], []>} : vector<128x128xbf16>, vector<128x128xbf16>, vector<128x128xf32> -> vector<128x128xf32>
    %94 = arith.addf %88, %93 : vector<128x128xf32>
    %c8_95 = arith.constant 8 : index
    %c8_96 = arith.constant 8 : index
    %c0_97 = arith.constant 0 : index
    %95 = vector.load %arg7[%c8_95, %c8_96, %c0_97] : memref<18x32x128xbf16, #tpu.memory_space<vmem>>, vector<8x16x128xbf16>
    %96 = vector.shape_cast %95 : vector<8x16x128xbf16> to vector<128x128xbf16>
    %c1_98 = arith.constant 1 : index
    %c0_99 = arith.constant 0 : index
    %c0_100 = arith.constant 0 : index
    %97 = vector.load %arg4[%c1_98, %c0_99, %c0_100] : memref<9x128x128xbf16, #tpu.memory_space<vmem>>, vector<1x128x128xbf16>
    %98 = vector.shape_cast %97 : vector<1x128x128xbf16> to vector<128x128xbf16>
    %cst_101 = arith.constant dense<0.000000e+00> : vector<128x128xf32>
    %99 = tpu.matmul %96, %98, %cst_101 {dimension_numbers = #tpu.dot_dimension_numbers<[1], [0], [0], [1], [0, 0, 1, 1], [], []>} : vector<128x128xbf16>, vector<128x128xbf16>, vector<128x128xf32> -> vector<128x128xf32>
    %100 = arith.addf %94, %99 : vector<128x128xf32>
    %c8_102 = arith.constant 8 : index
    %c9_103 = arith.constant 9 : index
    %c0_104 = arith.constant 0 : index
    %101 = vector.load %arg7[%c8_102, %c9_103, %c0_104] : memref<18x32x128xbf16, #tpu.memory_space<vmem>>, vector<8x16x128xbf16>
    %102 = vector.shape_cast %101 : vector<8x16x128xbf16> to vector<128x128xbf16>
    %c2_105 = arith.constant 2 : index
    %c0_106 = arith.constant 0 : index
    %c0_107 = arith.constant 0 : index
    %103 = vector.load %arg4[%c2_105, %c0_106, %c0_107] : memref<9x128x128xbf16, #tpu.memory_space<vmem>>, vector<1x128x128xbf16>
    %104 = vector.shape_cast %103 : vector<1x128x128xbf16> to vector<128x128xbf16>
    %cst_108 = arith.constant dense<0.000000e+00> : vector<128x128xf32>
    %105 = tpu.matmul %102, %104, %cst_108 {dimension_numbers = #tpu.dot_dimension_numbers<[1], [0], [0], [1], [0, 0, 1, 1], [], []>} : vector<128x128xbf16>, vector<128x128xbf16>, vector<128x128xf32> -> vector<128x128xf32>
    %106 = arith.addf %100, %105 : vector<128x128xf32>
    %c9_109 = arith.constant 9 : index
    %c7_110 = arith.constant 7 : index
    %c0_111 = arith.constant 0 : index
    %107 = vector.load %arg7[%c9_109, %c7_110, %c0_111] : memref<18x32x128xbf16, #tpu.memory_space<vmem>>, vector<8x16x128xbf16>
    %108 = vector.shape_cast %107 : vector<8x16x128xbf16> to vector<128x128xbf16>
    %c3_112 = arith.constant 3 : index
    %c0_113 = arith.constant 0 : index
    %c0_114 = arith.constant 0 : index
    %109 = vector.load %arg4[%c3_112, %c0_113, %c0_114] : memref<9x128x128xbf16, #tpu.memory_space<vmem>>, vector<1x128x128xbf16>
    %110 = vector.shape_cast %109 : vector<1x128x128xbf16> to vector<128x128xbf16>
    %cst_115 = arith.constant dense<0.000000e+00> : vector<128x128xf32>
    %111 = tpu.matmul %108, %110, %cst_115 {dimension_numbers = #tpu.dot_dimension_numbers<[1], [0], [0], [1], [0, 0, 1, 1], [], []>} : vector<128x128xbf16>, vector<128x128xbf16>, vector<128x128xf32> -> vector<128x128xf32>
    %112 = arith.addf %106, %111 : vector<128x128xf32>
    %c9_116 = arith.constant 9 : index
    %c8_117 = arith.constant 8 : index
    %c0_118 = arith.constant 0 : index
    %113 = vector.load %arg7[%c9_116, %c8_117, %c0_118] : memref<18x32x128xbf16, #tpu.memory_space<vmem>>, vector<8x16x128xbf16>
    %114 = vector.shape_cast %113 : vector<8x16x128xbf16> to vector<128x128xbf16>
    %c4_119 = arith.constant 4 : index
    %c0_120 = arith.constant 0 : index
    %c0_121 = arith.constant 0 : index
    %115 = vector.load %arg4[%c4_119, %c0_120, %c0_121] : memref<9x128x128xbf16, #tpu.memory_space<vmem>>, vector<1x128x128xbf16>
    %116 = vector.shape_cast %115 : vector<1x128x128xbf16> to vector<128x128xbf16>
    %cst_122 = arith.constant dense<0.000000e+00> : vector<128x128xf32>
    %117 = tpu.matmul %114, %116, %cst_122 {dimension_numbers = #tpu.dot_dimension_numbers<[1], [0], [0], [1], [0, 0, 1, 1], [], []>} : vector<128x128xbf16>, vector<128x128xbf16>, vector<128x128xf32> -> vector<128x128xf32>
    %118 = arith.addf %112, %117 : vector<128x128xf32>
    %c9_123 = arith.constant 9 : index
    %c9_124 = arith.constant 9 : index
    %c0_125 = arith.constant 0 : index
    %119 = vector.load %arg7[%c9_123, %c9_124, %c0_125] : memref<18x32x128xbf16, #tpu.memory_space<vmem>>, vector<8x16x128xbf16>
    %120 = vector.shape_cast %119 : vector<8x16x128xbf16> to vector<128x128xbf16>
    %c5_126 = arith.constant 5 : index
    %c0_127 = arith.constant 0 : index
    %c0_128 = arith.constant 0 : index
    %121 = vector.load %arg4[%c5_126, %c0_127, %c0_128] : memref<9x128x128xbf16, #tpu.memory_space<vmem>>, vector<1x128x128xbf16>
    %122 = vector.shape_cast %121 : vector<1x128x128xbf16> to vector<128x128xbf16>
    %cst_129 = arith.constant dense<0.000000e+00> : vector<128x128xf32>
    %123 = tpu.matmul %120, %122, %cst_129 {dimension_numbers = #tpu.dot_dimension_numbers<[1], [0], [0], [1], [0, 0, 1, 1], [], []>} : vector<128x128xbf16>, vector<128x128xbf16>, vector<128x128xf32> -> vector<128x128xf32>
    %124 = arith.addf %118, %123 : vector<128x128xf32>
    %c10 = arith.constant 10 : index
    %c7_130 = arith.constant 7 : index
    %c0_131 = arith.constant 0 : index
    %125 = vector.load %arg7[%c10, %c7_130, %c0_131] : memref<18x32x128xbf16, #tpu.memory_space<vmem>>, vector<8x16x128xbf16>
    %126 = vector.shape_cast %125 : vector<8x16x128xbf16> to vector<128x128xbf16>
    %c6_132 = arith.constant 6 : index
    %c0_133 = arith.constant 0 : index
    %c0_134 = arith.constant 0 : index
    %127 = vector.load %arg4[%c6_132, %c0_133, %c0_134] : memref<9x128x128xbf16, #tpu.memory_space<vmem>>, vector<1x128x128xbf16>
    %128 = vector.shape_cast %127 : vector<1x128x128xbf16> to vector<128x128xbf16>
    %cst_135 = arith.constant dense<0.000000e+00> : vector<128x128xf32>
    %129 = tpu.matmul %126, %128, %cst_135 {dimension_numbers = #tpu.dot_dimension_numbers<[1], [0], [0], [1], [0, 0, 1, 1], [], []>} : vector<128x128xbf16>, vector<128x128xbf16>, vector<128x128xf32> -> vector<128x128xf32>
    %130 = arith.addf %124, %129 : vector<128x128xf32>
    %c10_136 = arith.constant 10 : index
    %c8_137 = arith.constant 8 : index
    %c0_138 = arith.constant 0 : index
    %131 = vector.load %arg7[%c10_136, %c8_137, %c0_138] : memref<18x32x128xbf16, #tpu.memory_space<vmem>>, vector<8x16x128xbf16>
    %132 = vector.shape_cast %131 : vector<8x16x128xbf16> to vector<128x128xbf16>
    %c7_139 = arith.constant 7 : index
    %c0_140 = arith.constant 0 : index
    %c0_141 = arith.constant 0 : index
    %133 = vector.load %arg4[%c7_139, %c0_140, %c0_141] : memref<9x128x128xbf16, #tpu.memory_space<vmem>>, vector<1x128x128xbf16>
    %134 = vector.shape_cast %133 : vector<1x128x128xbf16> to vector<128x128xbf16>
    %cst_142 = arith.constant dense<0.000000e+00> : vector<128x128xf32>
    %135 = tpu.matmul %132, %134, %cst_142 {dimension_numbers = #tpu.dot_dimension_numbers<[1], [0], [0], [1], [0, 0, 1, 1], [], []>} : vector<128x128xbf16>, vector<128x128xbf16>, vector<128x128xf32> -> vector<128x128xf32>
    %136 = arith.addf %130, %135 : vector<128x128xf32>
    %c10_143 = arith.constant 10 : index
    %c9_144 = arith.constant 9 : index
    %c0_145 = arith.constant 0 : index
    %137 = vector.load %arg7[%c10_143, %c9_144, %c0_145] : memref<18x32x128xbf16, #tpu.memory_space<vmem>>, vector<8x16x128xbf16>
    %138 = vector.shape_cast %137 : vector<8x16x128xbf16> to vector<128x128xbf16>
    %c8_146 = arith.constant 8 : index
    %c0_147 = arith.constant 0 : index
    %c0_148 = arith.constant 0 : index
    %139 = vector.load %arg4[%c8_146, %c0_147, %c0_148] : memref<9x128x128xbf16, #tpu.memory_space<vmem>>, vector<1x128x128xbf16>
    %140 = vector.shape_cast %139 : vector<1x128x128xbf16> to vector<128x128xbf16>
    %cst_149 = arith.constant dense<0.000000e+00> : vector<128x128xf32>
    %141 = tpu.matmul %138, %140, %cst_149 {dimension_numbers = #tpu.dot_dimension_numbers<[1], [0], [0], [1], [0, 0, 1, 1], [], []>} : vector<128x128xbf16>, vector<128x128xbf16>, vector<128x128xf32> -> vector<128x128xf32>
    %142 = arith.addf %136, %141 : vector<128x128xf32>
    %143 = vector.shape_cast %142 : vector<128x128xf32> to vector<1x8x16x128xf32>
    %c0_150 = arith.constant 0 : index
    %c8_151 = arith.constant 8 : index
    %c0_152 = arith.constant 0 : index
    %c0_153 = arith.constant 0 : index
    %144 = vector.load %arg5[%c0_150, %c8_151, %c0_152, %c0_153] : memref<1x16x16x128xf32, #tpu.memory_space<vmem>>, vector<1x8x16x128xf32>
    tpu.vector_store %arg5[%c0_150, %c8_151, %c0_152, %c0_153], %143 {strides = array<i32>} : memref<1x16x16x128xf32, #tpu.memory_space<vmem>>, vector<1x8x16x128xf32>,
    %cst_154 = arith.constant dense<0.000000e+00> : vector<128xf32>
    %145 = vector.multi_reduction <add>, %142, %cst_154 [0] : vector<128x128xf32> to vector<128xf32>
    %146 = vector.shape_cast %145 : vector<128xf32> to vector<1x128xf32>
    %147 = arith.addf %83, %146 : vector<1x128xf32>
    %148 = arith.mulf %142, %142 : vector<128x128xf32>
    %cst_155 = arith.constant dense<0.000000e+00> : vector<128xf32>
    %149 = vector.multi_reduction <add>, %148, %cst_155 [0] : vector<128x128xf32> to vector<128xf32>
    %150 = vector.shape_cast %149 : vector<128xf32> to vector<1x128xf32>
    %151 = arith.addf %87, %150 : vector<1x128xf32>
    %152 = tpu.iota {dimensions = array<i32: 0>} : vector<8x128xi32>
    %c0_i32 = arith.constant 0 : i32
    %153 = vector.broadcast %c0_i32 : i32 to vector<8x128xi32>
    %154 = arith.cmpi eq, %152, %153 : vector<8x128xi32>
    %c1_i32 = arith.constant 1 : i32
    %155 = vector.broadcast %c1_i32 : i32 to vector<8x128xi32>
    %156 = arith.cmpi eq, %152, %155 : vector<8x128xi32>
    %cst_156 = arith.constant 0.000000e+00 : f32
    %157 = vector.shape_cast %151 : vector<1x128xf32> to vector<1x128xf32>
    %158 = vector.broadcast %157 : vector<1x128xf32> to vector<8x128xf32>
    %159 = vector.broadcast %cst_156 : f32 to vector<8x128xf32>
    %160 = arith.select %156, %158, %159 : vector<8x128xi1>, vector<8x128xf32>
    %161 = vector.shape_cast %147 : vector<1x128xf32> to vector<1x128xf32>
    %162 = vector.broadcast %161 : vector<1x128xf32> to vector<8x128xf32>
    %163 = arith.select %154, %162, %160 : vector<8x128xi1>, vector<8x128xf32>
    %164 = vector.shape_cast %163 : vector<8x128xf32> to vector<1x8x128xf32>
    %c0_157 = arith.constant 0 : index
    %c0_158 = arith.constant 0 : index
    %c0_159 = arith.constant 0 : index
    %165 = vector.load %arg6[%c0_157, %c0_158, %c0_159] : memref<1x8x128xf32, #tpu.memory_space<vmem>>, vector<1x8x128xf32>
    tpu.vector_store %arg6[%c0_157, %c0_158, %c0_159], %164 {strides = array<i32>} : memref<1x8x128xf32, #tpu.memory_space<vmem>>, vector<1x8x128xf32>,
    return
  }
  func.func @transform_0(%arg0: i32) -> (i32, i32, i32, i32) {
    %c0_i32 = arith.constant 0 : i32
    %c0_i32_0 = arith.constant 0 : i32
    %c0_i32_1 = arith.constant 0 : i32
    %c0_i32_2 = arith.constant 0 : i32
    return %arg0, %c0_i32, %c0_i32_0, %c0_i32_1 : i32, i32, i32, i32
  }
  func.func @transform_1(%arg0: i32) -> (i32, i32) {
    %c0_i32 = arith.constant 0 : i32
    %c0_i32_0 = arith.constant 0 : i32
    %c0_i32_1 = arith.constant 0 : i32
    return %c0_i32, %c0_i32_0 : i32, i32
  }
  func.func @transform_2(%arg0: i32) -> (i32, i32) {
    %c0_i32 = arith.constant 0 : i32
    %c0_i32_0 = arith.constant 0 : i32
    %c0_i32_1 = arith.constant 0 : i32
    return %c0_i32, %c0_i32_0 : i32, i32
  }
  func.func @transform_3(%arg0: i32) -> (i32, i32, i32) {
    %c0_i32 = arith.constant 0 : i32
    %c0_i32_0 = arith.constant 0 : i32
    %c0_i32_1 = arith.constant 0 : i32
    %c0_i32_2 = arith.constant 0 : i32
    return %c0_i32, %c0_i32_0, %c0_i32_1 : i32, i32, i32
  }
  func.func @transform_4(%arg0: i32) -> (i32, i32, i32, i32) {
    %c0_i32 = arith.constant 0 : i32
    %c0_i32_0 = arith.constant 0 : i32
    %c0_i32_1 = arith.constant 0 : i32
    %c0_i32_2 = arith.constant 0 : i32
    return %arg0, %c0_i32, %c0_i32_0, %c0_i32_1 : i32, i32, i32, i32
  }
  func.func @transform_5(%arg0: i32) -> (i32, i32, i32) {
    %c0_i32 = arith.constant 0 : i32
    %c0_i32_0 = arith.constant 0 : i32
    %c0_i32_1 = arith.constant 0 : i32
    return %arg0, %c0_i32, %c0_i32_0 : i32, i32, i32
  }
}

</mosaic_0001>

<llo_original>
// kernel: mul.25
$region0: #{mul.25}
  %s0 = inlined_call_operand.vmem [shape: f32[3,3,4], index: 0, kind: input, shape index: {}]
  %s1 = inlined_call_operand.vmem [shape: f32[9,4], index: 1, kind: output, shape index: {}]
  $region1: #{mul.25} parent=0
    #allocation0 [shape = 'u8[4096]{0}', space=vmem, size = 0x1000, scoped, tag = 'scoped mem for output reshape']
    #allocation1 [shape = 'u8[16384]{0}', space=vmem, size = 0x4000, scoped, tag = 'scoped mem for input reshape']
    %s3 = sshllo.u32 0, 4
    %s4 = smul.addr 4, 3
    %s5 = scalar_lea.vmem %s0, %s4
    %v6 = vld [vmem:[%s5] sm:%s3]
    %s7 = scalar_lea.vmem [#allocation1], 24
    %8 = vst [vmem:[%s7] sm:%s3] %v6
    %s9 = smul.addr 4, 2
    %s10 = scalar_lea.vmem %s0, %s9
    %v11 = vld [vmem:[%s10] sm:%s3]
    %s12 = scalar_lea.vmem [#allocation1], 16
    %13 = vst [vmem:[%s12] sm:%s3] %v11
    %s14 = scalar_lea.vmem %s0, 4
    %v15 = vld [vmem:[%s14] sm:%s3]
    %s16 = scalar_lea.vmem [#allocation1], 8
    %17 = vst [vmem:[%s16] sm:%s3] %v15
    %v18 = vld [vmem:[%s0] sm:%s3]
    %19 = vst [vmem:[#allocation1] sm:%s3] %v18
    %v20 = vld [vmem:[#allocation1] ss:$8 sm:$0xf]
    %vm21 = vcmask 23552
    %22 = vst.msk [vmem:[#allocation0] sm:$0xf] %vm21, %v20
    %s23 = scalar_lea.vmem [#allocation1], 2
    %v24 = vld [vmem:[%s23] ss:$8 sm:$0xf]
    %25 = vrot.lane.b32.xlu0 %v24, 6
    %v26 = vpop.permute.xlu0 %25
    %vm27 = vcmask 72752
    %28 = vst.msk [vmem:[#allocation0] sm:$0xf] %vm27, %v26
    %s29 = scalar_lea.vmem [#allocation1], 1
    %v30 = vld [vmem:[%s29] ss:$8 sm:$0xf]
    %31 = vrot.lane.b32.xlu0 %v30, 3
    %v32 = vpop.permute.xlu0 %31
    %vm33 = vcmask 48152
    %34 = vst.msk [vmem:[#allocation0] sm:$0xf] %vm33, %v32
    %s36 = sshllo.u32 0, 4
    %v38 = vld [vmem:[#allocation0] sm:%s36]
    %s39 = sshllo.u32 0, 4
    %40 = vst [vmem:[%s1] sm:%s39] %v38

// kernel: sepconv_forward.2
$region0: #{sepconv_forward.2}
  #allocation0 [shape = 'u32[]', space=smem, size = 0x4, offset = 0x4, fixed_abs, tag = 'smem constant byte address 0x4 - core index']
  #allocation1 [shape = 'u32[144,128]{1,0:T(1,128)}', space=vmem, size = 0x12000, scoped, tag = 'internal scratch']
  #allocation2 [shape = 'bf16[18,32,128]{2,1,0:T(16,128)(2,1)}', space=vmem, size = 0x24000, scoped, tag = 'scratch operand']
  %s0 = inlined_call_operand.vmem [shape: f32[2,16,16,128], index: 0, kind: input, shape index: {}]
  %s1 = inlined_call_operand.vmem [shape: f32[1,128], index: 1, kind: input, shape index: {}]
  %s2 = inlined_call_operand.vmem [shape: f32[1,128], index: 2, kind: input, shape index: {}]
  %s3 = inlined_call_operand.vmem [shape: bf16[9,128,128], index: 3, kind: input, shape index: {}]
  %s4 = inlined_call_operand.vmem [shape: f32[2,16,16,128], index: 4, kind: output, shape index: {0}]
  %s5 = inlined_call_operand.vmem [shape: f32[2,8,128], index: 5, kind: output, shape index: {1}]
  %6 = xla_tuple %s4, %s5
  %s7 = sld [smem:[#allocation0]]
  $region57: #{sepconv_forward.2} parent=0
    _
  %s9 = ssub.s32 1, %s7
  %s10 = scalar_select 0, %s9, %s7
  loop: start=0, step=1, limit=4
  $region2: #{sepconv_forward.2} parent=0 // loop_pre_header
    _
  $region3: #{sepconv_forward.2} parent=0 // loop_header
    %s12 = sphi 0, %s16
    %p13 = scmp.ge.s32.totalorder %s12, 4
    %s22 = sphi 0, %s24
    %s25 = sphi 0, %s22
    %s26 = sphi 0, %s25
    %s42 = sphi 0, %s26
    %s46 = sphi 0, %s46
    %s48 = sphi 0, %s46
    %s49 = sphi 0, %s48
    %s63 = sphi 0, %s49
    %s67 = sphi 0, %s67
    %s69 = sphi 0, %s67
    %s70 = sphi 0, %s69
    %s84 = sphi 0, %s70
    %s88 = sphi 0, %s88
    %s90 = sphi 0, %s88
    %s91 = sphi 0, %s90
    %s105 = sphi 0, %s91
    %s111 = sphi 0, %s113
    %s114 = sphi 0, %s111
    %s115 = sphi 0, %s114
    %s131 = sphi 0, %s115
    %s137 = sphi 0, %s139
    %s140 = sphi 0, %s137
    %s141 = sphi 0, %s140
    %s157 = sphi 0, %s141
  $region4: #{sepconv_forward.2} parent=0 // loop_header_branch
    %15 = sbr.rel (%p13) target = $region8
  $region5: #{sepconv_forward.2} parent=0 // loop_body
    %s17 = ssub.s32 %s12, 1
    %s18 = ssub.s32 %s12, 2
    %s19 = sadd.s32 %s12, 1
    %s20 = ssub.s32 %s12, %s19
    %p21 = scmp.eq.s32.totalorder %s20, 0
    %s23 = sadd.s32 %s22, 1
    %s24 = scalar_select %p21, %s22, %s23
    %p27 = pneg %p21
    %p28 = scmp.eq.s32.totalorder %s12, 1
    %p29 = por %p27, %p28
    %p30 = scmp.ne.s32.totalorder %s22, %s25
    %p31 = scmp.eq.s32.totalorder %s12, 0
    %p32 = por %p30, %p31
    %p33 = scmp.ne.s32.totalorder %s22, %s25
    %p34 = scmp.eq.s32.totalorder %s17, 1
    %p35 = por %p33, %p34
    %p36 = scmp.ne.s32.totalorder %s25, %s26
    %p37 = scmp.eq.s32.totalorder %s17, 0
    %p38 = por %p36, %p37
    %p39 = scmp.ne.s32.totalorder %s25, %s26
    %p40 = scmp.eq.s32.totalorder %s18, 1
    %p41 = por %p39, %p40
    %p43 = scmp.ne.s32.totalorder %s26, %s42
    %p44 = scmp.eq.s32.totalorder %s18, 0
    %p45 = por %p43, %p44
    %s47 = sadd.s32 %s46, 1
    %p50 = scmp.eq.s32.totalorder %s12, 1
    %p51 = scmp.ne.s32.totalorder %s46, %s48
    %p52 = scmp.eq.s32.totalorder %s12, 0
    %p53 = por %p51, %p52
    %p54 = scmp.ne.s32.totalorder %s46, %s48
    %p55 = scmp.eq.s32.totalorder %s17, 1
    %p56 = por %p54, %p55
    %p57 = scmp.ne.s32.totalorder %s48, %s49
    %p58 = scmp.eq.s32.totalorder %s17, 0
    %p59 = por %p57, %p58
    %p60 = scmp.ne.s32.totalorder %s48, %s49
    %p61 = scmp.eq.s32.totalorder %s18, 1
    %p62 = por %p60, %p61
    %p64 = scmp.ne.s32.totalorder %s49, %s63
    %p65 = scmp.eq.s32.totalorder %s18, 0
    %p66 = por %p64, %p65
    %s68 = sadd.s32 %s67, 1
    %p71 = scmp.eq.s32.totalorder %s12, 1
    %p72 = scmp.ne.s32.totalorder %s67, %s69
    %p73 = scmp.eq.s32.totalorder %s12, 0
    %p74 = por %p72, %p73
    %p75 = scmp.ne.s32.totalorder %s67, %s69
    %p76 = scmp.eq.s32.totalorder %s17, 1
    %p77 = por %p75, %p76
    %p78 = scmp.ne.s32.totalorder %s69, %s70
    %p79 = scmp.eq.s32.totalorder %s17, 0
    %p80 = por %p78, %p79
    %p81 = scmp.ne.s32.totalorder %s69, %s70
    %p82 = scmp.eq.s32.totalorder %s18, 1
    %p83 = por %p81, %p82
    %p85 = scmp.ne.s32.totalorder %s70, %s84
    %p86 = scmp.eq.s32.totalorder %s18, 0
    %p87 = por %p85, %p86
    %s89 = sadd.s32 %s88, 1
    %p92 = scmp.eq.s32.totalorder %s12, 1
    %p93 = scmp.ne.s32.totalorder %s88, %s90
    %p94 = scmp.eq.s32.totalorder %s12, 0
    %p95 = por %p93, %p94
    %p96 = scmp.ne.s32.totalorder %s88, %s90
    %p97 = scmp.eq.s32.totalorder %s17, 1
    %p98 = por %p96, %p97
    %p99 = scmp.ne.s32.totalorder %s90, %s91
    %p100 = scmp.eq.s32.totalorder %s17, 0
    %p101 = por %p99, %p100
    %p102 = scmp.ne.s32.totalorder %s90, %s91
    %p103 = scmp.eq.s32.totalorder %s18, 1
    %p104 = por %p102, %p103
    %p106 = scmp.ne.s32.totalorder %s91, %s105
    %p107 = scmp.eq.s32.totalorder %s18, 0
    %p108 = por %p106, %p107
    %s109 = ssub.s32 %s12, %s19
    %p110 = scmp.eq.s32.totalorder %s109, 0
    %s112 = sadd.s32 %s111, 1
    %s113 = scalar_select %p110, %s111, %s112
    %p116 = pneg %p110
    %p117 = scmp.eq.s32.totalorder %s12, 1
    %p118 = por %p116, %p117
    %p119 = scmp.ne.s32.totalorder %s111, %s114
    %p120 = scmp.eq.s32.totalorder %s12, 0
    %p121 = por %p119, %p120
    %p122 = scmp.ne.s32.totalorder %s111, %s114
    %p123 = scmp.eq.s32.totalorder %s17, 1
    %p124 = por %p122, %p123
    %p125 = scmp.ne.s32.totalorder %s114, %s115
    %p126 = scmp.eq.s32.totalorder %s17, 0
    %p127 = por %p125, %p126
    %p128 = scmp.ne.s32.totalorder %s114, %s115
    %p129 = scmp.eq.s32.totalorder %s18, 1
    %p130 = por %p128, %p129
    %p132 = scmp.ne.s32.totalorder %s115, %s131
    %p133 = scmp.eq.s32.totalorder %s18, 0
    %p134 = por %p132, %p133
    %s135 = ssub.s32 %s12, %s19
    %p136 = scmp.eq.s32.totalorder %s135, 0
    %s138 = sadd.s32 %s137, 1
    %s139 = scalar_select %p136, %s137, %s138
    %p142 = pneg %p136
    %p143 = scmp.eq.s32.totalorder %s12, 1
    %p144 = por %p142, %p143
    %p145 = scmp.ne.s32.totalorder %s137, %s140
    %p146 = scmp.eq.s32.totalorder %s12, 0
    %p147 = por %p145, %p146
    %p148 = scmp.ne.s32.totalorder %s137, %s140
    %p149 = scmp.eq.s32.totalorder %s17, 1
    %p150 = por %p148, %p149
    %p151 = scmp.ne.s32.totalorder %s140, %s141
    %p152 = scmp.eq.s32.totalorder %s17, 0
    %p153 = por %p151, %p152
    %p154 = scmp.ne.s32.totalorder %s140, %s141
    %p155 = scmp.eq.s32.totalorder %s18, 1
    %p156 = por %p154, %p155
    %p158 = scmp.ne.s32.totalorder %s141, %s157
    %p159 = scmp.eq.s32.totalorder %s18, 0
    %p160 = por %p158, %p159
    %p161 = scmp.le.s32.totalorder 1, %s12
    %p162 = scmp.lt.s32.totalorder %s12, 3
    %p163 = pnand %p161, %p162
    %p164 = pneg %p163
    // Predicated region
    $region9: #{sepconv_forward.2} parent=5 // pred_check
      _
    $region10: #{sepconv_forward.2} parent=5 // pred_check_branch
      %166 = sbr.rel (%p163) target = $region12
    $region11: #{sepconv_forward.2} parent=5 // pred_region
      %s167 = ssub.s32 %s12, 1
      // Predicated region
      $region13: #{sepconv_forward.2} parent=11 // pred_check
        %p168 = pneg %p59
      $region14: #{sepconv_forward.2} parent=11 // pred_check_branch
        %170 = sbr.rel (%p168) target = $region16
      $region15: #{sepconv_forward.2} parent=11 // pred_region
        _
      $region16: #{sepconv_forward.2} parent=11 // pred_fallthru
        _
      // Predicated region
      $region17: #{sepconv_forward.2} parent=11 // pred_check
        %p171 = pneg %p80
      $region18: #{sepconv_forward.2} parent=11 // pred_check_branch
        %173 = sbr.rel (%p171) target = $region20
      $region19: #{sepconv_forward.2} parent=11 // pred_region
        _
      $region20: #{sepconv_forward.2} parent=11 // pred_fallthru
        _
      // Predicated region
      $region21: #{sepconv_forward.2} parent=11 // pred_check
        %p174 = pneg %p101
      $region22: #{sepconv_forward.2} parent=11 // pred_check_branch
        %176 = sbr.rel (%p174) target = $region24
      $region23: #{sepconv_forward.2} parent=11 // pred_region
        _
      $region24: #{sepconv_forward.2} parent=11 // pred_fallthru
        _
    $region12: #{sepconv_forward.2} parent=5 // pred_fallthru
      _
    %p177 = scmp.lt.s32.totalorder %s12, 2
    // Predicated region
    $region25: #{sepconv_forward.2} parent=5 // pred_check
      %p178 = pneg %p177
    $region26: #{sepconv_forward.2} parent=5 // pred_check_branch
      %180 = sbr.rel (%p178) target = $region28
    $region27: #{sepconv_forward.2} parent=5 // pred_region
      // Predicated region
      $region29: #{sepconv_forward.2} parent=27 // pred_check
        %p181 = pneg %p32
      $region30: #{sepconv_forward.2} parent=27 // pred_check_branch
        %183 = sbr.rel (%p181) target = $region32
      $region31: #{sepconv_forward.2} parent=27 // pred_region
        %p184 = scmp.lt.s32.totalorder %s12, 1
        %s185 = scalar_select %p184, %s12, 1
        %s186 = smul.addr %s185, 32
        %s187 = smul.addr %s186, 8
        %s188 = scalar_lea.vmem %s0, %s187
      $region32: #{sepconv_forward.2} parent=27 // pred_fallthru
        _
    $region28: #{sepconv_forward.2} parent=5 // pred_fallthru
      _
    %p189 = scmp.le.s32.totalorder 1, %s12
    %p190 = scmp.lt.s32.totalorder %s12, 3
    %p191 = pnand %p189, %p190
    %p192 = pneg %p191
    // Predicated region
    $region33: #{sepconv_forward.2} parent=5 // pred_check
      _
    $region34: #{sepconv_forward.2} parent=5 // pred_check_branch
      %194 = sbr.rel (%p191) target = $region36
    $region35: #{sepconv_forward.2} parent=5 // pred_region
      %s195 = ssub.s32 %s12, 1
      %p196 = scmp.lt.s32.totalorder %s17, 1
      %s197 = scalar_select %p196, %s17, 1
      %s198 = smul.addr %s197, 32
      %s199 = smul.addr %s198, 8
      %s200 = scalar_lea.vmem %s0, %s199
      %p201 = pneg %p38
      %p202 = pneg %p35
      %p203 = pneg %p59
      %p204 = pneg %p56
      %p205 = pneg %p80
      %p206 = pneg %p77
      %p207 = pneg %p101
      %p208 = pneg %p98
      %p209 = pneg %p127
      %p210 = pneg %p124
      %p211 = scmp.lt.s32.totalorder %s17, 1
      %s212 = scalar_select %p211, %s17, 1
      %s213 = smul.addr %s212, 32
      %s214 = smul.addr %s213, 8
      %s215 = scalar_lea.vmem %s4, %s214
      %p216 = pneg %p153
      %p217 = pneg %p150
      %p218 = scmp.lt.s32.totalorder %s17, 1
      %s219 = scalar_select %p218, %s17, 1
      %s220 = smul.addr %s219, 8
      %s221 = scalar_lea.vmem %s5, %s220
      %p222 = scmp.lt.s32.totalorder %s17, 1
      %s223 = scalar_select %p222, %s17, 1
      %s224 = smul.addr %s223, 32
      %s225 = smul.addr %s224, 8
      %s226 = scalar_lea.vmem %s0, %s225
      %p227 = scmp.lt.s32.totalorder %s17, 1
      %s228 = scalar_select %p227, %s17, 1
      %s229 = smul.addr %s228, 32
      %s230 = smul.addr %s229, 8
      %s231 = scalar_lea.vmem %s4, %s230
      %p232 = scmp.lt.s32.totalorder %s17, 1
      %s233 = scalar_select %p232, %s17, 1
      %s234 = smul.addr %s233, 8
      %s235 = scalar_lea.vmem %s5, %s234
      %v237 = vld [vmem:[%s226] sm:$0xff]
      %v238 = vld [vmem:[%s226 + $0x8] sm:$0xff]
      %v239 = vld [vmem:[%s226 + $0x10] sm:$0xff]
      %v240 = vld [vmem:[%s226 + $0x18] sm:$0xff]
      %v241 = vld [vmem:[%s226 + $0x20] sm:$0xff]
      %v242 = vld [vmem:[%s226 + $0x28] sm:$0xff]
      %v243 = vld [vmem:[%s226 + $0x30] sm:$0xff]
      %v244 = vld [vmem:[%s226 + $0x38] sm:$0xff]
      %v245 = vld [vmem:[%s226 + $0x40] sm:$0xff]
      %v246 = vld [vmem:[%s226 + $0x48] sm:$0xff]
      %v247 = vld [vmem:[%s226 + $0x50] sm:$0xff]
      %v248 = vld [vmem:[%s226 + $0x58] sm:$0xff]
      %v249 = vld [vmem:[%s226 + $0x60] sm:$0xff]
      %v250 = vld [vmem:[%s226 + $0x68] sm:$0xff]
      %v251 = vld [vmem:[%s226 + $0x70] sm:$0xff]
      %v252 = vld [vmem:[%s226 + $0x78] sm:$0xff]
      %v253 = vld [vmem:[%s226 + $0x80] sm:$0xff]
      %v254 = vld [vmem:[%s226 + $0x88] sm:$0xff]
      %v255 = vld [vmem:[%s226 + $0x90] sm:$0xff]
      %v256 = vld [vmem:[%s226 + $0x98] sm:$0xff]
      %v257 = vld [vmem:[%s226 + $0xa0] sm:$0xff]
      %v258 = vld [vmem:[%s226 + $0xa8] sm:$0xff]
      %v259 = vld [vmem:[%s226 + $0xb0] sm:$0xff]
      %v260 = vld [vmem:[%s226 + $0xb8] sm:$0xff]
      %v261 = vld [vmem:[%s226 + $0xc0] sm:$0xff]
      %v262 = vld [vmem:[%s226 + $0xc8] sm:$0xff]
      %v263 = vld [vmem:[%s226 + $0xd0] sm:$0xff]
      %v264 = vld [vmem:[%s226 + $0xd8] sm:$0xff]
      %v265 = vld [vmem:[%s226 + $0xe0] sm:$0xff]
      %v266 = vld [vmem:[%s226 + $0xe8] sm:$0xff]
      %v267 = vld [vmem:[%s226 + $0xf0] sm:$0xff]
      %v268 = vld [vmem:[%s226 + $0xf8] sm:$0xff]
      %v269 = vld [vmem:[%s1] sm:$0x1]
      %v271 = vlaneseq
      %v272 = vshrl.u32 %v271, 7
      %v273 = vsub.s32 0, %v272
      %v274 = vrot.slane %v269, %v273
      %v276 = vmul.f32 %v237, %v274
      %v277 = vmul.f32 %v238, %v274
      %v278 = vmul.f32 %v239, %v274
      %v279 = vmul.f32 %v240, %v274
      %v280 = vmul.f32 %v241, %v274
      %v281 = vmul.f32 %v242, %v274
      %v282 = vmul.f32 %v243, %v274
      %v283 = vmul.f32 %v244, %v274
      %v284 = vmul.f32 %v245, %v274
      %v285 = vmul.f32 %v246, %v274
      %v286 = vmul.f32 %v247, %v274
      %v287 = vmul.f32 %v248, %v274
      %v288 = vmul.f32 %v249, %v274
      %v289 = vmul.f32 %v250, %v274
      %v290 = vmul.f32 %v251, %v274
      %v291 = vmul.f32 %v252, %v274
      %v292 = vmul.f32 %v253, %v274
      %v293 = vmul.f32 %v254, %v274
      %v294 = vmul.f32 %v255, %v274
      %v295 = vmul.f32 %v256, %v274
      %v296 = vmul.f32 %v257, %v274
      %v297 = vmul.f32 %v258, %v274
      %v298 = vmul.f32 %v259, %v274
      %v299 = vmul.f32 %v260, %v274
      %v300 = vmul.f32 %v261, %v274
      %v301 = vmul.f32 %v262, %v274
      %v302 = vmul.f32 %v263, %v274
      %v303 = vmul.f32 %v264, %v274
      %v304 = vmul.f32 %v265, %v274
      %v305 = vmul.f32 %v266, %v274
      %v306 = vmul.f32 %v267, %v274
      %v307 = vmul.f32 %v268, %v274
      %v308 = vld [vmem:[%s2] sm:$0x1]
      %v310 = vlaneseq
      %v311 = vshrl.u32 %v310, 7
      %v312 = vsub.s32 0, %v311
      %v313 = vrot.slane %v308, %v312
      %v315 = vadd.f32 %v276, %v313
      %v316 = vadd.f32 %v277, %v313
      %v317 = vadd.f32 %v278, %v313
      %v318 = vadd.f32 %v279, %v313
      %v319 = vadd.f32 %v280, %v313
      %v320 = vadd.f32 %v281, %v313
      %v321 = vadd.f32 %v282, %v313
      %v322 = vadd.f32 %v283, %v313
      %v323 = vadd.f32 %v284, %v313
      %v324 = vadd.f32 %v285, %v313
      %v325 = vadd.f32 %v286, %v313
      %v326 = vadd.f32 %v287, %v313
      %v327 = vadd.f32 %v288, %v313
      %v328 = vadd.f32 %v289, %v313
      %v329 = vadd.f32 %v290, %v313
      %v330 = vadd.f32 %v291, %v313
      %v331 = vadd.f32 %v292, %v313
      %v332 = vadd.f32 %v293, %v313
      %v333 = vadd.f32 %v294, %v313
      %v334 = vadd.f32 %v295, %v313
      %v335 = vadd.f32 %v296, %v313
      %v336 = vadd.f32 %v297, %v313
      %v337 = vadd.f32 %v298, %v313
      %v338 = vadd.f32 %v299, %v313
      %v339 = vadd.f32 %v300, %v313
      %v340 = vadd.f32 %v301, %v313
      %v341 = vadd.f32 %v302, %v313
      %v342 = vadd.f32 %v303, %v313
      %v343 = vadd.f32 %v304, %v313
      %v344 = vadd.f32 %v305, %v313
      %v345 = vadd.f32 %v306, %v313
      %v346 = vadd.f32 %v307, %v313
      %v347 = vmax.f32 %v315, 0.0
      %v348 = vmax.f32 %v316, 0.0
      %v349 = vmax.f32 %v317, 0.0
      %v350 = vmax.f32 %v318, 0.0
      %v351 = vmax.f32 %v319, 0.0
      %v352 = vmax.f32 %v320, 0.0
      %v353 = vmax.f32 %v321, 0.0
      %v354 = vmax.f32 %v322, 0.0
      %v355 = vmax.f32 %v323, 0.0
      %v356 = vmax.f32 %v324, 0.0
      %v357 = vmax.f32 %v325, 0.0
      %v358 = vmax.f32 %v326, 0.0
      %v359 = vmax.f32 %v327, 0.0
      %v360 = vmax.f32 %v328, 0.0
      %v361 = vmax.f32 %v329, 0.0
      %v362 = vmax.f32 %v330, 0.0
      %v363 = vmax.f32 %v331, 0.0
      %v364 = vmax.f32 %v332, 0.0
      %v365 = vmax.f32 %v333, 0.0
      %v366 = vmax.f32 %v334, 0.0
      %v367 = vmax.f32 %v335, 0.0
      %v368 = vmax.f32 %v336, 0.0
      %v369 = vmax.f32 %v337, 0.0
      %v370 = vmax.f32 %v338, 0.0
      %v371 = vmax.f32 %v339, 0.0
      %v372 = vmax.f32 %v340, 0.0
      %v373 = vmax.f32 %v341, 0.0
      %v374 = vmax.f32 %v342, 0.0
      %v375 = vmax.f32 %v343, 0.0
      %v376 = vmax.f32 %v344, 0.0
      %v377 = vmax.f32 %v345, 0.0
      %v378 = vmax.f32 %v346, 0.0
      %v379 = vpack.c.bf16 %v348, %v347
      %v380 = vpack.c.bf16 %v350, %v349
      %v381 = vpack.c.bf16 %v352, %v351
      %v382 = vpack.c.bf16 %v354, %v353
      %v383 = vpack.c.bf16 %v356, %v355
      %v384 = vpack.c.bf16 %v358, %v357
      %v385 = vpack.c.bf16 %v360, %v359
      %v386 = vpack.c.bf16 %v362, %v361
      %v387 = vpack.c.bf16 %v364, %v363
      %v388 = vpack.c.bf16 %v366, %v365
      %v389 = vpack.c.bf16 %v368, %v367
      %v390 = vpack.c.bf16 %v370, %v369
      %v391 = vpack.c.bf16 %v372, %v371
      %v392 = vpack.c.bf16 %v374, %v373
      %v393 = vpack.c.bf16 %v376, %v375
      %v394 = vpack.c.bf16 %v378, %v377
      %395 = vst [vmem:[#allocation2] sm:$0xff] 0
      %396 = vst [vmem:[#allocation2 + $0x8] sm:$0xff] 0
      %s397 = scalar_lea.vmem [#allocation2], 272
      %398 = vst [vmem:[%s397] sm:$0xff] 0
      %399 = vst [vmem:[%s397 + $0x8] sm:$0xff] 0
      %s400 = scalar_lea.vmem [#allocation2], 16
      %401 = vst [vmem:[%s400] sm:$0xf] 0
      %402 = vst [vmem:[%s400 + $0x10] sm:$0xf] 0
      %403 = vst [vmem:[%s400 + $0x20] sm:$0xf] 0
      %404 = vst [vmem:[%s400 + $0x30] sm:$0xf] 0
      %405 = vst [vmem:[%s400 + $0x40] sm:$0xf] 0
      %406 = vst [vmem:[%s400 + $0x50] sm:$0xf] 0
      %407 = vst [vmem:[%s400 + $0x60] sm:$0xf] 0
      %408 = vst [vmem:[%s400 + $0x70] sm:$0xf] 0
      %409 = vst [vmem:[%s400 + $0x80] sm:$0xf] 0
      %410 = vst [vmem:[%s400 + $0x90] sm:$0xf] 0
      %411 = vst [vmem:[%s400 + $0xa0] sm:$0xf] 0
      %412 = vst [vmem:[%s400 + $0xb0] sm:$0xf] 0
      %413 = vst [vmem:[%s400 + $0xc0] sm:$0xf] 0
      %414 = vst [vmem:[%s400 + $0xd0] sm:$0xf] 0
      %415 = vst [vmem:[%s400 + $0xe0] sm:$0xf] 0
      %416 = vst [vmem:[%s400 + $0xf0] sm:$0xf] 0
      %417 = vst [vmem:[%s400 + $0x8] sm:$0xf0] 0
      %418 = vst [vmem:[%s400 + $0x18] sm:$0xf0] 0
      %419 = vst [vmem:[%s400 + $0x28] sm:$0xf0] 0
      %420 = vst [vmem:[%s400 + $0x38] sm:$0xf0] 0
      %421 = vst [vmem:[%s400 + $0x48] sm:$0xf0] 0
      %422 = vst [vmem:[%s400 + $0x58] sm:$0xf0] 0
      %423 = vst [vmem:[%s400 + $0x68] sm:$0xf0] 0
      %424 = vst [vmem:[%s400 + $0x78] sm:$0xf0] 0
      %425 = vst [vmem:[%s400 + $0x88] sm:$0xf0] 0
      %426 = vst [vmem:[%s400 + $0x98] sm:$0xf0] 0
      %427 = vst [vmem:[%s400 + $0xa8] sm:$0xf0] 0
      %428 = vst [vmem:[%s400 + $0xb8] sm:$0xf0] 0
      %429 = vst [vmem:[%s400 + $0xc8] sm:$0xf0] 0
      %430 = vst [vmem:[%s400 + $0xd8] sm:$0xf0] 0
      %431 = vst [vmem:[%s400 + $0xe8] sm:$0xf0] 0
      %432 = vst [vmem:[%s400 + $0xf8] sm:$0xf0] 0
      %v449 = vrot.slane %v379, 4
      %v450 = vrot.slane %v380, 4
      %v451 = vrot.slane %v381, 4
      %v452 = vrot.slane %v382, 4
      %v453 = vrot.slane %v383, 4
      %v454 = vrot.slane %v384, 4
      %v455 = vrot.slane %v385, 4
      %v456 = vrot.slane %v386, 4
      %v457 = vrot.slane %v387, 4
      %v458 = vrot.slane %v388, 4
      %v459 = vrot.slane %v389, 4
      %v460 = vrot.slane %v390, 4
      %v461 = vrot.slane %v391, 4
      %v462 = vrot.slane %v392, 4
      %v463 = vrot.slane %v393, 4
      %v464 = vrot.slane %v394, 4
      %481 = vst [vmem:[%s400] sm:$0xf0] %v449
      %482 = vst [vmem:[%s400 + $0x8] sm:$0xf] %v449
      %483 = vst [vmem:[%s400 + $0x10] sm:$0xf0] %v450
      %484 = vst [vmem:[%s400 + $0x18] sm:$0xf] %v450
      %485 = vst [vmem:[%s400 + $0x20] sm:$0xf0] %v451
      %486 = vst [vmem:[%s400 + $0x28] sm:$0xf] %v451
      %487 = vst [vmem:[%s400 + $0x30] sm:$0xf0] %v452
      %488 = vst [vmem:[%s400 + $0x38] sm:$0xf] %v452
      %489 = vst [vmem:[%s400 + $0x40] sm:$0xf0] %v453
      %490 = vst [vmem:[%s400 + $0x48] sm:$0xf] %v453
      %491 = vst [vmem:[%s400 + $0x50] sm:$0xf0] %v454
      %492 = vst [vmem:[%s400 + $0x58] sm:$0xf] %v454
      %493 = vst [vmem:[%s400 + $0x60] sm:$0xf0] %v455
      %494 = vst [vmem:[%s400 + $0x68] sm:$0xf] %v455
      %495 = vst [vmem:[%s400 + $0x70] sm:$0xf0] %v456
      %496 = vst [vmem:[%s400 + $0x78] sm:$0xf] %v456
      %497 = vst [vmem:[%s400 + $0x80] sm:$0xf0] %v457
      %498 = vst [vmem:[%s400 + $0x88] sm:$0xf] %v457
      %499 = vst [vmem:[%s400 + $0x90] sm:$0xf0] %v458
      %500 = vst [vmem:[%s400 + $0x98] sm:$0xf] %v458
      %501 = vst [vmem:[%s400 + $0xa0] sm:$0xf0] %v459
      %502 = vst [vmem:[%s400 + $0xa8] sm:$0xf] %v459
      %503 = vst [vmem:[%s400 + $0xb0] sm:$0xf0] %v460
      %504 = vst [vmem:[%s400 + $0xb8] sm:$0xf] %v460
      %505 = vst [vmem:[%s400 + $0xc0] sm:$0xf0] %v461
      %506 = vst [vmem:[%s400 + $0xc8] sm:$0xf] %v461
      %507 = vst [vmem:[%s400 + $0xd0] sm:$0xf0] %v462
      %508 = vst [vmem:[%s400 + $0xd8] sm:$0xf] %v462
      %509 = vst [vmem:[%s400 + $0xe0] sm:$0xf0] %v463
      %510 = vst [vmem:[%s400 + $0xe8] sm:$0xf] %v463
      %511 = vst [vmem:[%s400 + $0xf0] sm:$0xf0] %v464
      %512 = vst [vmem:[%s400 + $0xf8] sm:$0xf] %v464
      %v513 = vld [vmem:[#allocation2] sm:$0xf8]
      %v514 = vld [vmem:[#allocation2 + $0x8] sm:$0xf]
      %v515 = vld [vmem:[#allocation2 + $0x10] sm:$0xf8]
      %v516 = vld [vmem:[#allocation2 + $0x18] sm:$0xf]
      %v517 = vld [vmem:[#allocation2 + $0x20] sm:$0xf8]
      %v518 = vld [vmem:[#allocation2 + $0x28] sm:$0xf]
      %v519 = vld [vmem:[#allocation2 + $0x30] sm:$0xf8]
      %v520 = vld [vmem:[#allocation2 + $0x38] sm:$0xf]
      %v521 = vld [vmem:[#allocation2 + $0x40] sm:$0xf8]
      %v522 = vld [vmem:[#allocation2 + $0x48] sm:$0xf]
      %v523 = vld [vmem:[#allocation2 + $0x50] sm:$0xf8]
      %v524 = vld [vmem:[#allocation2 + $0x58] sm:$0xf]
      %v525 = vld [vmem:[#allocation2 + $0x60] sm:$0xf8]
      %v526 = vld [vmem:[#allocation2 + $0x68] sm:$0xf]
      %v527 = vld [vmem:[#allocation2 + $0x70] sm:$0xf8]
      %v528 = vld [vmem:[#allocation2 + $0x78] sm:$0xf]
      %vm529 = vsmask.f32 4352
      %v531 = vshrl.u32 %v513, 16
      %v533 = vrot.slane %v531, 3
      %v534 = vshll.u32 %v513, 16
      %v536 = vrot.slane %v534, 4
      %v537 = vor.u32 %v533, %v536
      %v539 = vshrl.u32 %v514, 16
      %v541 = vrot.slane %v539, 3
      %v542 = vshll.u32 %v514, 16
      %v544 = vrot.slane %v542, 4
      %v545 = vor.u32 %v541, %v544
      %v546 = vsel %vm529, %v537, %v545
      %v548 = vshrl.u32 %v515, 16
      %v550 = vrot.slane %v548, 3
      %v551 = vshll.u32 %v515, 16
      %v553 = vrot.slane %v551, 4
      %v554 = vor.u32 %v550, %v553
      %v556 = vshrl.u32 %v516, 16
      %v558 = vrot.slane %v556, 3
      %v559 = vshll.u32 %v516, 16
      %v561 = vrot.slane %v559, 4
      %v562 = vor.u32 %v558, %v561
      %v563 = vsel %vm529, %v554, %v562
      %v565 = vshrl.u32 %v517, 16
      %v567 = vrot.slane %v565, 3
      %v568 = vshll.u32 %v517, 16
      %v570 = vrot.slane %v568, 4
      %v571 = vor.u32 %v567, %v570
      %v573 = vshrl.u32 %v518, 16
      %v575 = vrot.slane %v573, 3
      %v576 = vshll.u32 %v518, 16
      %v578 = vrot.slane %v576, 4
      %v579 = vor.u32 %v575, %v578
      %v580 = vsel %vm529, %v571, %v579
      %v582 = vshrl.u32 %v519, 16
      %v584 = vrot.slane %v582, 3
      %v585 = vshll.u32 %v519, 16
      %v587 = vrot.slane %v585, 4
      %v588 = vor.u32 %v584, %v587
      %v590 = vshrl.u32 %v520, 16
      %v592 = vrot.slane %v590, 3
      %v593 = vshll.u32 %v520, 16
      %v595 = vrot.slane %v593, 4
      %v596 = vor.u32 %v592, %v595
      %v597 = vsel %vm529, %v588, %v596
      %v599 = vshrl.u32 %v521, 16
      %v601 = vrot.slane %v599, 3
      %v602 = vshll.u32 %v521, 16
      %v604 = vrot.slane %v602, 4
      %v605 = vor.u32 %v601, %v604
      %v607 = vshrl.u32 %v522, 16
      %v609 = vrot.slane %v607, 3
      %v610 = vshll.u32 %v522, 16
      %v612 = vrot.slane %v610, 4
      %v613 = vor.u32 %v609, %v612
      %v614 = vsel %vm529, %v605, %v613
      %v616 = vshrl.u32 %v523, 16
      %v618 = vrot.slane %v616, 3
      %v619 = vshll.u32 %v523, 16
      %v621 = vrot.slane %v619, 4
      %v622 = vor.u32 %v618, %v621
      %v624 = vshrl.u32 %v524, 16
      %v626 = vrot.slane %v624, 3
      %v627 = vshll.u32 %v524, 16
      %v629 = vrot.slane %v627, 4
      %v630 = vor.u32 %v626, %v629
      %v631 = vsel %vm529, %v622, %v630
      %v633 = vshrl.u32 %v525, 16
      %v635 = vrot.slane %v633, 3
      %v636 = vshll.u32 %v525, 16
      %v638 = vrot.slane %v636, 4
      %v639 = vor.u32 %v635, %v638
      %v641 = vshrl.u32 %v526, 16
      %v643 = vrot.slane %v641, 3
      %v644 = vshll.u32 %v526, 16
      %v646 = vrot.slane %v644, 4
      %v647 = vor.u32 %v643, %v646
      %v648 = vsel %vm529, %v639, %v647
      %v650 = vshrl.u32 %v527, 16
      %v652 = vrot.slane %v650, 3
      %v653 = vshll.u32 %v527, 16
      %v655 = vrot.slane %v653, 4
      %v656 = vor.u32 %v652, %v655
      %v658 = vshrl.u32 %v528, 16
      %v660 = vrot.slane %v658, 3
      %v661 = vshll.u32 %v528, 16
      %v663 = vrot.slane %v661, 4
      %v664 = vor.u32 %v660, %v663
      %v665 = vsel %vm529, %v656, %v664
      %v674 = vld [vmem:[%s3] sm:$0xf]
      %v675 = vld [vmem:[%s3 + $0x4] sm:$0xf]
      %v676 = vld [vmem:[%s3 + $0x8] sm:$0xf]
      %v677 = vld [vmem:[%s3 + $0xc] sm:$0xf]
      %v678 = vld [vmem:[%s3 + $0x10] sm:$0xf]
      %v679 = vld [vmem:[%s3 + $0x14] sm:$0xf]
      %v680 = vld [vmem:[%s3 + $0x18] sm:$0xf]
      %v681 = vld [vmem:[%s3 + $0x1c] sm:$0xf]
      %v682 = vld [vmem:[%s3 + $0x20] sm:$0xf]
      %v683 = vld [vmem:[%s3 + $0x24] sm:$0xf]
      %v684 = vld [vmem:[%s3 + $0x28] sm:$0xf]
      %v685 = vld [vmem:[%s3 + $0x2c] sm:$0xf]
      %v686 = vld [vmem:[%s3 + $0x30] sm:$0xf]
      %v687 = vld [vmem:[%s3 + $0x34] sm:$0xf]
      %v688 = vld [vmem:[%s3 + $0x38] sm:$0xf]
      %v689 = vld [vmem:[%s3 + $0x3c] sm:$0xf]
      %v690 = vld [vmem:[#allocation2] sm:$0xf0]
      %v691 = vld [vmem:[#allocation2 + $0x10] sm:$0xf0]
      %v692 = vld [vmem:[#allocation2 + $0x20] sm:$0xf0]
      %v693 = vld [vmem:[#allocation2 + $0x30] sm:$0xf0]
      %v694 = vld [vmem:[#allocation2 + $0x40] sm:$0xf0]
      %v695 = vld [vmem:[#allocation2 + $0x50] sm:$0xf0]
      %v696 = vld [vmem:[#allocation2 + $0x60] sm:$0xf0]
      %v697 = vld [vmem:[#allocation2 + $0x70] sm:$0xf0]
      %vm714 = vcmask 1043456
      %v715 = vrot.slane %v690, 4
      %v716 = vrot.slane %v514, 4
      %v717 = vsel %vm714, %v715, %v716
      %v718 = vrot.slane %v691, 4
      %v719 = vrot.slane %v516, 4
      %v720 = vsel %vm714, %v718, %v719
      %v721 = vrot.slane %v692, 4
      %v722 = vrot.slane %v518, 4
      %v723 = vsel %vm714, %v721, %v722
      %v724 = vrot.slane %v693, 4
      %v725 = vrot.slane %v520, 4
      %v726 = vsel %vm714, %v724, %v725
      %v727 = vrot.slane %v694, 4
      %v728 = vrot.slane %v522, 4
      %v729 = vsel %vm714, %v727, %v728
      %v730 = vrot.slane %v695, 4
      %v731 = vrot.slane %v524, 4
      %v732 = vsel %vm714, %v730, %v731
      %v733 = vrot.slane %v696, 4
      %v734 = vrot.slane %v526, 4
      %v735 = vsel %vm714, %v733, %v734
      %v736 = vrot.slane %v697, 4
      %v737 = vrot.slane %v528, 4
      %v738 = vsel %vm714, %v736, %v737
      %s747 = scalar_lea.vmem %s3, 64
      %v748 = vld [vmem:[%s747] sm:$0xf]
      %v749 = vld [vmem:[%s747 + $0x4] sm:$0xf]
      %v750 = vld [vmem:[%s747 + $0x8] sm:$0xf]
      %v751 = vld [vmem:[%s747 + $0xc] sm:$0xf]
      %v752 = vld [vmem:[%s747 + $0x10] sm:$0xf]
      %v753 = vld [vmem:[%s747 + $0x14] sm:$0xf]
      %v754 = vld [vmem:[%s747 + $0x18] sm:$0xf]
      %v755 = vld [vmem:[%s747 + $0x1c] sm:$0xf]
      %v756 = vld [vmem:[%s747 + $0x20] sm:$0xf]
      %v757 = vld [vmem:[%s747 + $0x24] sm:$0xf]
      %v758 = vld [vmem:[%s747 + $0x28] sm:$0xf]
      %v759 = vld [vmem:[%s747 + $0x2c] sm:$0xf]
      %v760 = vld [vmem:[%s747 + $0x30] sm:$0xf]
      %v761 = vld [vmem:[%s747 + $0x34] sm:$0xf]
      %v762 = vld [vmem:[%s747 + $0x38] sm:$0xf]
      %v763 = vld [vmem:[%s747 + $0x3c] sm:$0xf]
      %v780 = vunpack.c.l.b16 %v748
      %v781 = vunpack.c.l.b16 %v749
      %v782 = vunpack.c.l.b16 %v750
      %v783 = vunpack.c.l.b16 %v751
      %v784 = vunpack.c.l.b16 %v752
      %v785 = vunpack.c.l.b16 %v753
      %v786 = vunpack.c.l.b16 %v754
      %v787 = vunpack.c.l.b16 %v755
      %v788 = vunpack.c.l.b16 %v756
      %v789 = vunpack.c.l.b16 %v757
      %v790 = vunpack.c.l.b16 %v758
      %v791 = vunpack.c.l.b16 %v759
      %v792 = vunpack.c.l.b16 %v760
      %v793 = vunpack.c.l.b16 %v761
      %v794 = vunpack.c.l.b16 %v762
      %v795 = vunpack.c.l.b16 %v763
      %v796 = vpack.c.b16 %v781, %v780
      %v797 = vpack.c.b16 %v783, %v782
      %v798 = vpack.c.b16 %v785, %v784
      %v799 = vpack.c.b16 %v787, %v786
      %v800 = vpack.c.b16 %v789, %v788
      %v801 = vpack.c.b16 %v791, %v790
      %v802 = vpack.c.b16 %v793, %v792
      %v803 = vpack.c.b16 %v795, %v794
      %812 = vmatprep.subr.bf16.mxu0 0
      %813 = vmatpush1.bf16.msra.mxu0 %v796
      %814 = vmatprep.subr.bf16.mxu0 0
      %815 = vmatpush1.bf16.msra.mxu0 %v797
      %816 = vmatprep.subr.bf16.mxu0 0
      %817 = vmatpush1.bf16.msra.mxu0 %v798
      %818 = vmatprep.subr.bf16.mxu0 0
      %819 = vmatpush1.bf16.msra.mxu0 %v799
      %820 = vmatprep.subr.bf16.mxu0 0
      %821 = vmatpush1.bf16.msra.mxu0 %v800
      %822 = vmatprep.subr.bf16.mxu0 0
      %823 = vmatpush1.bf16.msra.mxu0 %v801
      %824 = vmatprep.subr.bf16.mxu0 0
      %825 = vmatpush1.bf16.msra.mxu0 %v802
      %826 = vmatprep.subr.bf16.mxu0 0
      %827 = vmatpush1.bf16.msra.mxu0 %v803
      %828 = vmatprep.subr.bf16.mxu0 0
      %829 = vmatpush1.bf16.msra.mxu0 0
      %830 = vmatprep.subr.bf16.mxu0 0
      %831 = vmatpush1.bf16.msra.mxu0 0
      %832 = vmatprep.subr.bf16.mxu0 0
      %833 = vmatpush1.bf16.msra.mxu0 0
      %834 = vmatprep.subr.bf16.mxu0 0
      %835 = vmatpush1.bf16.msra.mxu0 0
      %836 = vmatprep.subr.bf16.mxu0 0
      %837 = vmatpush1.bf16.msra.mxu0 0
      %838 = vmatprep.subr.bf16.mxu0 0
      %839 = vmatpush1.bf16.msra.mxu0 0
      %840 = vmatprep.subr.bf16.mxu0 0
      %841 = vmatpush1.bf16.msra.mxu0 0
      %842 = vmatprep.subr.bf16.mxu0 0
      %843 = vmatpush1.bf16.msra.mxu0 0
      %844 = vmatprep.mubr.bf16.mxu0 0
      %845 = vmatmul.mubr.bf16.gmra.mrb[0].mxu0 %v717
      %v846 = vpop.f32.mrb[0].mxu0
      %v847 = vadd.f32 0.0, %v846
      %v848 = vpop.f32.mrb[0].mxu0
      %v849 = vpop.f32.mrb[0].mxu0
      %v850 = vadd.f32 0.0, %v849
      %v851 = vpop.f32.mrb[0].mxu0
      %852 = vmatprep.mubr.bf16.mxu0 0
      %853 = vmatmul.mubr.bf16.gmra.mrb[0].mxu0 %v720
      %v854 = vpop.f32.mrb[0].mxu0
      %v855 = vadd.f32 0.0, %v854
      %v856 = vpop.f32.mrb[0].mxu0
      %v857 = vpop.f32.mrb[0].mxu0
      %v858 = vadd.f32 0.0, %v857
      %v859 = vpop.f32.mrb[0].mxu0
      %860 = vmatprep.mubr.bf16.mxu0 0
      %861 = vmatmul.mubr.bf16.gmra.mrb[0].mxu0 %v723
      %v862 = vpop.f32.mrb[0].mxu0
      %v863 = vadd.f32 0.0, %v862
      %v864 = vpop.f32.mrb[0].mxu0
      %v865 = vpop.f32.mrb[0].mxu0
      %v866 = vadd.f32 0.0, %v865
      %v867 = vpop.f32.mrb[0].mxu0
      %868 = vmatprep.mubr.bf16.mxu0 0
      %869 = vmatmul.mubr.bf16.gmra.mrb[0].mxu0 %v726
      %v870 = vpop.f32.mrb[0].mxu0
      %v871 = vadd.f32 0.0, %v870
      %v872 = vpop.f32.mrb[0].mxu0
      %v873 = vpop.f32.mrb[0].mxu0
      %v874 = vadd.f32 0.0, %v873
      %v875 = vpop.f32.mrb[0].mxu0
      %876 = vmatprep.mubr.bf16.mxu0 0
      %877 = vmatmul.mubr.bf16.gmra.mrb[0].mxu0 %v729
      %v878 = vpop.f32.mrb[0].mxu0
      %v879 = vadd.f32 0.0, %v878
      %v880 = vpop.f32.mrb[0].mxu0
      %v881 = vpop.f32.mrb[0].mxu0
      %v882 = vadd.f32 0.0, %v881
      %v883 = vpop.f32.mrb[0].mxu0
      %884 = vmatprep.mubr.bf16.mxu0 0
      %885 = vmatmul.mubr.bf16.gmra.mrb[0].mxu0 %v732
      %v886 = vpop.f32.mrb[0].mxu0
      %v887 = vadd.f32 0.0, %v886
      %v888 = vpop.f32.mrb[0].mxu0
      %v889 = vpop.f32.mrb[0].mxu0
      %v890 = vadd.f32 0.0, %v889
      %v891 = vpop.f32.mrb[0].mxu0
      %892 = vmatprep.mubr.bf16.mxu0 0
      %893 = vmatmul.mubr.bf16.gmra.mrb[0].mxu0 %v735
      %v894 = vpop.f32.mrb[0].mxu0
      %v895 = vadd.f32 0.0, %v894
      %v896 = vpop.f32.mrb[0].mxu0
      %v897 = vpop.f32.mrb[0].mxu0
      %v898 = vadd.f32 0.0, %v897
      %v899 = vpop.f32.mrb[0].mxu0
      %900 = vmatprep.mubr.bf16.mxu0 0
      %901 = vmatmul.mubr.bf16.gmra.mrb[0].mxu0 %v738
      %v902 = vpop.f32.mrb[0].mxu0
      %v903 = vadd.f32 0.0, %v902
      %v904 = vpop.f32.mrb[0].mxu0
      %v905 = vpop.f32.mrb[0].mxu0
      %v906 = vadd.f32 0.0, %v905
      %v907 = vpop.f32.mrb[0].mxu0
      %908 = vdwg.mxu0
      %v925 = vunpack.c.l.b16 %v674
      %v926 = vunpack.c.l.b16 %v675
      %v927 = vunpack.c.l.b16 %v676
      %v928 = vunpack.c.l.b16 %v677
      %v929 = vunpack.c.l.b16 %v678
      %v930 = vunpack.c.l.b16 %v679
      %v931 = vunpack.c.l.b16 %v680
      %v932 = vunpack.c.l.b16 %v681
      %v933 = vunpack.c.l.b16 %v682
      %v934 = vunpack.c.l.b16 %v683
      %v935 = vunpack.c.l.b16 %v684
      %v936 = vunpack.c.l.b16 %v685
      %v937 = vunpack.c.l.b16 %v686
      %v938 = vunpack.c.l.b16 %v687
      %v939 = vunpack.c.l.b16 %v688
      %v940 = vunpack.c.l.b16 %v689
      %v941 = vpack.c.b16 %v926, %v925
      %v942 = vpack.c.b16 %v928, %v927
      %v943 = vpack.c.b16 %v930, %v929
      %v944 = vpack.c.b16 %v932, %v931
      %v945 = vpack.c.b16 %v934, %v933
      %v946 = vpack.c.b16 %v936, %v935
      %v947 = vpack.c.b16 %v938, %v937
      %v948 = vpack.c.b16 %v940, %v939
      %957 = vmatprep.subr.bf16.mxu0 0
      %958 = vmatpush1.bf16.msra.mxu0 %v941
      %959 = vmatprep.subr.bf16.mxu0 0
      %960 = vmatpush1.bf16.msra.mxu0 %v942
      %961 = vmatprep.subr.bf16.mxu0 0
      %962 = vmatpush1.bf16.msra.mxu0 %v943
      %963 = vmatprep.subr.bf16.mxu0 0
      %964 = vmatpush1.bf16.msra.mxu0 %v944
      %965 = vmatprep.subr.bf16.mxu0 0
      %966 = vmatpush1.bf16.msra.mxu0 %v945
      %967 = vmatprep.subr.bf16.mxu0 0
      %968 = vmatpush1.bf16.msra.mxu0 %v946
      %969 = vmatprep.subr.bf16.mxu0 0
      %970 = vmatpush1.bf16.msra.mxu0 %v947
      %971 = vmatprep.subr.bf16.mxu0 0
      %972 = vmatpush1.bf16.msra.mxu0 %v948
      %973 = vmatprep.subr.bf16.mxu0 0
      %974 = vmatpush1.bf16.msra.mxu0 0
      %975 = vmatprep.subr.bf16.mxu0 0
      %976 = vmatpush1.bf16.msra.mxu0 0
      %977 = vmatprep.subr.bf16.mxu0 0
      %978 = vmatpush1.bf16.msra.mxu0 0
      %979 = vmatprep.subr.bf16.mxu0 0
      %980 = vmatpush1.bf16.msra.mxu0 0
      %981 = vmatprep.subr.bf16.mxu0 0
      %982 = vmatpush1.bf16.msra.mxu0 0
      %983 = vmatprep.subr.bf16.mxu0 0
      %984 = vmatpush1.bf16.msra.mxu0 0
      %985 = vmatprep.subr.bf16.mxu0 0
      %986 = vmatpush1.bf16.msra.mxu0 0
      %987 = vmatprep.subr.bf16.mxu0 0
      %988 = vmatpush1.bf16.msra.mxu0 0
      %989 = vmatprep.mubr.bf16.mxu0 0
      %990 = vmatmul.mubr.bf16.gmra.mrb[0].mxu0 %v546
      %v991 = vpop.f32.mrb[0].mxu0
      %v992 = vadd.f32 %v847, %v991
      %v993 = vpop.f32.mrb[0].mxu0
      %v994 = vpop.f32.mrb[0].mxu0
      %v995 = vadd.f32 %v850, %v994
      %v996 = vpop.f32.mrb[0].mxu0
      %997 = vmatprep.mubr.bf16.mxu0 0
      %998 = vmatmul.mubr.bf16.gmra.mrb[0].mxu0 %v563
      %v999 = vpop.f32.mrb[0].mxu0
      %v1000 = vadd.f32 %v855, %v999
      %v1001 = vpop.f32.mrb[0].mxu0
      %v1002 = vpop.f32.mrb[0].mxu0
      %v1003 = vadd.f32 %v858, %v1002
      %v1004 = vpop.f32.mrb[0].mxu0
      %1005 = vmatprep.mubr.bf16.mxu0 0
      %1006 = vmatmul.mubr.bf16.gmra.mrb[0].mxu0 %v580
      %v1007 = vpop.f32.mrb[0].mxu0
      %v1008 = vadd.f32 %v863, %v1007
      %v1009 = vpop.f32.mrb[0].mxu0
      %v1010 = vpop.f32.mrb[0].mxu0
      %v1011 = vadd.f32 %v866, %v1010
      %v1012 = vpop.f32.mrb[0].mxu0
      %1013 = vmatprep.mubr.bf16.mxu0 0
      %1014 = vmatmul.mubr.bf16.gmra.mrb[0].mxu0 %v597
      %v1015 = vpop.f32.mrb[0].mxu0
      %v1016 = vadd.f32 %v871, %v1015
      %v1017 = vpop.f32.mrb[0].mxu0
      %v1018 = vpop.f32.mrb[0].mxu0
      %v1019 = vadd.f32 %v874, %v1018
      %v1020 = vpop.f32.mrb[0].mxu0
      %1021 = vmatprep.mubr.bf16.mxu0 0
      %1022 = vmatmul.mubr.bf16.gmra.mrb[0].mxu0 %v614
      %v1023 = vpop.f32.mrb[0].mxu0
      %v1024 = vadd.f32 %v879, %v1023
      %v1025 = vpop.f32.mrb[0].mxu0
      %v1026 = vpop.f32.mrb[0].mxu0
      %v1027 = vadd.f32 %v882, %v1026
      %v1028 = vpop.f32.mrb[0].mxu0
      %1029 = vmatprep.mubr.bf16.mxu0 0
      %1030 = vmatmul.mubr.bf16.gmra.mrb[0].mxu0 %v631
      %v1031 = vpop.f32.mrb[0].mxu0
      %v1032 = vadd.f32 %v887, %v1031
      %v1033 = vpop.f32.mrb[0].mxu0
      %v1034 = vpop.f32.mrb[0].mxu0
      %v1035 = vadd.f32 %v890, %v1034
      %v1036 = vpop.f32.mrb[0].mxu0
      %1037 = vmatprep.mubr.bf16.mxu0 0
      %1038 = vmatmul.mubr.bf16.gmra.mrb[0].mxu0 %v648
      %v1039 = vpop.f32.mrb[0].mxu0
      %v1040 = vadd.f32 %v895, %v1039
      %v1041 = vpop.f32.mrb[0].mxu0
      %v1042 = vpop.f32.mrb[0].mxu0
      %v1043 = vadd.f32 %v898, %v1042
      %v1044 = vpop.f32.mrb[0].mxu0
      %1045 = vmatprep.mubr.bf16.mxu0 0
      %1046 = vmatmul.mubr.bf16.gmra.mrb[0].mxu0 %v665
      %v1047 = vpop.f32.mrb[0].mxu0
      %v1048 = vadd.f32 %v903, %v1047
      %v1049 = vpop.f32.mrb[0].mxu0
      %v1050 = vpop.f32.mrb[0].mxu0
      %v1051 = vadd.f32 %v906, %v1050
      %v1052 = vpop.f32.mrb[0].mxu0
      %1053 = vdwg.mxu0
      %v1054 = vld [vmem:[#allocation2 + $0x8] sm:$0x1f]
      %v1055 = vld [vmem:[#allocation2 + $0x18] sm:$0x1f]
      %v1056 = vld [vmem:[#allocation2 + $0x28] sm:$0x1f]
      %v1057 = vld [vmem:[#allocation2 + $0x38] sm:$0x1f]
      %v1058 = vld [vmem:[#allocation2 + $0x48] sm:$0x1f]
      %v1059 = vld [vmem:[#allocation2 + $0x58] sm:$0x1f]
      %v1060 = vld [vmem:[#allocation2 + $0x68] sm:$0x1f]
      %v1061 = vld [vmem:[#allocation2 + $0x78] sm:$0x1f]
      %vm1062 = vsmask.f32 3328
      %v1064 = vshrl.u32 %v690, 16
      %v1066 = vrot.slane %v1064, 4
      %v1067 = vshll.u32 %v690, 16
      %v1069 = vrot.slane %v1067, 5
      %v1070 = vor.u32 %v1066, %v1069
      %v1072 = vshrl.u32 %v1054, 16
      %v1074 = vrot.slane %v1072, 4
      %v1075 = vshll.u32 %v1054, 16
      %v1077 = vrot.slane %v1075, 5
      %v1078 = vor.u32 %v1074, %v1077
      %v1079 = vsel %vm1062, %v1070, %v1078
      %v1081 = vshrl.u32 %v691, 16
      %v1083 = vrot.slane %v1081, 4
      %v1084 = vshll.u32 %v691, 16
      %v1086 = vrot.slane %v1084, 5
      %v1087 = vor.u32 %v1083, %v1086
      %v1089 = vshrl.u32 %v1055, 16
      %v1091 = vrot.slane %v1089, 4
      %v1092 = vshll.u32 %v1055, 16
      %v1094 = vrot.slane %v1092, 5
      %v1095 = vor.u32 %v1091, %v1094
      %v1096 = vsel %vm1062, %v1087, %v1095
      %v1098 = vshrl.u32 %v692, 16
      %v1100 = vrot.slane %v1098, 4
      %v1101 = vshll.u32 %v692, 16
      %v1103 = vrot.slane %v1101, 5
      %v1104 = vor.u32 %v1100, %v1103
      %v1106 = vshrl.u32 %v1056, 16
      %v1108 = vrot.slane %v1106, 4
      %v1109 = vshll.u32 %v1056, 16
      %v1111 = vrot.slane %v1109, 5
      %v1112 = vor.u32 %v1108, %v1111
      %v1113 = vsel %vm1062, %v1104, %v1112
      %v1115 = vshrl.u32 %v693, 16
      %v1117 = vrot.slane %v1115, 4
      %v1118 = vshll.u32 %v693, 16
      %v1120 = vrot.slane %v1118, 5
      %v1121 = vor.u32 %v1117, %v1120
      %v1123 = vshrl.u32 %v1057, 16
      %v1125 = vrot.slane %v1123, 4
      %v1126 = vshll.u32 %v1057, 16
      %v1128 = vrot.slane %v1126, 5
      %v1129 = vor.u32 %v1125, %v1128
      %v1130 = vsel %vm1062, %v1121, %v1129
      %v1132 = vshrl.u32 %v694, 16
      %v1134 = vrot.slane %v1132, 4
      %v1135 = vshll.u32 %v694, 16
      %v1137 = vrot.slane %v1135, 5
      %v1138 = vor.u32 %v1134, %v1137
      %v1140 = vshrl.u32 %v1058, 16
      %v1142 = vrot.slane %v1140, 4
      %v1143 = vshll.u32 %v1058, 16
      %v1145 = vrot.slane %v1143, 5
      %v1146 = vor.u32 %v1142, %v1145
      %v1147 = vsel %vm1062, %v1138, %v1146
      %v1149 = vshrl.u32 %v695, 16
      %v1151 = vrot.slane %v1149, 4
      %v1152 = vshll.u32 %v695, 16
      %v1154 = vrot.slane %v1152, 5
      %v1155 = vor.u32 %v1151, %v1154
      %v1157 = vshrl.u32 %v1059, 16
      %v1159 = vrot.slane %v1157, 4
      %v1160 = vshll.u32 %v1059, 16
      %v1162 = vrot.slane %v1160, 5
      %v1163 = vor.u32 %v1159, %v1162
      %v1164 = vsel %vm1062, %v1155, %v1163
      %v1166 = vshrl.u32 %v696, 16
      %v1168 = vrot.slane %v1166, 4
      %v1169 = vshll.u32 %v696, 16
      %v1171 = vrot.slane %v1169, 5
      %v1172 = vor.u32 %v1168, %v1171
      %v1174 = vshrl.u32 %v1060, 16
      %v1176 = vrot.slane %v1174, 4
      %v1177 = vshll.u32 %v1060, 16
      %v1179 = vrot.slane %v1177, 5
      %v1180 = vor.u32 %v1176, %v1179
      %v1181 = vsel %vm1062, %v1172, %v1180
      %v1183 = vshrl.u32 %v697, 16
      %v1185 = vrot.slane %v1183, 4
      %v1186 = vshll.u32 %v697, 16
      %v1188 = vrot.slane %v1186, 5
      %v1189 = vor.u32 %v1185, %v1188
      %v1191 = vshrl.u32 %v1061, 16
      %v1193 = vrot.slane %v1191, 4
      %v1194 = vshll.u32 %v1061, 16
      %v1196 = vrot.slane %v1194, 5
      %v1197 = vor.u32 %v1193, %v1196
      %v1198 = vsel %vm1062, %v1189, %v1197
      %s1207 = scalar_lea.vmem %s3, 128
      %v1208 = vld [vmem:[%s1207] sm:$0xf]
      %v1209 = vld [vmem:[%s1207 + $0x4] sm:$0xf]
      %v1210 = vld [vmem:[%s1207 + $0x8] sm:$0xf]
      %v1211 = vld [vmem:[%s1207 + $0xc] sm:$0xf]
      %v1212 = vld [vmem:[%s1207 + $0x10] sm:$0xf]
      %v1213 = vld [vmem:[%s1207 + $0x14] sm:$0xf]
      %v1214 = vld [vmem:[%s1207 + $0x18] sm:$0xf]
      %v1215 = vld [vmem:[%s1207 + $0x1c] sm:$0xf]
      %v1216 = vld [vmem:[%s1207 + $0x20] sm:$0xf]
      %v1217 = vld [vmem:[%s1207 + $0x24] sm:$0xf]
      %v1218 = vld [vmem:[%s1207 + $0x28] sm:$0xf]
      %v1219 = vld [vmem:[%s1207 + $0x2c] sm:$0xf]
      %v1220 = vld [vmem:[%s1207 + $0x30] sm:$0xf]
      %v1221 = vld [vmem:[%s1207 + $0x34] sm:$0xf]
      %v1222 = vld [vmem:[%s1207 + $0x38] sm:$0xf]
      %v1223 = vld [vmem:[%s1207 + $0x3c] sm:$0xf]
      %v1240 = vunpack.c.l.b16 %v1208
      %v1241 = vunpack.c.l.b16 %v1209
      %v1242 = vunpack.c.l.b16 %v1210
      %v1243 = vunpack.c.l.b16 %v1211
      %v1244 = vunpack.c.l.b16 %v1212
      %v1245 = vunpack.c.l.b16 %v1213
      %v1246 = vunpack.c.l.b16 %v1214
      %v1247 = vunpack.c.l.b16 %v1215
      %v1248 = vunpack.c.l.b16 %v1216
      %v1249 = vunpack.c.l.b16 %v1217
      %v1250 = vunpack.c.l.b16 %v1218
      %v1251 = vunpack.c.l.b16 %v1219
      %v1252 = vunpack.c.l.b16 %v1220
      %v1253 = vunpack.c.l.b16 %v1221
      %v1254 = vunpack.c.l.b16 %v1222
      %v1255 = vunpack.c.l.b16 %v1223
      %v1256 = vpack.c.b16 %v1241, %v1240
      %v1257 = vpack.c.b16 %v1243, %v1242
      %v1258 = vpack.c.b16 %v1245, %v1244
      %v1259 = vpack.c.b16 %v1247, %v1246
      %v1260 = vpack.c.b16 %v1249, %v1248
      %v1261 = vpack.c.b16 %v1251, %v1250
      %v1262 = vpack.c.b16 %v1253, %v1252
      %v1263 = vpack.c.b16 %v1255, %v1254
      %1272 = vmatprep.subr.bf16.mxu0 0
      %1273 = vmatpush1.bf16.msra.mxu0 %v1256
      %1274 = vmatprep.subr.bf16.mxu0 0
      %1275 = vmatpush1.bf16.msra.mxu0 %v1257
      %1276 = vmatprep.subr.bf16.mxu0 0
      %1277 = vmatpush1.bf16.msra.mxu0 %v1258
      %1278 = vmatprep.subr.bf16.mxu0 0
      %1279 = vmatpush1.bf16.msra.mxu0 %v1259
      %1280 = vmatprep.subr.bf16.mxu0 0
      %1281 = vmatpush1.bf16.msra.mxu0 %v1260
      %1282 = vmatprep.subr.bf16.mxu0 0
      %1283 = vmatpush1.bf16.msra.mxu0 %v1261
      %1284 = vmatprep.subr.bf16.mxu0 0
      %1285 = vmatpush1.bf16.msra.mxu0 %v1262
      %1286 = vmatprep.subr.bf16.mxu0 0
      %1287 = vmatpush1.bf16.msra.mxu0 %v1263
      %1288 = vmatprep.subr.bf16.mxu0 0
      %1289 = vmatpush1.bf16.msra.mxu0 0
      %1290 = vmatprep.subr.bf16.mxu0 0
      %1291 = vmatpush1.bf16.msra.mxu0 0
      %1292 = vmatprep.subr.bf16.mxu0 0
      %1293 = vmatpush1.bf16.msra.mxu0 0
      %1294 = vmatprep.subr.bf16.mxu0 0
      %1295 = vmatpush1.bf16.msra.mxu0 0
      %1296 = vmatprep.subr.bf16.mxu0 0
      %1297 = vmatpush1.bf16.msra.mxu0 0
      %1298 = vmatprep.subr.bf16.mxu0 0
      %1299 = vmatpush1.bf16.msra.mxu0 0
      %1300 = vmatprep.subr.bf16.mxu0 0
      %1301 = vmatpush1.bf16.msra.mxu0 0
      %1302 = vmatprep.subr.bf16.mxu0 0
      %1303 = vmatpush1.bf16.msra.mxu0 0
      %1304 = vmatprep.mubr.bf16.mxu0 0
      %1305 = vmatmul.mubr.bf16.gmra.mrb[0].mxu0 %v1079
      %v1306 = vpop.f32.mrb[0].mxu0
      %v1307 = vadd.f32 0.0, %v1306
      %v1308 = vpop.f32.mrb[0].mxu0
      %v1309 = vpop.f32.mrb[0].mxu0
      %v1310 = vadd.f32 0.0, %v1309
      %v1311 = vpop.f32.mrb[0].mxu0
      %1312 = vmatprep.mubr.bf16.mxu0 0
      %1313 = vmatmul.mubr.bf16.gmra.mrb[0].mxu0 %v1096
      %v1314 = vpop.f32.mrb[0].mxu0
      %v1315 = vadd.f32 0.0, %v1314
      %v1316 = vpop.f32.mrb[0].mxu0
      %v1317 = vpop.f32.mrb[0].mxu0
      %v1318 = vadd.f32 0.0, %v1317
      %v1319 = vpop.f32.mrb[0].mxu0
      %1320 = vmatprep.mubr.bf16.mxu0 0
      %1321 = vmatmul.mubr.bf16.gmra.mrb[0].mxu0 %v1113
      %v1322 = vpop.f32.mrb[0].mxu0
      %v1323 = vadd.f32 0.0, %v1322
      %v1324 = vpop.f32.mrb[0].mxu0
      %v1325 = vpop.f32.mrb[0].mxu0
      %v1326 = vadd.f32 0.0, %v1325
      %v1327 = vpop.f32.mrb[0].mxu0
      %1328 = vmatprep.mubr.bf16.mxu0 0
      %1329 = vmatmul.mubr.bf16.gmra.mrb[0].mxu0 %v1130
      %v1330 = vpop.f32.mrb[0].mxu0
      %v1331 = vadd.f32 0.0, %v1330
      %v1332 = vpop.f32.mrb[0].mxu0
      %v1333 = vpop.f32.mrb[0].mxu0
      %v1334 = vadd.f32 0.0, %v1333
      %v1335 = vpop.f32.mrb[0].mxu0
      %1336 = vmatprep.mubr.bf16.mxu0 0
      %1337 = vmatmul.mubr.bf16.gmra.mrb[0].mxu0 %v1147
      %v1338 = vpop.f32.mrb[0].mxu0
      %v1339 = vadd.f32 0.0, %v1338
      %v1340 = vpop.f32.mrb[0].mxu0
      %v1341 = vpop.f32.mrb[0].mxu0
      %v1342 = vadd.f32 0.0, %v1341
      %v1343 = vpop.f32.mrb[0].mxu0
      %1344 = vmatprep.mubr.bf16.mxu0 0
      %1345 = vmatmul.mubr.bf16.gmra.mrb[0].mxu0 %v1164
      %v1346 = vpop.f32.mrb[0].mxu0
      %v1347 = vadd.f32 0.0, %v1346
      %v1348 = vpop.f32.mrb[0].mxu0
      %v1349 = vpop.f32.mrb[0].mxu0
      %v1350 = vadd.f32 0.0, %v1349
      %v1351 = vpop.f32.mrb[0].mxu0
      %1352 = vmatprep.mubr.bf16.mxu0 0
      %1353 = vmatmul.mubr.bf16.gmra.mrb[0].mxu0 %v1181
      %v1354 = vpop.f32.mrb[0].mxu0
      %v1355 = vadd.f32 0.0, %v1354
      %v1356 = vpop.f32.mrb[0].mxu0
      %v1357 = vpop.f32.mrb[0].mxu0
      %v1358 = vadd.f32 0.0, %v1357
      %v1359 = vpop.f32.mrb[0].mxu0
      %1360 = vmatprep.mubr.bf16.mxu0 0
      %1361 = vmatmul.mubr.bf16.gmra.mrb[0].mxu0 %v1198
      %v1362 = vpop.f32.mrb[0].mxu0
      %v1363 = vadd.f32 0.0, %v1362
      %v1364 = vpop.f32.mrb[0].mxu0
      %v1365 = vpop.f32.mrb[0].mxu0
      %v1366 = vadd.f32 0.0, %v1365
      %v1367 = vpop.f32.mrb[0].mxu0
      %1368 = vdwg.mxu0
      %v1369 = vadd.f32 %v992, %v1307
      %v1370 = vadd.f32 %v995, %v1310
      %v1371 = vadd.f32 %v1000, %v1315
      %v1372 = vadd.f32 %v1003, %v1318
      %v1373 = vadd.f32 %v1008, %v1323
      %v1374 = vadd.f32 %v1011, %v1326
      %v1375 = vadd.f32 %v1016, %v1331
      %v1376 = vadd.f32 %v1019, %v1334
      %v1377 = vadd.f32 %v1024, %v1339
      %v1378 = vadd.f32 %v1027, %v1342
      %v1379 = vadd.f32 %v1032, %v1347
      %v1380 = vadd.f32 %v1035, %v1350
      %v1381 = vadd.f32 %v1040, %v1355
      %v1382 = vadd.f32 %v1043, %v1358
      %v1383 = vadd.f32 %v1048, %v1363
      %v1384 = vadd.f32 %v1051, %v1366
      %v1385 = vld [vmem:[%s400] sm:$0xf8]
      %v1386 = vld [vmem:[%s400 + $0x8] sm:$0xf]
      %v1387 = vld [vmem:[%s400 + $0x10] sm:$0xf8]
      %v1388 = vld [vmem:[%s400 + $0x18] sm:$0xf]
      %v1389 = vld [vmem:[%s400 + $0x20] sm:$0xf8]
      %v1390 = vld [vmem:[%s400 + $0x28] sm:$0xf]
      %v1391 = vld [vmem:[%s400 + $0x30] sm:$0xf8]
      %v1392 = vld [vmem:[%s400 + $0x38] sm:$0xf]
      %v1393 = vld [vmem:[%s400 + $0x40] sm:$0xf8]
      %v1394 = vld [vmem:[%s400 + $0x48] sm:$0xf]
      %v1395 = vld [vmem:[%s400 + $0x50] sm:$0xf8]
      %v1396 = vld [vmem:[%s400 + $0x58] sm:$0xf]
      %v1397 = vld [vmem:[%s400 + $0x60] sm:$0xf8]
      %v1398 = vld [vmem:[%s400 + $0x68] sm:$0xf]
      %v1399 = vld [vmem:[%s400 + $0x70] sm:$0xf8]
      %v1400 = vld [vmem:[%s400 + $0x78] sm:$0xf]
      %v1402 = vshrl.u32 %v1385, 16
      %v1404 = vrot.slane %v1402, 3
      %v1405 = vshll.u32 %v1385, 16
      %v1407 = vrot.slane %v1405, 4
      %v1408 = vor.u32 %v1404, %v1407
      %v1410 = vshrl.u32 %v1386, 16
      %v1412 = vrot.slane %v1410, 3
      %v1413 = vshll.u32 %v1386, 16
      %v1415 = vrot.slane %v1413, 4
      %v1416 = vor.u32 %v1412, %v1415
      %v1417 = vsel %vm529, %v1408, %v1416
      %v1419 = vshrl.u32 %v1387, 16
      %v1421 = vrot.slane %v1419, 3
      %v1422 = vshll.u32 %v1387, 16
      %v1424 = vrot.slane %v1422, 4
      %v1425 = vor.u32 %v1421, %v1424
      %v1427 = vshrl.u32 %v1388, 16
      %v1429 = vrot.slane %v1427, 3
      %v1430 = vshll.u32 %v1388, 16
      %v1432 = vrot.slane %v1430, 4
      %v1433 = vor.u32 %v1429, %v1432
      %v1434 = vsel %vm529, %v1425, %v1433
      %v1436 = vshrl.u32 %v1389, 16
      %v1438 = vrot.slane %v1436, 3
      %v1439 = vshll.u32 %v1389, 16
      %v1441 = vrot.slane %v1439, 4
      %v1442 = vor.u32 %v1438, %v1441
      %v1444 = vshrl.u32 %v1390, 16
      %v1446 = vrot.slane %v1444, 3
      %v1447 = vshll.u32 %v1390, 16
      %v1449 = vrot.slane %v1447, 4
      %v1450 = vor.u32 %v1446, %v1449
      %v1451 = vsel %vm529, %v1442, %v1450
      %v1453 = vshrl.u32 %v1391, 16
      %v1455 = vrot.slane %v1453, 3
      %v1456 = vshll.u32 %v1391, 16
      %v1458 = vrot.slane %v1456, 4
      %v1459 = vor.u32 %v1455, %v1458
      %v1461 = vshrl.u32 %v1392, 16
      %v1463 = vrot.slane %v1461, 3
      %v1464 = vshll.u32 %v1392, 16
      %v1466 = vrot.slane %v1464, 4
      %v1467 = vor.u32 %v1463, %v1466
      %v1468 = vsel %vm529, %v1459, %v1467
      %v1470 = vshrl.u32 %v1393, 16
      %v1472 = vrot.slane %v1470, 3
      %v1473 = vshll.u32 %v1393, 16
      %v1475 = vrot.slane %v1473, 4
      %v1476 = vor.u32 %v1472, %v1475
      %v1478 = vshrl.u32 %v1394, 16
      %v1480 = vrot.slane %v1478, 3
      %v1481 = vshll.u32 %v1394, 16
      %v1483 = vrot.slane %v1481, 4
      %v1484 = vor.u32 %v1480, %v1483
      %v1485 = vsel %vm529, %v1476, %v1484
      %v1487 = vshrl.u32 %v1395, 16
      %v1489 = vrot.slane %v1487, 3
      %v1490 = vshll.u32 %v1395, 16
      %v1492 = vrot.slane %v1490, 4
      %v1493 = vor.u32 %v1489, %v1492
      %v1495 = vshrl.u32 %v1396, 16
      %v1497 = vrot.slane %v1495, 3
      %v1498 = vshll.u32 %v1396, 16
      %v1500 = vrot.slane %v1498, 4
      %v1501 = vor.u32 %v1497, %v1500
      %v1502 = vsel %vm529, %v1493, %v1501
      %v1504 = vshrl.u32 %v1397, 16
      %v1506 = vrot.slane %v1504, 3
      %v1507 = vshll.u32 %v1397, 16
      %v1509 = vrot.slane %v1507, 4
      %v1510 = vor.u32 %v1506, %v1509
      %v1512 = vshrl.u32 %v1398, 16
      %v1514 = vrot.slane %v1512, 3
      %v1515 = vshll.u32 %v1398, 16
      %v1517 = vrot.slane %v1515, 4
      %v1518 = vor.u32 %v1514, %v1517
      %v1519 = vsel %vm529, %v1510, %v1518
      %v1521 = vshrl.u32 %v1399, 16
      %v1523 = vrot.slane %v1521, 3
      %v1524 = vshll.u32 %v1399, 16
      %v1526 = vrot.slane %v1524, 4
      %v1527 = vor.u32 %v1523, %v1526
      %v1529 = vshrl.u32 %v1400, 16
      %v1531 = vrot.slane %v1529, 3
      %v1532 = vshll.u32 %v1400, 16
      %v1534 = vrot.slane %v1532, 4
      %v1535 = vor.u32 %v1531, %v1534
      %v1536 = vsel %vm529, %v1527, %v1535
      %s1545 = scalar_lea.vmem %s3, 192
      %v1546 = vld [vmem:[%s1545] sm:$0xf]
      %v1547 = vld [vmem:[%s1545 + $0x4] sm:$0xf]
      %v1548 = vld [vmem:[%s1545 + $0x8] sm:$0xf]
      %v1549 = vld [vmem:[%s1545 + $0xc] sm:$0xf]
      %v1550 = vld [vmem:[%s1545 + $0x10] sm:$0xf]
      %v1551 = vld [vmem:[%s1545 + $0x14] sm:$0xf]
      %v1552 = vld [vmem:[%s1545 + $0x18] sm:$0xf]
      %v1553 = vld [vmem:[%s1545 + $0x1c] sm:$0xf]
      %v1554 = vld [vmem:[%s1545 + $0x20] sm:$0xf]
      %v1555 = vld [vmem:[%s1545 + $0x24] sm:$0xf]
      %v1556 = vld [vmem:[%s1545 + $0x28] sm:$0xf]
      %v1557 = vld [vmem:[%s1545 + $0x2c] sm:$0xf]
      %v1558 = vld [vmem:[%s1545 + $0x30] sm:$0xf]
      %v1559 = vld [vmem:[%s1545 + $0x34] sm:$0xf]
      %v1560 = vld [vmem:[%s1545 + $0x38] sm:$0xf]
      %v1561 = vld [vmem:[%s1545 + $0x3c] sm:$0xf]
      %v1578 = vunpack.c.l.b16 %v1546
      %v1579 = vunpack.c.l.b16 %v1547
      %v1580 = vunpack.c.l.b16 %v1548
      %v1581 = vunpack.c.l.b16 %v1549
      %v1582 = vunpack.c.l.b16 %v1550
      %v1583 = vunpack.c.l.b16 %v1551
      %v1584 = vunpack.c.l.b16 %v1552
      %v1585 = vunpack.c.l.b16 %v1553
      %v1586 = vunpack.c.l.b16 %v1554
      %v1587 = vunpack.c.l.b16 %v1555
      %v1588 = vunpack.c.l.b16 %v1556
      %v1589 = vunpack.c.l.b16 %v1557
      %v1590 = vunpack.c.l.b16 %v1558
      %v1591 = vunpack.c.l.b16 %v1559
      %v1592 = vunpack.c.l.b16 %v1560
      %v1593 = vunpack.c.l.b16 %v1561
      %v1594 = vpack.c.b16 %v1579, %v1578
      %v1595 = vpack.c.b16 %v1581, %v1580
      %v1596 = vpack.c.b16 %v1583, %v1582
      %v1597 = vpack.c.b16 %v1585, %v1584
      %v1598 = vpack.c.b16 %v1587, %v1586
      %v1599 = vpack.c.b16 %v1589, %v1588
      %v1600 = vpack.c.b16 %v1591, %v1590
      %v1601 = vpack.c.b16 %v1593, %v1592
      %1610 = vmatprep.subr.bf16.mxu0 0
      %1611 = vmatpush1.bf16.msra.mxu0 %v1594
      %1612 = vmatprep.subr.bf16.mxu0 0
      %1613 = vmatpush1.bf16.msra.mxu0 %v1595
      %1614 = vmatprep.subr.bf16.mxu0 0
      %1615 = vmatpush1.bf16.msra.mxu0 %v1596
      %1616 = vmatprep.subr.bf16.mxu0 0
      %1617 = vmatpush1.bf16.msra.mxu0 %v1597
      %1618 = vmatprep.subr.bf16.mxu0 0
      %1619 = vmatpush1.bf16.msra.mxu0 %v1598
      %1620 = vmatprep.subr.bf16.mxu0 0
      %1621 = vmatpush1.bf16.msra.mxu0 %v1599
      %1622 = vmatprep.subr.bf16.mxu0 0
      %1623 = vmatpush1.bf16.msra.mxu0 %v1600
      %1624 = vmatprep.subr.bf16.mxu0 0
      %1625 = vmatpush1.bf16.msra.mxu0 %v1601
      %1626 = vmatprep.subr.bf16.mxu0 0
      %1627 = vmatpush1.bf16.msra.mxu0 0
      %1628 = vmatprep.subr.bf16.mxu0 0
      %1629 = vmatpush1.bf16.msra.mxu0 0
      %1630 = vmatprep.subr.bf16.mxu0 0
      %1631 = vmatpush1.bf16.msra.mxu0 0
      %1632 = vmatprep.subr.bf16.mxu0 0
      %1633 = vmatpush1.bf16.msra.mxu0 0
      %1634 = vmatprep.subr.bf16.mxu0 0
      %1635 = vmatpush1.bf16.msra.mxu0 0
      %1636 = vmatprep.subr.bf16.mxu0 0
      %1637 = vmatpush1.bf16.msra.mxu0 0
      %1638 = vmatprep.subr.bf16.mxu0 0
      %1639 = vmatpush1.bf16.msra.mxu0 0
      %1640 = vmatprep.subr.bf16.mxu0 0
      %1641 = vmatpush1.bf16.msra.mxu0 0
      %1642 = vmatprep.mubr.bf16.mxu0 0
      %1643 = vmatmul.mubr.bf16.gmra.mrb[0].mxu0 %v1417
      %v1644 = vpop.f32.mrb[0].mxu0
      %v1645 = vadd.f32 0.0, %v1644
      %v1646 = vpop.f32.mrb[0].mxu0
      %v1647 = vpop.f32.mrb[0].mxu0
      %v1648 = vadd.f32 0.0, %v1647
      %v1649 = vpop.f32.mrb[0].mxu0
      %1650 = vmatprep.mubr.bf16.mxu0 0
      %1651 = vmatmul.mubr.bf16.gmra.mrb[0].mxu0 %v1434
      %v1652 = vpop.f32.mrb[0].mxu0
      %v1653 = vadd.f32 0.0, %v1652
      %v1654 = vpop.f32.mrb[0].mxu0
      %v1655 = vpop.f32.mrb[0].mxu0
      %v1656 = vadd.f32 0.0, %v1655
      %v1657 = vpop.f32.mrb[0].mxu0
      %1658 = vmatprep.mubr.bf16.mxu0 0
      %1659 = vmatmul.mubr.bf16.gmra.mrb[0].mxu0 %v1451
      %v1660 = vpop.f32.mrb[0].mxu0
      %v1661 = vadd.f32 0.0, %v1660
      %v1662 = vpop.f32.mrb[0].mxu0
      %v1663 = vpop.f32.mrb[0].mxu0
      %v1664 = vadd.f32 0.0, %v1663
      %v1665 = vpop.f32.mrb[0].mxu0
      %1666 = vmatprep.mubr.bf16.mxu0 0
      %1667 = vmatmul.mubr.bf16.gmra.mrb[0].mxu0 %v1468
      %v1668 = vpop.f32.mrb[0].mxu0
      %v1669 = vadd.f32 0.0, %v1668
      %v1670 = vpop.f32.mrb[0].mxu0
      %v1671 = vpop.f32.mrb[0].mxu0
      %v1672 = vadd.f32 0.0, %v1671
      %v1673 = vpop.f32.mrb[0].mxu0
      %1674 = vmatprep.mubr.bf16.mxu0 0
      %1675 = vmatmul.mubr.bf16.gmra.mrb[0].mxu0 %v1485
      %v1676 = vpop.f32.mrb[0].mxu0
      %v1677 = vadd.f32 0.0, %v1676
      %v1678 = vpop.f32.mrb[0].mxu0
      %v1679 = vpop.f32.mrb[0].mxu0
      %v1680 = vadd.f32 0.0, %v1679
      %v1681 = vpop.f32.mrb[0].mxu0
      %1682 = vmatprep.mubr.bf16.mxu0 0
      %1683 = vmatmul.mubr.bf16.gmra.mrb[0].mxu0 %v1502
      %v1684 = vpop.f32.mrb[0].mxu0
      %v1685 = vadd.f32 0.0, %v1684
      %v1686 = vpop.f32.mrb[0].mxu0
      %v1687 = vpop.f32.mrb[0].mxu0
      %v1688 = vadd.f32 0.0, %v1687
      %v1689 = vpop.f32.mrb[0].mxu0
      %1690 = vmatprep.mubr.bf16.mxu0 0
      %1691 = vmatmul.mubr.bf16.gmra.mrb[0].mxu0 %v1519
      %v1692 = vpop.f32.mrb[0].mxu0
      %v1693 = vadd.f32 0.0, %v1692
      %v1694 = vpop.f32.mrb[0].mxu0
      %v1695 = vpop.f32.mrb[0].mxu0
      %v1696 = vadd.f32 0.0, %v1695
      %v1697 = vpop.f32.mrb[0].mxu0
      %1698 = vmatprep.mubr.bf16.mxu0 0
      %1699 = vmatmul.mubr.bf16.gmra.mrb[0].mxu0 %v1536
      %v1700 = vpop.f32.mrb[0].mxu0
      %v1701 = vadd.f32 0.0, %v1700
      %v1702 = vpop.f32.mrb[0].mxu0
      %v1703 = vpop.f32.mrb[0].mxu0
      %v1704 = vadd.f32 0.0, %v1703
      %v1705 = vpop.f32.mrb[0].mxu0
      %1706 = vdwg.mxu0
      %v1707 = vadd.f32 %v1369, %v1645
      %v1708 = vadd.f32 %v1370, %v1648
      %v1709 = vadd.f32 %v1371, %v1653
      %v1710 = vadd.f32 %v1372, %v1656
      %v1711 = vadd.f32 %v1373, %v1661
      %v1712 = vadd.f32 %v1374, %v1664
      %v1713 = vadd.f32 %v1375, %v1669
      %v1714 = vadd.f32 %v1376, %v1672
      %v1715 = vadd.f32 %v1377, %v1677
      %v1716 = vadd.f32 %v1378, %v1680
      %v1717 = vadd.f32 %v1379, %v1685
      %v1718 = vadd.f32 %v1380, %v1688
      %v1719 = vadd.f32 %v1381, %v1693
      %v1720 = vadd.f32 %v1382, %v1696
      %v1721 = vadd.f32 %v1383, %v1701
      %v1722 = vadd.f32 %v1384, %v1704
      %v1723 = vld [vmem:[%s400] sm:$0xf0]
      %v1724 = vld [vmem:[%s400 + $0x10] sm:$0xf0]
      %v1725 = vld [vmem:[%s400 + $0x20] sm:$0xf0]
      %v1726 = vld [vmem:[%s400 + $0x30] sm:$0xf0]
      %v1727 = vld [vmem:[%s400 + $0x40] sm:$0xf0]
      %v1728 = vld [vmem:[%s400 + $0x50] sm:$0xf0]
      %v1729 = vld [vmem:[%s400 + $0x60] sm:$0xf0]
      %v1730 = vld [vmem:[%s400 + $0x70] sm:$0xf0]
      %v1747 = vrot.slane %v1723, 4
      %v1748 = vrot.slane %v1386, 4
      %v1749 = vsel %vm714, %v1747, %v1748
      %v1750 = vrot.slane %v1724, 4
      %v1751 = vrot.slane %v1388, 4
      %v1752 = vsel %vm714, %v1750, %v1751
      %v1753 = vrot.slane %v1725, 4
      %v1754 = vrot.slane %v1390, 4
      %v1755 = vsel %vm714, %v1753, %v1754
      %v1756 = vrot.slane %v1726, 4
      %v1757 = vrot.slane %v1392, 4
      %v1758 = vsel %vm714, %v1756, %v1757
      %v1759 = vrot.slane %v1727, 4
      %v1760 = vrot.slane %v1394, 4
      %v1761 = vsel %vm714, %v1759, %v1760
      %v1762 = vrot.slane %v1728, 4
      %v1763 = vrot.slane %v1396, 4
      %v1764 = vsel %vm714, %v1762, %v1763
      %v1765 = vrot.slane %v1729, 4
      %v1766 = vrot.slane %v1398, 4
      %v1767 = vsel %vm714, %v1765, %v1766
      %v1768 = vrot.slane %v1730, 4
      %v1769 = vrot.slane %v1400, 4
      %v1770 = vsel %vm714, %v1768, %v1769
      %s1779 = scalar_lea.vmem %s3, 256
      %v1780 = vld [vmem:[%s1779] sm:$0xf]
      %v1781 = vld [vmem:[%s1779 + $0x4] sm:$0xf]
      %v1782 = vld [vmem:[%s1779 + $0x8] sm:$0xf]
      %v1783 = vld [vmem:[%s1779 + $0xc] sm:$0xf]
      %v1784 = vld [vmem:[%s1779 + $0x10] sm:$0xf]
      %v1785 = vld [vmem:[%s1779 + $0x14] sm:$0xf]
      %v1786 = vld [vmem:[%s1779 + $0x18] sm:$0xf]
      %v1787 = vld [vmem:[%s1779 + $0x1c] sm:$0xf]
      %v1788 = vld [vmem:[%s1779 + $0x20] sm:$0xf]
      %v1789 = vld [vmem:[%s1779 + $0x24] sm:$0xf]
      %v1790 = vld [vmem:[%s1779 + $0x28] sm:$0xf]
      %v1791 = vld [vmem:[%s1779 + $0x2c] sm:$0xf]
      %v1792 = vld [vmem:[%s1779 + $0x30] sm:$0xf]
      %v1793 = vld [vmem:[%s1779 + $0x34] sm:$0xf]
      %v1794 = vld [vmem:[%s1779 + $0x38] sm:$0xf]
      %v1795 = vld [vmem:[%s1779 + $0x3c] sm:$0xf]
      %v1812 = vunpack.c.l.b16 %v1780
      %v1813 = vunpack.c.l.b16 %v1781
      %v1814 = vunpack.c.l.b16 %v1782
      %v1815 = vunpack.c.l.b16 %v1783
      %v1816 = vunpack.c.l.b16 %v1784
      %v1817 = vunpack.c.l.b16 %v1785
      %v1818 = vunpack.c.l.b16 %v1786
      %v1819 = vunpack.c.l.b16 %v1787
      %v1820 = vunpack.c.l.b16 %v1788
      %v1821 = vunpack.c.l.b16 %v1789
      %v1822 = vunpack.c.l.b16 %v1790
      %v1823 = vunpack.c.l.b16 %v1791
      %v1824 = vunpack.c.l.b16 %v1792
      %v1825 = vunpack.c.l.b16 %v1793
      %v1826 = vunpack.c.l.b16 %v1794
      %v1827 = vunpack.c.l.b16 %v1795
      %v1828 = vpack.c.b16 %v1813, %v1812
      %v1829 = vpack.c.b16 %v1815, %v1814
      %v1830 = vpack.c.b16 %v1817, %v1816
      %v1831 = vpack.c.b16 %v1819, %v1818
      %v1832 = vpack.c.b16 %v1821, %v1820
      %v1833 = vpack.c.b16 %v1823, %v1822
      %v1834 = vpack.c.b16 %v1825, %v1824
      %v1835 = vpack.c.b16 %v1827, %v1826
      %1844 = vmatprep.subr.bf16.mxu0 0
      %1845 = vmatpush1.bf16.msra.mxu0 %v1828
      %1846 = vmatprep.subr.bf16.mxu0 0
      %1847 = vmatpush1.bf16.msra.mxu0 %v1829
      %1848 = vmatprep.subr.bf16.mxu0 0
      %1849 = vmatpush1.bf16.msra.mxu0 %v1830
      %1850 = vmatprep.subr.bf16.mxu0 0
      %1851 = vmatpush1.bf16.msra.mxu0 %v1831
      %1852 = vmatprep.subr.bf16.mxu0 0
      %1853 = vmatpush1.bf16.msra.mxu0 %v1832
      %1854 = vmatprep.subr.bf16.mxu0 0
      %1855 = vmatpush1.bf16.msra.mxu0 %v1833
      %1856 = vmatprep.subr.bf16.mxu0 0
      %1857 = vmatpush1.bf16.msra.mxu0 %v1834
      %1858 = vmatprep.subr.bf16.mxu0 0
      %1859 = vmatpush1.bf16.msra.mxu0 %v1835
      %1860 = vmatprep.subr.bf16.mxu0 0
      %1861 = vmatpush1.bf16.msra.mxu0 0
      %1862 = vmatprep.subr.bf16.mxu0 0
      %1863 = vmatpush1.bf16.msra.mxu0 0
      %1864 = vmatprep.subr.bf16.mxu0 0
      %1865 = vmatpush1.bf16.msra.mxu0 0
      %1866 = vmatprep.subr.bf16.mxu0 0
      %1867 = vmatpush1.bf16.msra.mxu0 0
      %1868 = vmatprep.subr.bf16.mxu0 0
      %1869 = vmatpush1.bf16.msra.mxu0 0
      %1870 = vmatprep.subr.bf16.mxu0 0
      %1871 = vmatpush1.bf16.msra.mxu0 0
      %1872 = vmatprep.subr.bf16.mxu0 0
      %1873 = vmatpush1.bf16.msra.mxu0 0
      %1874 = vmatprep.subr.bf16.mxu0 0
      %1875 = vmatpush1.bf16.msra.mxu0 0
      %1876 = vmatprep.mubr.bf16.mxu0 0
      %1877 = vmatmul.mubr.bf16.gmra.mrb[0].mxu0 %v1749
      %v1878 = vpop.f32.mrb[0].mxu0
      %v1879 = vadd.f32 0.0, %v1878
      %v1880 = vpop.f32.mrb[0].mxu0
      %v1881 = vpop.f32.mrb[0].mxu0
      %v1882 = vadd.f32 0.0, %v1881
      %v1883 = vpop.f32.mrb[0].mxu0
      %1884 = vmatprep.mubr.bf16.mxu0 0
      %1885 = vmatmul.mubr.bf16.gmra.mrb[0].mxu0 %v1752
      %v1886 = vpop.f32.mrb[0].mxu0
      %v1887 = vadd.f32 0.0, %v1886
      %v1888 = vpop.f32.mrb[0].mxu0
      %v1889 = vpop.f32.mrb[0].mxu0
      %v1890 = vadd.f32 0.0, %v1889
      %v1891 = vpop.f32.mrb[0].mxu0
      %1892 = vmatprep.mubr.bf16.mxu0 0
      %1893 = vmatmul.mubr.bf16.gmra.mrb[0].mxu0 %v1755
      %v1894 = vpop.f32.mrb[0].mxu0
      %v1895 = vadd.f32 0.0, %v1894
      %v1896 = vpop.f32.mrb[0].mxu0
      %v1897 = vpop.f32.mrb[0].mxu0
      %v1898 = vadd.f32 0.0, %v1897
      %v1899 = vpop.f32.mrb[0].mxu0
      %1900 = vmatprep.mubr.bf16.mxu0 0
      %1901 = vmatmul.mubr.bf16.gmra.mrb[0].mxu0 %v1758
      %v1902 = vpop.f32.mrb[0].mxu0
      %v1903 = vadd.f32 0.0, %v1902
      %v1904 = vpop.f32.mrb[0].mxu0
      %v1905 = vpop.f32.mrb[0].mxu0
      %v1906 = vadd.f32 0.0, %v1905
      %v1907 = vpop.f32.mrb[0].mxu0
      %1908 = vmatprep.mubr.bf16.mxu0 0
      %1909 = vmatmul.mubr.bf16.gmra.mrb[0].mxu0 %v1761
      %v1910 = vpop.f32.mrb[0].mxu0
      %v1911 = vadd.f32 0.0, %v1910
      %v1912 = vpop.f32.mrb[0].mxu0
      %v1913 = vpop.f32.mrb[0].mxu0
      %v1914 = vadd.f32 0.0, %v1913
      %v1915 = vpop.f32.mrb[0].mxu0
      %1916 = vmatprep.mubr.bf16.mxu0 0
      %1917 = vmatmul.mubr.bf16.gmra.mrb[0].mxu0 %v1764
      %v1918 = vpop.f32.mrb[0].mxu0
      %v1919 = vadd.f32 0.0, %v1918
      %v1920 = vpop.f32.mrb[0].mxu0
      %v1921 = vpop.f32.mrb[0].mxu0
      %v1922 = vadd.f32 0.0, %v1921
      %v1923 = vpop.f32.mrb[0].mxu0
      %1924 = vmatprep.mubr.bf16.mxu0 0
      %1925 = vmatmul.mubr.bf16.gmra.mrb[0].mxu0 %v1767
      %v1926 = vpop.f32.mrb[0].mxu0
      %v1927 = vadd.f32 0.0, %v1926
      %v1928 = vpop.f32.mrb[0].mxu0
      %v1929 = vpop.f32.mrb[0].mxu0
      %v1930 = vadd.f32 0.0, %v1929
      %v1931 = vpop.f32.mrb[0].mxu0
      %1932 = vmatprep.mubr.bf16.mxu0 0
      %1933 = vmatmul.mubr.bf16.gmra.mrb[0].mxu0 %v1770
      %v1934 = vpop.f32.mrb[0].mxu0
      %v1935 = vadd.f32 0.0, %v1934
      %v1936 = vpop.f32.mrb[0].mxu0
      %v1937 = vpop.f32.mrb[0].mxu0
      %v1938 = vadd.f32 0.0, %v1937
      %v1939 = vpop.f32.mrb[0].mxu0
      %1940 = vdwg.mxu0
      %v1941 = vadd.f32 %v1707, %v1879
      %v1942 = vadd.f32 %v1708, %v1882
      %v1943 = vadd.f32 %v1709, %v1887
      %v1944 = vadd.f32 %v1710, %v1890
      %v1945 = vadd.f32 %v1711, %v1895
      %v1946 = vadd.f32 %v1712, %v1898
      %v1947 = vadd.f32 %v1713, %v1903
      %v1948 = vadd.f32 %v1714, %v1906
      %v1949 = vadd.f32 %v1715, %v1911
      %v1950 = vadd.f32 %v1716, %v1914
      %v1951 = vadd.f32 %v1717, %v1919
      %v1952 = vadd.f32 %v1718, %v1922
      %v1953 = vadd.f32 %v1719, %v1927
      %v1954 = vadd.f32 %v1720, %v1930
      %v1955 = vadd.f32 %v1721, %v1935
      %v1956 = vadd.f32 %v1722, %v1938
      %v1957 = vld [vmem:[%s400 + $0x8] sm:$0x1f]
      %v1958 = vld [vmem:[%s400 + $0x18] sm:$0x1f]
      %v1959 = vld [vmem:[%s400 + $0x28] sm:$0x1f]
      %v1960 = vld [vmem:[%s400 + $0x38] sm:$0x1f]
      %v1961 = vld [vmem:[%s400 + $0x48] sm:$0x1f]
      %v1962 = vld [vmem:[%s400 + $0x58] sm:$0x1f]
      %v1963 = vld [vmem:[%s400 + $0x68] sm:$0x1f]
      %v1964 = vld [vmem:[%s400 + $0x78] sm:$0x1f]
      %v1966 = vshrl.u32 %v1723, 16
      %v1968 = vrot.slane %v1966, 4
      %v1969 = vshll.u32 %v1723, 16
      %v1971 = vrot.slane %v1969, 5
      %v1972 = vor.u32 %v1968, %v1971
      %v1974 = vshrl.u32 %v1957, 16
      %v1976 = vrot.slane %v1974, 4
      %v1977 = vshll.u32 %v1957, 16
      %v1979 = vrot.slane %v1977, 5
      %v1980 = vor.u32 %v1976, %v1979
      %v1981 = vsel %vm1062, %v1972, %v1980
      %v1983 = vshrl.u32 %v1724, 16
      %v1985 = vrot.slane %v1983, 4
      %v1986 = vshll.u32 %v1724, 16
      %v1988 = vrot.slane %v1986, 5
      %v1989 = vor.u32 %v1985, %v1988
      %v1991 = vshrl.u32 %v1958, 16
      %v1993 = vrot.slane %v1991, 4
      %v1994 = vshll.u32 %v1958, 16
      %v1996 = vrot.slane %v1994, 5
      %v1997 = vor.u32 %v1993, %v1996
      %v1998 = vsel %vm1062, %v1989, %v1997
      %v2000 = vshrl.u32 %v1725, 16
      %v2002 = vrot.slane %v2000, 4
      %v2003 = vshll.u32 %v1725, 16
      %v2005 = vrot.slane %v2003, 5
      %v2006 = vor.u32 %v2002, %v2005
      %v2008 = vshrl.u32 %v1959, 16
      %v2010 = vrot.slane %v2008, 4
      %v2011 = vshll.u32 %v1959, 16
      %v2013 = vrot.slane %v2011, 5
      %v2014 = vor.u32 %v2010, %v2013
      %v2015 = vsel %vm1062, %v2006, %v2014
      %v2017 = vshrl.u32 %v1726, 16
      %v2019 = vrot.slane %v2017, 4
      %v2020 = vshll.u32 %v1726, 16
      %v2022 = vrot.slane %v2020, 5
      %v2023 = vor.u32 %v2019, %v2022
      %v2025 = vshrl.u32 %v1960, 16
      %v2027 = vrot.slane %v2025, 4
      %v2028 = vshll.u32 %v1960, 16
      %v2030 = vrot.slane %v2028, 5
      %v2031 = vor.u32 %v2027, %v2030
      %v2032 = vsel %vm1062, %v2023, %v2031
      %v2034 = vshrl.u32 %v1727, 16
      %v2036 = vrot.slane %v2034, 4
      %v2037 = vshll.u32 %v1727, 16
      %v2039 = vrot.slane %v2037, 5
      %v2040 = vor.u32 %v2036, %v2039
      %v2042 = vshrl.u32 %v1961, 16
      %v2044 = vrot.slane %v2042, 4
      %v2045 = vshll.u32 %v1961, 16
      %v2047 = vrot.slane %v2045, 5
      %v2048 = vor.u32 %v2044, %v2047
      %v2049 = vsel %vm1062, %v2040, %v2048
      %v2051 = vshrl.u32 %v1728, 16
      %v2053 = vrot.slane %v2051, 4
      %v2054 = vshll.u32 %v1728, 16
      %v2056 = vrot.slane %v2054, 5
      %v2057 = vor.u32 %v2053, %v2056
      %v2059 = vshrl.u32 %v1962, 16
      %v2061 = vrot.slane %v2059, 4
      %v2062 = vshll.u32 %v1962, 16
      %v2064 = vrot.slane %v2062, 5
      %v2065 = vor.u32 %v2061, %v2064
      %v2066 = vsel %vm1062, %v2057, %v2065
      %v2068 = vshrl.u32 %v1729, 16
      %v2070 = vrot.slane %v2068, 4
      %v2071 = vshll.u32 %v1729, 16
      %v2073 = vrot.slane %v2071, 5
      %v2074 = vor.u32 %v2070, %v2073
      %v2076 = vshrl.u32 %v1963, 16
      %v2078 = vrot.slane %v2076, 4
      %v2079 = vshll.u32 %v1963, 16
      %v2081 = vrot.slane %v2079, 5
      %v2082 = vor.u32 %v2078, %v2081
      %v2083 = vsel %vm1062, %v2074, %v2082
      %v2085 = vshrl.u32 %v1730, 16
      %v2087 = vrot.slane %v2085, 4
      %v2088 = vshll.u32 %v1730, 16
      %v2090 = vrot.slane %v2088, 5
      %v2091 = vor.u32 %v2087, %v2090
      %v2093 = vshrl.u32 %v1964, 16
      %v2095 = vrot.slane %v2093, 4
      %v2096 = vshll.u32 %v1964, 16
      %v2098 = vrot.slane %v2096, 5
      %v2099 = vor.u32 %v2095, %v2098
      %v2100 = vsel %vm1062, %v2091, %v2099
      %s2109 = scalar_lea.vmem %s3, 320
      %v2110 = vld [vmem:[%s2109] sm:$0xf]
      %v2111 = vld [vmem:[%s2109 + $0x4] sm:$0xf]
      %v2112 = vld [vmem:[%s2109 + $0x8] sm:$0xf]
      %v2113 = vld [vmem:[%s2109 + $0xc] sm:$0xf]
      %v2114 = vld [vmem:[%s2109 + $0x10] sm:$0xf]
      %v2115 = vld [vmem:[%s2109 + $0x14] sm:$0xf]
      %v2116 = vld [vmem:[%s2109 + $0x18] sm:$0xf]
      %v2117 = vld [vmem:[%s2109 + $0x1c] sm:$0xf]
      %v2118 = vld [vmem:[%s2109 + $0x20] sm:$0xf]
      %v2119 = vld [vmem:[%s2109 + $0x24] sm:$0xf]
      %v2120 = vld [vmem:[%s2109 + $0x28] sm:$0xf]
      %v2121 = vld [vmem:[%s2109 + $0x2c] sm:$0xf]
      %v2122 = vld [vmem:[%s2109 + $0x30] sm:$0xf]
      %v2123 = vld [vmem:[%s2109 + $0x34] sm:$0xf]
      %v2124 = vld [vmem:[%s2109 + $0x38] sm:$0xf]
      %v2125 = vld [vmem:[%s2109 + $0x3c] sm:$0xf]
      %v2142 = vunpack.c.l.b16 %v2110
      %v2143 = vunpack.c.l.b16 %v2111
      %v2144 = vunpack.c.l.b16 %v2112
      %v2145 = vunpack.c.l.b16 %v2113
      %v2146 = vunpack.c.l.b16 %v2114
      %v2147 = vunpack.c.l.b16 %v2115
      %v2148 = vunpack.c.l.b16 %v2116
      %v2149 = vunpack.c.l.b16 %v2117
      %v2150 = vunpack.c.l.b16 %v2118
      %v2151 = vunpack.c.l.b16 %v2119
      %v2152 = vunpack.c.l.b16 %v2120
      %v2153 = vunpack.c.l.b16 %v2121
      %v2154 = vunpack.c.l.b16 %v2122
      %v2155 = vunpack.c.l.b16 %v2123
      %v2156 = vunpack.c.l.b16 %v2124
      %v2157 = vunpack.c.l.b16 %v2125
      %v2158 = vpack.c.b16 %v2143, %v2142
      %v2159 = vpack.c.b16 %v2145, %v2144
      %v2160 = vpack.c.b16 %v2147, %v2146
      %v2161 = vpack.c.b16 %v2149, %v2148
      %v2162 = vpack.c.b16 %v2151, %v2150
      %v2163 = vpack.c.b16 %v2153, %v2152
      %v2164 = vpack.c.b16 %v2155, %v2154
      %v2165 = vpack.c.b16 %v2157, %v2156
      %2174 = vmatprep.subr.bf16.mxu0 0
      %2175 = vmatpush1.bf16.msra.mxu0 %v2158
      %2176 = vmatprep.subr.bf16.mxu0 0
      %2177 = vmatpush1.bf16.msra.mxu0 %v2159
      %2178 = vmatprep.subr.bf16.mxu0 0
      %2179 = vmatpush1.bf16.msra.mxu0 %v2160
      %2180 = vmatprep.subr.bf16.mxu0 0
      %2181 = vmatpush1.bf16.msra.mxu0 %v2161
      %2182 = vmatprep.subr.bf16.mxu0 0
      %2183 = vmatpush1.bf16.msra.mxu0 %v2162
      %2184 = vmatprep.subr.bf16.mxu0 0
      %2185 = vmatpush1.bf16.msra.mxu0 %v2163
      %2186 = vmatprep.subr.bf16.mxu0 0
      %2187 = vmatpush1.bf16.msra.mxu0 %v2164
      %2188 = vmatprep.subr.bf16.mxu0 0
      %2189 = vmatpush1.bf16.msra.mxu0 %v2165
      %2190 = vmatprep.subr.bf16.mxu0 0
      %2191 = vmatpush1.bf16.msra.mxu0 0
      %2192 = vmatprep.subr.bf16.mxu0 0
      %2193 = vmatpush1.bf16.msra.mxu0 0
      %2194 = vmatprep.subr.bf16.mxu0 0
      %2195 = vmatpush1.bf16.msra.mxu0 0
      %2196 = vmatprep.subr.bf16.mxu0 0
      %2197 = vmatpush1.bf16.msra.mxu0 0
      %2198 = vmatprep.subr.bf16.mxu0 0
      %2199 = vmatpush1.bf16.msra.mxu0 0
      %2200 = vmatprep.subr.bf16.mxu0 0
      %2201 = vmatpush1.bf16.msra.mxu0 0
      %2202 = vmatprep.subr.bf16.mxu0 0
      %2203 = vmatpush1.bf16.msra.mxu0 0
      %2204 = vmatprep.subr.bf16.mxu0 0
      %2205 = vmatpush1.bf16.msra.mxu0 0
      %2206 = vmatprep.mubr.bf16.mxu0 0
      %2207 = vmatmul.mubr.bf16.gmra.mrb[0].mxu0 %v1981
      %v2208 = vpop.f32.mrb[0].mxu0
      %v2209 = vadd.f32 0.0, %v2208
      %v2210 = vpop.f32.mrb[0].mxu0
      %v2211 = vpop.f32.mrb[0].mxu0
      %v2212 = vadd.f32 0.0, %v2211
      %v2213 = vpop.f32.mrb[0].mxu0
      %2214 = vmatprep.mubr.bf16.mxu0 0
      %2215 = vmatmul.mubr.bf16.gmra.mrb[0].mxu0 %v1998
      %v2216 = vpop.f32.mrb[0].mxu0
      %v2217 = vadd.f32 0.0, %v2216
      %v2218 = vpop.f32.mrb[0].mxu0
      %v2219 = vpop.f32.mrb[0].mxu0
      %v2220 = vadd.f32 0.0, %v2219
      %v2221 = vpop.f32.mrb[0].mxu0
      %2222 = vmatprep.mubr.bf16.mxu0 0
      %2223 = vmatmul.mubr.bf16.gmra.mrb[0].mxu0 %v2015
      %v2224 = vpop.f32.mrb[0].mxu0
      %v2225 = vadd.f32 0.0, %v2224
      %v2226 = vpop.f32.mrb[0].mxu0
      %v2227 = vpop.f32.mrb[0].mxu0
      %v2228 = vadd.f32 0.0, %v2227
      %v2229 = vpop.f32.mrb[0].mxu0
      %2230 = vmatprep.mubr.bf16.mxu0 0
      %2231 = vmatmul.mubr.bf16.gmra.mrb[0].mxu0 %v2032
      %v2232 = vpop.f32.mrb[0].mxu0
      %v2233 = vadd.f32 0.0, %v2232
      %v2234 = vpop.f32.mrb[0].mxu0
      %v2235 = vpop.f32.mrb[0].mxu0
      %v2236 = vadd.f32 0.0, %v2235
      %v2237 = vpop.f32.mrb[0].mxu0
      %2238 = vmatprep.mubr.bf16.mxu0 0
      %2239 = vmatmul.mubr.bf16.gmra.mrb[0].mxu0 %v2049
      %v2240 = vpop.f32.mrb[0].mxu0
      %v2241 = vadd.f32 0.0, %v2240
      %v2242 = vpop.f32.mrb[0].mxu0
      %v2243 = vpop.f32.mrb[0].mxu0
      %v2244 = vadd.f32 0.0, %v2243
      %v2245 = vpop.f32.mrb[0].mxu0
      %2246 = vmatprep.mubr.bf16.mxu0 0
      %2247 = vmatmul.mubr.bf16.gmra.mrb[0].mxu0 %v2066
      %v2248 = vpop.f32.mrb[0].mxu0
      %v2249 = vadd.f32 0.0, %v2248
      %v2250 = vpop.f32.mrb[0].mxu0
      %v2251 = vpop.f32.mrb[0].mxu0
      %v2252 = vadd.f32 0.0, %v2251
      %v2253 = vpop.f32.mrb[0].mxu0
      %2254 = vmatprep.mubr.bf16.mxu0 0
      %2255 = vmatmul.mubr.bf16.gmra.mrb[0].mxu0 %v2083
      %v2256 = vpop.f32.mrb[0].mxu0
      %v2257 = vadd.f32 0.0, %v2256
      %v2258 = vpop.f32.mrb[0].mxu0
      %v2259 = vpop.f32.mrb[0].mxu0
      %v2260 = vadd.f32 0.0, %v2259
      %v2261 = vpop.f32.mrb[0].mxu0
      %2262 = vmatprep.mubr.bf16.mxu0 0
      %2263 = vmatmul.mubr.bf16.gmra.mrb[0].mxu0 %v2100
      %v2264 = vpop.f32.mrb[0].mxu0
      %v2265 = vadd.f32 0.0, %v2264
      %v2266 = vpop.f32.mrb[0].mxu0
      %v2267 = vpop.f32.mrb[0].mxu0
      %v2268 = vadd.f32 0.0, %v2267
      %v2269 = vpop.f32.mrb[0].mxu0
      %2270 = vdwg.mxu0
      %v2271 = vadd.f32 %v1941, %v2209
      %v2272 = vadd.f32 %v1942, %v2212
      %v2273 = vadd.f32 %v1943, %v2217
      %v2274 = vadd.f32 %v1944, %v2220
      %v2275 = vadd.f32 %v1945, %v2225
      %v2276 = vadd.f32 %v1946, %v2228
      %v2277 = vadd.f32 %v1947, %v2233
      %v2278 = vadd.f32 %v1948, %v2236
      %v2279 = vadd.f32 %v1949, %v2241
      %v2280 = vadd.f32 %v1950, %v2244
      %v2281 = vadd.f32 %v1951, %v2249
      %v2282 = vadd.f32 %v1952, %v2252
      %v2283 = vadd.f32 %v1953, %v2257
      %v2284 = vadd.f32 %v1954, %v2260
      %v2285 = vadd.f32 %v1955, %v2265
      %v2286 = vadd.f32 %v1956, %v2268
      %s2287 = scalar_lea.vmem [#allocation2], 32
      %v2288 = vld [vmem:[%s2287] sm:$0xf8]
      %v2289 = vld [vmem:[%s2287 + $0x8] sm:$0xf]
      %v2290 = vld [vmem:[%s2287 + $0x10] sm:$0xf8]
      %v2291 = vld [vmem:[%s2287 + $0x18] sm:$0xf]
      %v2292 = vld [vmem:[%s2287 + $0x20] sm:$0xf8]
      %v2293 = vld [vmem:[%s2287 + $0x28] sm:$0xf]
      %v2294 = vld [vmem:[%s2287 + $0x30] sm:$0xf8]
      %v2295 = vld [vmem:[%s2287 + $0x38] sm:$0xf]
      %v2296 = vld [vmem:[%s2287 + $0x40] sm:$0xf8]
      %v2297 = vld [vmem:[%s2287 + $0x48] sm:$0xf]
      %v2298 = vld [vmem:[%s2287 + $0x50] sm:$0xf8]
      %v2299 = vld [vmem:[%s2287 + $0x58] sm:$0xf]
      %v2300 = vld [vmem:[%s2287 + $0x60] sm:$0xf8]
      %v2301 = vld [vmem:[%s2287 + $0x68] sm:$0xf]
      %v2302 = vld [vmem:[%s2287 + $0x70] sm:$0xf8]
      %v2303 = vld [vmem:[%s2287 + $0x78] sm:$0xf]
      %v2305 = vshrl.u32 %v2288, 16
      %v2307 = vrot.slane %v2305, 3
      %v2308 = vshll.u32 %v2288, 16
      %v2310 = vrot.slane %v2308, 4
      %v2311 = vor.u32 %v2307, %v2310
      %v2313 = vshrl.u32 %v2289, 16
      %v2315 = vrot.slane %v2313, 3
      %v2316 = vshll.u32 %v2289, 16
      %v2318 = vrot.slane %v2316, 4
      %v2319 = vor.u32 %v2315, %v2318
      %v2320 = vsel %vm529, %v2311, %v2319
      %v2322 = vshrl.u32 %v2290, 16
      %v2324 = vrot.slane %v2322, 3
      %v2325 = vshll.u32 %v2290, 16
      %v2327 = vrot.slane %v2325, 4
      %v2328 = vor.u32 %v2324, %v2327
      %v2330 = vshrl.u32 %v2291, 16
      %v2332 = vrot.slane %v2330, 3
      %v2333 = vshll.u32 %v2291, 16
      %v2335 = vrot.slane %v2333, 4
      %v2336 = vor.u32 %v2332, %v2335
      %v2337 = vsel %vm529, %v2328, %v2336
      %v2339 = vshrl.u32 %v2292, 16
      %v2341 = vrot.slane %v2339, 3
      %v2342 = vshll.u32 %v2292, 16
      %v2344 = vrot.slane %v2342, 4
      %v2345 = vor.u32 %v2341, %v2344
      %v2347 = vshrl.u32 %v2293, 16
      %v2349 = vrot.slane %v2347, 3
      %v2350 = vshll.u32 %v2293, 16
      %v2352 = vrot.slane %v2350, 4
      %v2353 = vor.u32 %v2349, %v2352
      %v2354 = vsel %vm529, %v2345, %v2353
      %v2356 = vshrl.u32 %v2294, 16
      %v2358 = vrot.slane %v2356, 3
      %v2359 = vshll.u32 %v2294, 16
      %v2361 = vrot.slane %v2359, 4
      %v2362 = vor.u32 %v2358, %v2361
      %v2364 = vshrl.u32 %v2295, 16
      %v2366 = vrot.slane %v2364, 3
      %v2367 = vshll.u32 %v2295, 16
      %v2369 = vrot.slane %v2367, 4
      %v2370 = vor.u32 %v2366, %v2369
      %v2371 = vsel %vm529, %v2362, %v2370
      %v2373 = vshrl.u32 %v2296, 16
      %v2375 = vrot.slane %v2373, 3
      %v2376 = vshll.u32 %v2296, 16
      %v2378 = vrot.slane %v2376, 4
      %v2379 = vor.u32 %v2375, %v2378
      %v2381 = vshrl.u32 %v2297, 16
      %v2383 = vrot.slane %v2381, 3
      %v2384 = vshll.u32 %v2297, 16
      %v2386 = vrot.slane %v2384, 4
      %v2387 = vor.u32 %v2383, %v2386
      %v2388 = vsel %vm529, %v2379, %v2387
      %v2390 = vshrl.u32 %v2298, 16
      %v2392 = vrot.slane %v2390, 3
      %v2393 = vshll.u32 %v2298, 16
      %v2395 = vrot.slane %v2393, 4
      %v2396 = vor.u32 %v2392, %v2395
      %v2398 = vshrl.u32 %v2299, 16
      %v2400 = vrot.slane %v2398, 3
      %v2401 = vshll.u32 %v2299, 16
      %v2403 = vrot.slane %v2401, 4
      %v2404 = vor.u32 %v2400, %v2403
      %v2405 = vsel %vm529, %v2396, %v2404
      %v2407 = vshrl.u32 %v2300, 16
      %v2409 = vrot.slane %v2407, 3
      %v2410 = vshll.u32 %v2300, 16
      %v2412 = vrot.slane %v2410, 4
      %v2413 = vor.u32 %v2409, %v2412
      %v2415 = vshrl.u32 %v2301, 16
      %v2417 = vrot.slane %v2415, 3
      %v2418 = vshll.u32 %v2301, 16
      %v2420 = vrot.slane %v2418, 4
      %v2421 = vor.u32 %v2417, %v2420
      %v2422 = vsel %vm529, %v2413, %v2421
      %v2424 = vshrl.u32 %v2302, 16
      %v2426 = vrot.slane %v2424, 3
      %v2427 = vshll.u32 %v2302, 16
      %v2429 = vrot.slane %v2427, 4
      %v2430 = vor.u32 %v2426, %v2429
      %v2432 = vshrl.u32 %v2303, 16
      %v2434 = vrot.slane %v2432, 3
      %v2435 = vshll.u32 %v2303, 16
      %v2437 = vrot.slane %v2435, 4
      %v2438 = vor.u32 %v2434, %v2437
      %v2439 = vsel %vm529, %v2430, %v2438
      %s2448 = scalar_lea.vmem %s3, 384
      %v2449 = vld [vmem:[%s2448] sm:$0xf]
      %v2450 = vld [vmem:[%s2448 + $0x4] sm:$0xf]
      %v2451 = vld [vmem:[%s2448 + $0x8] sm:$0xf]
      %v2452 = vld [vmem:[%s2448 + $0xc] sm:$0xf]
      %v2453 = vld [vmem:[%s2448 + $0x10] sm:$0xf]
      %v2454 = vld [vmem:[%s2448 + $0x14] sm:$0xf]
      %v2455 = vld [vmem:[%s2448 + $0x18] sm:$0xf]
      %v2456 = vld [vmem:[%s2448 + $0x1c] sm:$0xf]
      %v2457 = vld [vmem:[%s2448 + $0x20] sm:$0xf]
      %v2458 = vld [vmem:[%s2448 + $0x24] sm:$0xf]
      %v2459 = vld [vmem:[%s2448 + $0x28] sm:$0xf]
      %v2460 = vld [vmem:[%s2448 + $0x2c] sm:$0xf]
      %v2461 = vld [vmem:[%s2448 + $0x30] sm:$0xf]
      %v2462 = vld [vmem:[%s2448 + $0x34] sm:$0xf]
      %v2463 = vld [vmem:[%s2448 + $0x38] sm:$0xf]
      %v2464 = vld [vmem:[%s2448 + $0x3c] sm:$0xf]
      %v2481 = vunpack.c.l.b16 %v2449
      %v2482 = vunpack.c.l.b16 %v2450
      %v2483 = vunpack.c.l.b16 %v2451
      %v2484 = vunpack.c.l.b16 %v2452
      %v2485 = vunpack.c.l.b16 %v2453
      %v2486 = vunpack.c.l.b16 %v2454
      %v2487 = vunpack.c.l.b16 %v2455
      %v2488 = vunpack.c.l.b16 %v2456
      %v2489 = vunpack.c.l.b16 %v2457
      %v2490 = vunpack.c.l.b16 %v2458
      %v2491 = vunpack.c.l.b16 %v2459
      %v2492 = vunpack.c.l.b16 %v2460
      %v2493 = vunpack.c.l.b16 %v2461
      %v2494 = vunpack.c.l.b16 %v2462
      %v2495 = vunpack.c.l.b16 %v2463
      %v2496 = vunpack.c.l.b16 %v2464
      %v2497 = vpack.c.b16 %v2482, %v2481
      %v2498 = vpack.c.b16 %v2484, %v2483
      %v2499 = vpack.c.b16 %v2486, %v2485
      %v2500 = vpack.c.b16 %v2488, %v2487
      %v2501 = vpack.c.b16 %v2490, %v2489
      %v2502 = vpack.c.b16 %v2492, %v2491
      %v2503 = vpack.c.b16 %v2494, %v2493
      %v2504 = vpack.c.b16 %v2496, %v2495
      %2513 = vmatprep.subr.bf16.mxu0 0
      %2514 = vmatpush1.bf16.msra.mxu0 %v2497
      %2515 = vmatprep.subr.bf16.mxu0 0
      %2516 = vmatpush1.bf16.msra.mxu0 %v2498
      %2517 = vmatprep.subr.bf16.mxu0 0
      %2518 = vmatpush1.bf16.msra.mxu0 %v2499
      %2519 = vmatprep.subr.bf16.mxu0 0
      %2520 = vmatpush1.bf16.msra.mxu0 %v2500
      %2521 = vmatprep.subr.bf16.mxu0 0
      %2522 = vmatpush1.bf16.msra.mxu0 %v2501
      %2523 = vmatprep.subr.bf16.mxu0 0
      %2524 = vmatpush1.bf16.msra.mxu0 %v2502
      %2525 = vmatprep.subr.bf16.mxu0 0
      %2526 = vmatpush1.bf16.msra.mxu0 %v2503
      %2527 = vmatprep.subr.bf16.mxu0 0
      %2528 = vmatpush1.bf16.msra.mxu0 %v2504
      %2529 = vmatprep.subr.bf16.mxu0 0
      %2530 = vmatpush1.bf16.msra.mxu0 0
      %2531 = vmatprep.subr.bf16.mxu0 0
      %2532 = vmatpush1.bf16.msra.mxu0 0
      %2533 = vmatprep.subr.bf16.mxu0 0
      %2534 = vmatpush1.bf16.msra.mxu0 0
      %2535 = vmatprep.subr.bf16.mxu0 0
      %2536 = vmatpush1.bf16.msra.mxu0 0
      %2537 = vmatprep.subr.bf16.mxu0 0
      %2538 = vmatpush1.bf16.msra.mxu0 0
      %2539 = vmatprep.subr.bf16.mxu0 0
      %2540 = vmatpush1.bf16.msra.mxu0 0
      %2541 = vmatprep.subr.bf16.mxu0 0
      %2542 = vmatpush1.bf16.msra.mxu0 0
      %2543 = vmatprep.subr.bf16.mxu0 0
      %2544 = vmatpush1.bf16.msra.mxu0 0
      %2545 = vmatprep.mubr.bf16.mxu0 0
      %2546 = vmatmul.mubr.bf16.gmra.mrb[0].mxu0 %v2320
      %v2547 = vpop.f32.mrb[0].mxu0
      %v2548 = vadd.f32 0.0, %v2547
      %v2549 = vpop.f32.mrb[0].mxu0
      %v2550 = vpop.f32.mrb[0].mxu0
      %v2551 = vadd.f32 0.0, %v2550
      %v2552 = vpop.f32.mrb[0].mxu0
      %2553 = vmatprep.mubr.bf16.mxu0 0
      %2554 = vmatmul.mubr.bf16.gmra.mrb[0].mxu0 %v2337
      %v2555 = vpop.f32.mrb[0].mxu0
      %v2556 = vadd.f32 0.0, %v2555
      %v2557 = vpop.f32.mrb[0].mxu0
      %v2558 = vpop.f32.mrb[0].mxu0
      %v2559 = vadd.f32 0.0, %v2558
      %v2560 = vpop.f32.mrb[0].mxu0
      %2561 = vmatprep.mubr.bf16.mxu0 0
      %2562 = vmatmul.mubr.bf16.gmra.mrb[0].mxu0 %v2354
      %v2563 = vpop.f32.mrb[0].mxu0
      %v2564 = vadd.f32 0.0, %v2563
      %v2565 = vpop.f32.mrb[0].mxu0
      %v2566 = vpop.f32.mrb[0].mxu0
      %v2567 = vadd.f32 0.0, %v2566
      %v2568 = vpop.f32.mrb[0].mxu0
      %2569 = vmatprep.mubr.bf16.mxu0 0
      %2570 = vmatmul.mubr.bf16.gmra.mrb[0].mxu0 %v2371
      %v2571 = vpop.f32.mrb[0].mxu0
      %v2572 = vadd.f32 0.0, %v2571
      %v2573 = vpop.f32.mrb[0].mxu0
      %v2574 = vpop.f32.mrb[0].mxu0
      %v2575 = vadd.f32 0.0, %v2574
      %v2576 = vpop.f32.mrb[0].mxu0
      %2577 = vmatprep.mubr.bf16.mxu0 0
      %2578 = vmatmul.mubr.bf16.gmra.mrb[0].mxu0 %v2388
      %v2579 = vpop.f32.mrb[0].mxu0
      %v2580 = vadd.f32 0.0, %v2579
      %v2581 = vpop.f32.mrb[0].mxu0
      %v2582 = vpop.f32.mrb[0].mxu0
      %v2583 = vadd.f32 0.0, %v2582
      %v2584 = vpop.f32.mrb[0].mxu0
      %2585 = vmatprep.mubr.bf16.mxu0 0
      %2586 = vmatmul.mubr.bf16.gmra.mrb[0].mxu0 %v2405
      %v2587 = vpop.f32.mrb[0].mxu0
      %v2588 = vadd.f32 0.0, %v2587
      %v2589 = vpop.f32.mrb[0].mxu0
      %v2590 = vpop.f32.mrb[0].mxu0
      %v2591 = vadd.f32 0.0, %v2590
      %v2592 = vpop.f32.mrb[0].mxu0
      %2593 = vmatprep.mubr.bf16.mxu0 0
      %2594 = vmatmul.mubr.bf16.gmra.mrb[0].mxu0 %v2422
      %v2595 = vpop.f32.mrb[0].mxu0
      %v2596 = vadd.f32 0.0, %v2595
      %v2597 = vpop.f32.mrb[0].mxu0
      %v2598 = vpop.f32.mrb[0].mxu0
      %v2599 = vadd.f32 0.0, %v2598
      %v2600 = vpop.f32.mrb[0].mxu0
      %2601 = vmatprep.mubr.bf16.mxu0 0
      %2602 = vmatmul.mubr.bf16.gmra.mrb[0].mxu0 %v2439
      %v2603 = vpop.f32.mrb[0].mxu0
      %v2604 = vadd.f32 0.0, %v2603
      %v2605 = vpop.f32.mrb[0].mxu0
      %v2606 = vpop.f32.mrb[0].mxu0
      %v2607 = vadd.f32 0.0, %v2606
      %v2608 = vpop.f32.mrb[0].mxu0
      %2609 = vdwg.mxu0
      %v2610 = vadd.f32 %v2271, %v2548
      %v2611 = vadd.f32 %v2272, %v2551
      %v2612 = vadd.f32 %v2273, %v2556
      %v2613 = vadd.f32 %v2274, %v2559
      %v2614 = vadd.f32 %v2275, %v2564
      %v2615 = vadd.f32 %v2276, %v2567
      %v2616 = vadd.f32 %v2277, %v2572
      %v2617 = vadd.f32 %v2278, %v2575
      %v2618 = vadd.f32 %v2279, %v2580
      %v2619 = vadd.f32 %v2280, %v2583
      %v2620 = vadd.f32 %v2281, %v2588
      %v2621 = vadd.f32 %v2282, %v2591
      %v2622 = vadd.f32 %v2283, %v2596
      %v2623 = vadd.f32 %v2284, %v2599
      %v2624 = vadd.f32 %v2285, %v2604
      %v2625 = vadd.f32 %v2286, %v2607
      %v2626 = vld [vmem:[%s2287] sm:$0xf0]
      %v2627 = vld [vmem:[%s2287 + $0x10] sm:$0xf0]
      %v2628 = vld [vmem:[%s2287 + $0x20] sm:$0xf0]
      %v2629 = vld [vmem:[%s2287 + $0x30] sm:$0xf0]
      %v2630 = vld [vmem:[%s2287 + $0x40] sm:$0xf0]
      %v2631 = vld [vmem:[%s2287 + $0x50] sm:$0xf0]
      %v2632 = vld [vmem:[%s2287 + $0x60] sm:$0xf0]
      %v2633 = vld [vmem:[%s2287 + $0x70] sm:$0xf0]
      %v2650 = vrot.slane %v2626, 4
      %v2651 = vrot.slane %v2289, 4
      %v2652 = vsel %vm714, %v2650, %v2651
      %v2653 = vrot.slane %v2627, 4
      %v2654 = vrot.slane %v2291, 4
      %v2655 = vsel %vm714, %v2653, %v2654
      %v2656 = vrot.slane %v2628, 4
      %v2657 = vrot.slane %v2293, 4
      %v2658 = vsel %vm714, %v2656, %v2657
      %v2659 = vrot.slane %v2629, 4
      %v2660 = vrot.slane %v2295, 4
      %v2661 = vsel %vm714, %v2659, %v2660
      %v2662 = vrot.slane %v2630, 4
      %v2663 = vrot.slane %v2297, 4
      %v2664 = vsel %vm714, %v2662, %v2663
      %v2665 = vrot.slane %v2631, 4
      %v2666 = vrot.slane %v2299, 4
      %v2667 = vsel %vm714, %v2665, %v2666
      %v2668 = vrot.slane %v2632, 4
      %v2669 = vrot.slane %v2301, 4
      %v2670 = vsel %vm714, %v2668, %v2669
      %v2671 = vrot.slane %v2633, 4
      %v2672 = vrot.slane %v2303, 4
      %v2673 = vsel %vm714, %v2671, %v2672
      %s2682 = scalar_lea.vmem %s3, 448
      %v2683 = vld [vmem:[%s2682] sm:$0xf]
      %v2684 = vld [vmem:[%s2682 + $0x4] sm:$0xf]
      %v2685 = vld [vmem:[%s2682 + $0x8] sm:$0xf]
      %v2686 = vld [vmem:[%s2682 + $0xc] sm:$0xf]
      %v2687 = vld [vmem:[%s2682 + $0x10] sm:$0xf]
      %v2688 = vld [vmem:[%s2682 + $0x14] sm:$0xf]
      %v2689 = vld [vmem:[%s2682 + $0x18] sm:$0xf]
      %v2690 = vld [vmem:[%s2682 + $0x1c] sm:$0xf]
      %v2691 = vld [vmem:[%s2682 + $0x20] sm:$0xf]
      %v2692 = vld [vmem:[%s2682 + $0x24] sm:$0xf]
      %v2693 = vld [vmem:[%s2682 + $0x28] sm:$0xf]
      %v2694 = vld [vmem:[%s2682 + $0x2c] sm:$0xf]
      %v2695 = vld [vmem:[%s2682 + $0x30] sm:$0xf]
      %v2696 = vld [vmem:[%s2682 + $0x34] sm:$0xf]
      %v2697 = vld [vmem:[%s2682 + $0x38] sm:$0xf]
      %v2698 = vld [vmem:[%s2682 + $0x3c] sm:$0xf]
      %v2715 = vunpack.c.l.b16 %v2683
      %v2716 = vunpack.c.l.b16 %v2684
      %v2717 = vunpack.c.l.b16 %v2685
      %v2718 = vunpack.c.l.b16 %v2686
      %v2719 = vunpack.c.l.b16 %v2687
      %v2720 = vunpack.c.l.b16 %v2688
      %v2721 = vunpack.c.l.b16 %v2689
      %v2722 = vunpack.c.l.b16 %v2690
      %v2723 = vunpack.c.l.b16 %v2691
      %v2724 = vunpack.c.l.b16 %v2692
      %v2725 = vunpack.c.l.b16 %v2693
      %v2726 = vunpack.c.l.b16 %v2694
      %v2727 = vunpack.c.l.b16 %v2695
      %v2728 = vunpack.c.l.b16 %v2696
      %v2729 = vunpack.c.l.b16 %v2697
      %v2730 = vunpack.c.l.b16 %v2698
      %v2731 = vpack.c.b16 %v2716, %v2715
      %v2732 = vpack.c.b16 %v2718, %v2717
      %v2733 = vpack.c.b16 %v2720, %v2719
      %v2734 = vpack.c.b16 %v2722, %v2721
      %v2735 = vpack.c.b16 %v2724, %v2723
      %v2736 = vpack.c.b16 %v2726, %v2725
      %v2737 = vpack.c.b16 %v2728, %v2727
      %v2738 = vpack.c.b16 %v2730, %v2729
      %2747 = vmatprep.subr.bf16.mxu0 0
      %2748 = vmatpush1.bf16.msra.mxu0 %v2731
      %2749 = vmatprep.subr.bf16.mxu0 0
      %2750 = vmatpush1.bf16.msra.mxu0 %v2732
      %2751 = vmatprep.subr.bf16.mxu0 0
      %2752 = vmatpush1.bf16.msra.mxu0 %v2733
      %2753 = vmatprep.subr.bf16.mxu0 0
      %2754 = vmatpush1.bf16.msra.mxu0 %v2734
      %2755 = vmatprep.subr.bf16.mxu0 0
      %2756 = vmatpush1.bf16.msra.mxu0 %v2735
      %2757 = vmatprep.subr.bf16.mxu0 0
      %2758 = vmatpush1.bf16.msra.mxu0 %v2736
      %2759 = vmatprep.subr.bf16.mxu0 0
      %2760 = vmatpush1.bf16.msra.mxu0 %v2737
      %2761 = vmatprep.subr.bf16.mxu0 0
      %2762 = vmatpush1.bf16.msra.mxu0 %v2738
      %2763 = vmatprep.subr.bf16.mxu0 0
      %2764 = vmatpush1.bf16.msra.mxu0 0
      %2765 = vmatprep.subr.bf16.mxu0 0
      %2766 = vmatpush1.bf16.msra.mxu0 0
      %2767 = vmatprep.subr.bf16.mxu0 0
      %2768 = vmatpush1.bf16.msra.mxu0 0
      %2769 = vmatprep.subr.bf16.mxu0 0
      %2770 = vmatpush1.bf16.msra.mxu0 0
      %2771 = vmatprep.subr.bf16.mxu0 0
      %2772 = vmatpush1.bf16.msra.mxu0 0
      %2773 = vmatprep.subr.bf16.mxu0 0
      %2774 = vmatpush1.bf16.msra.mxu0 0
      %2775 = vmatprep.subr.bf16.mxu0 0
      %2776 = vmatpush1.bf16.msra.mxu0 0
      %2777 = vmatprep.subr.bf16.mxu0 0
      %2778 = vmatpush1.bf16.msra.mxu0 0
      %2779 = vmatprep.mubr.bf16.mxu0 0
      %2780 = vmatmul.mubr.bf16.gmra.mrb[0].mxu0 %v2652
      %v2781 = vpop.f32.mrb[0].mxu0
      %v2782 = vadd.f32 0.0, %v2781
      %v2783 = vpop.f32.mrb[0].mxu0
      %v2784 = vpop.f32.mrb[0].mxu0
      %v2785 = vadd.f32 0.0, %v2784
      %v2786 = vpop.f32.mrb[0].mxu0
      %2787 = vmatprep.mubr.bf16.mxu0 0
      %2788 = vmatmul.mubr.bf16.gmra.mrb[0].mxu0 %v2655
      %v2789 = vpop.f32.mrb[0].mxu0
      %v2790 = vadd.f32 0.0, %v2789
      %v2791 = vpop.f32.mrb[0].mxu0
      %v2792 = vpop.f32.mrb[0].mxu0
      %v2793 = vadd.f32 0.0, %v2792
      %v2794 = vpop.f32.mrb[0].mxu0
      %2795 = vmatprep.mubr.bf16.mxu0 0
      %2796 = vmatmul.mubr.bf16.gmra.mrb[0].mxu0 %v2658
      %v2797 = vpop.f32.mrb[0].mxu0
      %v2798 = vadd.f32 0.0, %v2797
      %v2799 = vpop.f32.mrb[0].mxu0
      %v2800 = vpop.f32.mrb[0].mxu0
      %v2801 = vadd.f32 0.0, %v2800
      %v2802 = vpop.f32.mrb[0].mxu0
      %2803 = vmatprep.mubr.bf16.mxu0 0
      %2804 = vmatmul.mubr.bf16.gmra.mrb[0].mxu0 %v2661
      %v2805 = vpop.f32.mrb[0].mxu0
      %v2806 = vadd.f32 0.0, %v2805
      %v2807 = vpop.f32.mrb[0].mxu0
      %v2808 = vpop.f32.mrb[0].mxu0
      %v2809 = vadd.f32 0.0, %v2808
      %v2810 = vpop.f32.mrb[0].mxu0
      %2811 = vmatprep.mubr.bf16.mxu0 0
      %2812 = vmatmul.mubr.bf16.gmra.mrb[0].mxu0 %v2664
      %v2813 = vpop.f32.mrb[0].mxu0
      %v2814 = vadd.f32 0.0, %v2813
      %v2815 = vpop.f32.mrb[0].mxu0
      %v2816 = vpop.f32.mrb[0].mxu0
      %v2817 = vadd.f32 0.0, %v2816
      %v2818 = vpop.f32.mrb[0].mxu0
      %2819 = vmatprep.mubr.bf16.mxu0 0
      %2820 = vmatmul.mubr.bf16.gmra.mrb[0].mxu0 %v2667
      %v2821 = vpop.f32.mrb[0].mxu0
      %v2822 = vadd.f32 0.0, %v2821
      %v2823 = vpop.f32.mrb[0].mxu0
      %v2824 = vpop.f32.mrb[0].mxu0
      %v2825 = vadd.f32 0.0, %v2824
      %v2826 = vpop.f32.mrb[0].mxu0
      %2827 = vmatprep.mubr.bf16.mxu0 0
      %2828 = vmatmul.mubr.bf16.gmra.mrb[0].mxu0 %v2670
      %v2829 = vpop.f32.mrb[0].mxu0
      %v2830 = vadd.f32 0.0, %v2829
      %v2831 = vpop.f32.mrb[0].mxu0
      %v2832 = vpop.f32.mrb[0].mxu0
      %v2833 = vadd.f32 0.0, %v2832
      %v2834 = vpop.f32.mrb[0].mxu0
      %2835 = vmatprep.mubr.bf16.mxu0 0
      %2836 = vmatmul.mubr.bf16.gmra.mrb[0].mxu0 %v2673
      %v2837 = vpop.f32.mrb[0].mxu0
      %v2838 = vadd.f32 0.0, %v2837
      %v2839 = vpop.f32.mrb[0].mxu0
      %v2840 = vpop.f32.mrb[0].mxu0
      %v2841 = vadd.f32 0.0, %v2840
      %v2842 = vpop.f32.mrb[0].mxu0
      %2843 = vdwg.mxu0
      %v2844 = vadd.f32 %v2610, %v2782
      %v2845 = vadd.f32 %v2611, %v2785
      %v2846 = vadd.f32 %v2612, %v2790
      %v2847 = vadd.f32 %v2613, %v2793
      %v2848 = vadd.f32 %v2614, %v2798
      %v2849 = vadd.f32 %v2615, %v2801
      %v2850 = vadd.f32 %v2616, %v2806
      %v2851 = vadd.f32 %v2617, %v2809
      %v2852 = vadd.f32 %v2618, %v2814
      %v2853 = vadd.f32 %v2619, %v2817
      %v2854 = vadd.f32 %v2620, %v2822
      %v2855 = vadd.f32 %v2621, %v2825
      %v2856 = vadd.f32 %v2622, %v2830
      %v2857 = vadd.f32 %v2623, %v2833
      %v2858 = vadd.f32 %v2624, %v2838
      %v2859 = vadd.f32 %v2625, %v2841
      %v2860 = vld [vmem:[%s2287 + $0x8] sm:$0x1f]
      %v2861 = vld [vmem:[%s2287 + $0x18] sm:$0x1f]
      %v2862 = vld [vmem:[%s2287 + $0x28] sm:$0x1f]
      %v2863 = vld [vmem:[%s2287 + $0x38] sm:$0x1f]
      %v2864 = vld [vmem:[%s2287 + $0x48] sm:$0x1f]
      %v2865 = vld [vmem:[%s2287 + $0x58] sm:$0x1f]
      %v2866 = vld [vmem:[%s2287 + $0x68] sm:$0x1f]
      %v2867 = vld [vmem:[%s2287 + $0x78] sm:$0x1f]
      %v2869 = vshrl.u32 %v2626, 16
      %v2871 = vrot.slane %v2869, 4
      %v2872 = vshll.u32 %v2626, 16
      %v2874 = vrot.slane %v2872, 5
      %v2875 = vor.u32 %v2871, %v2874
      %v2877 = vshrl.u32 %v2860, 16
      %v2879 = vrot.slane %v2877, 4
      %v2880 = vshll.u32 %v2860, 16
      %v2882 = vrot.slane %v2880, 5
      %v2883 = vor.u32 %v2879, %v2882
      %v2884 = vsel %vm1062, %v2875, %v2883
      %v2886 = vshrl.u32 %v2627, 16
      %v2888 = vrot.slane %v2886, 4
      %v2889 = vshll.u32 %v2627, 16
      %v2891 = vrot.slane %v2889, 5
      %v2892 = vor.u32 %v2888, %v2891
      %v2894 = vshrl.u32 %v2861, 16
      %v2896 = vrot.slane %v2894, 4
      %v2897 = vshll.u32 %v2861, 16
      %v2899 = vrot.slane %v2897, 5
      %v2900 = vor.u32 %v2896, %v2899
      %v2901 = vsel %vm1062, %v2892, %v2900
      %v2903 = vshrl.u32 %v2628, 16
      %v2905 = vrot.slane %v2903, 4
      %v2906 = vshll.u32 %v2628, 16
      %v2908 = vrot.slane %v2906, 5
      %v2909 = vor.u32 %v2905, %v2908
      %v2911 = vshrl.u32 %v2862, 16
      %v2913 = vrot.slane %v2911, 4
      %v2914 = vshll.u32 %v2862, 16
      %v2916 = vrot.slane %v2914, 5
      %v2917 = vor.u32 %v2913, %v2916
      %v2918 = vsel %vm1062, %v2909, %v2917
      %v2920 = vshrl.u32 %v2629, 16
      %v2922 = vrot.slane %v2920, 4
      %v2923 = vshll.u32 %v2629, 16
      %v2925 = vrot.slane %v2923, 5
      %v2926 = vor.u32 %v2922, %v2925
      %v2928 = vshrl.u32 %v2863, 16
      %v2930 = vrot.slane %v2928, 4
      %v2931 = vshll.u32 %v2863, 16
      %v2933 = vrot.slane %v2931, 5
      %v2934 = vor.u32 %v2930, %v2933
      %v2935 = vsel %vm1062, %v2926, %v2934
      %v2937 = vshrl.u32 %v2630, 16
      %v2939 = vrot.slane %v2937, 4
      %v2940 = vshll.u32 %v2630, 16
      %v2942 = vrot.slane %v2940, 5
      %v2943 = vor.u32 %v2939, %v2942
      %v2945 = vshrl.u32 %v2864, 16
      %v2947 = vrot.slane %v2945, 4
      %v2948 = vshll.u32 %v2864, 16
      %v2950 = vrot.slane %v2948, 5
      %v2951 = vor.u32 %v2947, %v2950
      %v2952 = vsel %vm1062, %v2943, %v2951
      %v2954 = vshrl.u32 %v2631, 16
      %v2956 = vrot.slane %v2954, 4
      %v2957 = vshll.u32 %v2631, 16
      %v2959 = vrot.slane %v2957, 5
      %v2960 = vor.u32 %v2956, %v2959
      %v2962 = vshrl.u32 %v2865, 16
      %v2964 = vrot.slane %v2962, 4
      %v2965 = vshll.u32 %v2865, 16
      %v2967 = vrot.slane %v2965, 5
      %v2968 = vor.u32 %v2964, %v2967
      %v2969 = vsel %vm1062, %v2960, %v2968
      %v2971 = vshrl.u32 %v2632, 16
      %v2973 = vrot.slane %v2971, 4
      %v2974 = vshll.u32 %v2632, 16
      %v2976 = vrot.slane %v2974, 5
      %v2977 = vor.u32 %v2973, %v2976
      %v2979 = vshrl.u32 %v2866, 16
      %v2981 = vrot.slane %v2979, 4
      %v2982 = vshll.u32 %v2866, 16
      %v2984 = vrot.slane %v2982, 5
      %v2985 = vor.u32 %v2981, %v2984
      %v2986 = vsel %vm1062, %v2977, %v2985
      %v2988 = vshrl.u32 %v2633, 16
      %v2990 = vrot.slane %v2988, 4
      %v2991 = vshll.u32 %v2633, 16
      %v2993 = vrot.slane %v2991, 5
      %v2994 = vor.u32 %v2990, %v2993
      %v2996 = vshrl.u32 %v2867, 16
      %v2998 = vrot.slane %v2996, 4
      %v2999 = vshll.u32 %v2867, 16
      %v3001 = vrot.slane %v2999, 5
      %v3002 = vor.u32 %v2998, %v3001
      %v3003 = vsel %vm1062, %v2994, %v3002
      %s3012 = scalar_lea.vmem %s3, 512
      %v3013 = vld [vmem:[%s3012] sm:$0xf]
      %v3014 = vld [vmem:[%s3012 + $0x4] sm:$0xf]
      %v3015 = vld [vmem:[%s3012 + $0x8] sm:$0xf]
      %v3016 = vld [vmem:[%s3012 + $0xc] sm:$0xf]
      %v3017 = vld [vmem:[%s3012 + $0x10] sm:$0xf]
      %v3018 = vld [vmem:[%s3012 + $0x14] sm:$0xf]
      %v3019 = vld [vmem:[%s3012 + $0x18] sm:$0xf]
      %v3020 = vld [vmem:[%s3012 + $0x1c] sm:$0xf]
      %v3021 = vld [vmem:[%s3012 + $0x20] sm:$0xf]
      %v3022 = vld [vmem:[%s3012 + $0x24] sm:$0xf]
      %v3023 = vld [vmem:[%s3012 + $0x28] sm:$0xf]
      %v3024 = vld [vmem:[%s3012 + $0x2c] sm:$0xf]
      %v3025 = vld [vmem:[%s3012 + $0x30] sm:$0xf]
      %v3026 = vld [vmem:[%s3012 + $0x34] sm:$0xf]
      %v3027 = vld [vmem:[%s3012 + $0x38] sm:$0xf]
      %v3028 = vld [vmem:[%s3012 + $0x3c] sm:$0xf]
      %v3045 = vunpack.c.l.b16 %v3013
      %v3046 = vunpack.c.l.b16 %v3014
      %v3047 = vunpack.c.l.b16 %v3015
      %v3048 = vunpack.c.l.b16 %v3016
      %v3049 = vunpack.c.l.b16 %v3017
      %v3050 = vunpack.c.l.b16 %v3018
      %v3051 = vunpack.c.l.b16 %v3019
      %v3052 = vunpack.c.l.b16 %v3020
      %v3053 = vunpack.c.l.b16 %v3021
      %v3054 = vunpack.c.l.b16 %v3022
      %v3055 = vunpack.c.l.b16 %v3023
      %v3056 = vunpack.c.l.b16 %v3024
      %v3057 = vunpack.c.l.b16 %v3025
      %v3058 = vunpack.c.l.b16 %v3026
      %v3059 = vunpack.c.l.b16 %v3027
      %v3060 = vunpack.c.l.b16 %v3028
      %v3061 = vpack.c.b16 %v3046, %v3045
      %v3062 = vpack.c.b16 %v3048, %v3047
      %v3063 = vpack.c.b16 %v3050, %v3049
      %v3064 = vpack.c.b16 %v3052, %v3051
      %v3065 = vpack.c.b16 %v3054, %v3053
      %v3066 = vpack.c.b16 %v3056, %v3055
      %v3067 = vpack.c.b16 %v3058, %v3057
      %v3068 = vpack.c.b16 %v3060, %v3059
      %3077 = vmatprep.subr.bf16.mxu0 0
      %3078 = vmatpush1.bf16.msra.mxu0 %v3061
      %3079 = vmatprep.subr.bf16.mxu0 0
      %3080 = vmatpush1.bf16.msra.mxu0 %v3062
      %3081 = vmatprep.subr.bf16.mxu0 0
      %3082 = vmatpush1.bf16.msra.mxu0 %v3063
      %3083 = vmatprep.subr.bf16.mxu0 0
      %3084 = vmatpush1.bf16.msra.mxu0 %v3064
      %3085 = vmatprep.subr.bf16.mxu0 0
      %3086 = vmatpush1.bf16.msra.mxu0 %v3065
      %3087 = vmatprep.subr.bf16.mxu0 0
      %3088 = vmatpush1.bf16.msra.mxu0 %v3066
      %3089 = vmatprep.subr.bf16.mxu0 0
      %3090 = vmatpush1.bf16.msra.mxu0 %v3067
      %3091 = vmatprep.subr.bf16.mxu0 0
      %3092 = vmatpush1.bf16.msra.mxu0 %v3068
      %3093 = vmatprep.subr.bf16.mxu0 0
      %3094 = vmatpush1.bf16.msra.mxu0 0
      %3095 = vmatprep.subr.bf16.mxu0 0
      %3096 = vmatpush1.bf16.msra.mxu0 0
      %3097 = vmatprep.subr.bf16.mxu0 0
      %3098 = vmatpush1.bf16.msra.mxu0 0
      %3099 = vmatprep.subr.bf16.mxu0 0
      %3100 = vmatpush1.bf16.msra.mxu0 0
      %3101 = vmatprep.subr.bf16.mxu0 0
      %3102 = vmatpush1.bf16.msra.mxu0 0
      %3103 = vmatprep.subr.bf16.mxu0 0
      %3104 = vmatpush1.bf16.msra.mxu0 0
      %3105 = vmatprep.subr.bf16.mxu0 0
      %3106 = vmatpush1.bf16.msra.mxu0 0
      %3107 = vmatprep.subr.bf16.mxu0 0
      %3108 = vmatpush1.bf16.msra.mxu0 0
      %3109 = vmatprep.mubr.bf16.mxu0 0
      %3110 = vmatmul.mubr.bf16.gmra.mrb[0].mxu0 %v2884
      %v3111 = vpop.f32.mrb[0].mxu0
      %v3112 = vadd.f32 0.0, %v3111
      %v3113 = vpop.f32.mrb[0].mxu0
      %v3114 = vpop.f32.mrb[0].mxu0
      %v3115 = vadd.f32 0.0, %v3114
      %v3116 = vpop.f32.mrb[0].mxu0
      %3117 = vmatprep.mubr.bf16.mxu0 0
      %3118 = vmatmul.mubr.bf16.gmra.mrb[0].mxu0 %v2901
      %v3119 = vpop.f32.mrb[0].mxu0
      %v3120 = vadd.f32 0.0, %v3119
      %v3121 = vpop.f32.mrb[0].mxu0
      %v3122 = vpop.f32.mrb[0].mxu0
      %v3123 = vadd.f32 0.0, %v3122
      %v3124 = vpop.f32.mrb[0].mxu0
      %3125 = vmatprep.mubr.bf16.mxu0 0
      %3126 = vmatmul.mubr.bf16.gmra.mrb[0].mxu0 %v2918
      %v3127 = vpop.f32.mrb[0].mxu0
      %v3128 = vadd.f32 0.0, %v3127
      %v3129 = vpop.f32.mrb[0].mxu0
      %v3130 = vpop.f32.mrb[0].mxu0
      %v3131 = vadd.f32 0.0, %v3130
      %v3132 = vpop.f32.mrb[0].mxu0
      %3133 = vmatprep.mubr.bf16.mxu0 0
      %3134 = vmatmul.mubr.bf16.gmra.mrb[0].mxu0 %v2935
      %v3135 = vpop.f32.mrb[0].mxu0
      %v3136 = vadd.f32 0.0, %v3135
      %v3137 = vpop.f32.mrb[0].mxu0
      %v3138 = vpop.f32.mrb[0].mxu0
      %v3139 = vadd.f32 0.0, %v3138
      %v3140 = vpop.f32.mrb[0].mxu0
      %3141 = vmatprep.mubr.bf16.mxu0 0
      %3142 = vmatmul.mubr.bf16.gmra.mrb[0].mxu0 %v2952
      %v3143 = vpop.f32.mrb[0].mxu0
      %v3144 = vadd.f32 0.0, %v3143
      %v3145 = vpop.f32.mrb[0].mxu0
      %v3146 = vpop.f32.mrb[0].mxu0
      %v3147 = vadd.f32 0.0, %v3146
      %v3148 = vpop.f32.mrb[0].mxu0
      %3149 = vmatprep.mubr.bf16.mxu0 0
      %3150 = vmatmul.mubr.bf16.gmra.mrb[0].mxu0 %v2969
      %v3151 = vpop.f32.mrb[0].mxu0
      %v3152 = vadd.f32 0.0, %v3151
      %v3153 = vpop.f32.mrb[0].mxu0
      %v3154 = vpop.f32.mrb[0].mxu0
      %v3155 = vadd.f32 0.0, %v3154
      %v3156 = vpop.f32.mrb[0].mxu0
      %3157 = vmatprep.mubr.bf16.mxu0 0
      %3158 = vmatmul.mubr.bf16.gmra.mrb[0].mxu0 %v2986
      %v3159 = vpop.f32.mrb[0].mxu0
      %v3160 = vadd.f32 0.0, %v3159
      %v3161 = vpop.f32.mrb[0].mxu0
      %v3162 = vpop.f32.mrb[0].mxu0
      %v3163 = vadd.f32 0.0, %v3162
      %v3164 = vpop.f32.mrb[0].mxu0
      %3165 = vmatprep.mubr.bf16.mxu0 0
      %3166 = vmatmul.mubr.bf16.gmra.mrb[0].mxu0 %v3003
      %v3167 = vpop.f32.mrb[0].mxu0
      %v3168 = vadd.f32 0.0, %v3167
      %v3169 = vpop.f32.mrb[0].mxu0
      %v3170 = vpop.f32.mrb[0].mxu0
      %v3171 = vadd.f32 0.0, %v3170
      %v3172 = vpop.f32.mrb[0].mxu0
      %3173 = vdwg.mxu0
      %v3174 = vadd.f32 %v2844, %v3112
      %v3175 = vadd.f32 %v2845, %v3115
      %v3176 = vadd.f32 %v2846, %v3120
      %v3177 = vadd.f32 %v2847, %v3123
      %v3178 = vadd.f32 %v2848, %v3128
      %v3179 = vadd.f32 %v2849, %v3131
      %v3180 = vadd.f32 %v2850, %v3136
      %v3181 = vadd.f32 %v2851, %v3139
      %v3182 = vadd.f32 %v2852, %v3144
      %v3183 = vadd.f32 %v2853, %v3147
      %v3184 = vadd.f32 %v2854, %v3152
      %v3185 = vadd.f32 %v2855, %v3155
      %v3186 = vadd.f32 %v2856, %v3160
      %v3187 = vadd.f32 %v2857, %v3163
      %v3188 = vadd.f32 %v2858, %v3168
      %v3189 = vadd.f32 %v2859, %v3171
      %3190 = vst [vmem:[%s231] sm:$0xff] %v3174
      %3191 = vst [vmem:[%s231 + $0x8] sm:$0xff] %v3175
      %3192 = vst [vmem:[%s231 + $0x10] sm:$0xff] %v3176
      %3193 = vst [vmem:[%s231 + $0x18] sm:$0xff] %v3177
      %3194 = vst [vmem:[%s231 + $0x20] sm:$0xff] %v3178
      %3195 = vst [vmem:[%s231 + $0x28] sm:$0xff] %v3179
      %3196 = vst [vmem:[%s231 + $0x30] sm:$0xff] %v3180
      %3197 = vst [vmem:[%s231 + $0x38] sm:$0xff] %v3181
      %3198 = vst [vmem:[%s231 + $0x40] sm:$0xff] %v3182
      %3199 = vst [vmem:[%s231 + $0x48] sm:$0xff] %v3183
      %3200 = vst [vmem:[%s231 + $0x50] sm:$0xff] %v3184
      %3201 = vst [vmem:[%s231 + $0x58] sm:$0xff] %v3185
      %3202 = vst [vmem:[%s231 + $0x60] sm:$0xff] %v3186
      %3203 = vst [vmem:[%s231 + $0x68] sm:$0xff] %v3187
      %3204 = vst [vmem:[%s231 + $0x70] sm:$0xff] %v3188
      %3205 = vst [vmem:[%s231 + $0x78] sm:$0xff] %v3189
      %v3206 = vadd.f32 %v3174, %v3175
      %v3207 = vadd.f32 %v3206, %v3176
      %v3208 = vadd.f32 %v3207, %v3177
      %v3209 = vadd.f32 %v3208, %v3178
      %v3210 = vadd.f32 %v3209, %v3179
      %v3211 = vadd.f32 %v3210, %v3180
      %v3212 = vadd.f32 %v3211, %v3181
      %v3213 = vadd.f32 %v3212, %v3182
      %v3214 = vadd.f32 %v3213, %v3183
      %v3215 = vadd.f32 %v3214, %v3184
      %v3216 = vadd.f32 %v3215, %v3185
      %v3217 = vadd.f32 %v3216, %v3186
      %v3218 = vadd.f32 %v3217, %v3187
      %v3219 = vadd.f32 %v3218, %v3188
      %v3220 = vadd.f32 %v3219, %v3189
      %v3221 = vrot.slane %v3220, 4
      %v3222 = vadd.f32 %v3220, %v3221
      %v3223 = vrot.slane %v3222, 2
      %v3224 = vadd.f32 %v3222, %v3223
      %v3225 = vrot.slane %v3224, 1
      %v3226 = vadd.f32 %v3224, %v3225
      %v3227 = vadd.f32 %v3226, 0.0
      %v3228 = vmul.f32 %v3174, %v3174
      %v3229 = vmul.f32 %v3175, %v3175
      %v3230 = vmul.f32 %v3176, %v3176
      %v3231 = vmul.f32 %v3177, %v3177
      %v3232 = vmul.f32 %v3178, %v3178
      %v3233 = vmul.f32 %v3179, %v3179
      %v3234 = vmul.f32 %v3180, %v3180
      %v3235 = vmul.f32 %v3181, %v3181
      %v3236 = vmul.f32 %v3182, %v3182
      %v3237 = vmul.f32 %v3183, %v3183
      %v3238 = vmul.f32 %v3184, %v3184
      %v3239 = vmul.f32 %v3185, %v3185
      %v3240 = vmul.f32 %v3186, %v3186
      %v3241 = vmul.f32 %v3187, %v3187
      %v3242 = vmul.f32 %v3188, %v3188
      %v3243 = vmul.f32 %v3189, %v3189
      %v3244 = vadd.f32 %v3228, %v3229
      %v3245 = vadd.f32 %v3244, %v3230
      %v3246 = vadd.f32 %v3245, %v3231
      %v3247 = vadd.f32 %v3246, %v3232
      %v3248 = vadd.f32 %v3247, %v3233
      %v3249 = vadd.f32 %v3248, %v3234
      %v3250 = vadd.f32 %v3249, %v3235
      %v3251 = vadd.f32 %v3250, %v3236
      %v3252 = vadd.f32 %v3251, %v3237
      %v3253 = vadd.f32 %v3252, %v3238
      %v3254 = vadd.f32 %v3253, %v3239
      %v3255 = vadd.f32 %v3254, %v3240
      %v3256 = vadd.f32 %v3255, %v3241
      %v3257 = vadd.f32 %v3256, %v3242
      %v3258 = vadd.f32 %v3257, %v3243
      %v3259 = vrot.slane %v3258, 4
      %v3260 = vadd.f32 %v3258, %v3259
      %v3261 = vrot.slane %v3260, 2
      %v3262 = vadd.f32 %v3260, %v3261
      %v3263 = vrot.slane %v3262, 1
      %v3264 = vadd.f32 %v3262, %v3263
      %v3265 = vadd.f32 %v3264, 0.0
      %s3266 = scalar_lea.vmem [#allocation2], 128
      %v3267 = vld [vmem:[%s3266] sm:$0xf8]
      %v3268 = vld [vmem:[%s3266 + $0x8] sm:$0xf]
      %v3269 = vld [vmem:[%s3266 + $0x10] sm:$0xf8]
      %v3270 = vld [vmem:[%s3266 + $0x18] sm:$0xf]
      %v3271 = vld [vmem:[%s3266 + $0x20] sm:$0xf8]
      %v3272 = vld [vmem:[%s3266 + $0x28] sm:$0xf]
      %v3273 = vld [vmem:[%s3266 + $0x30] sm:$0xf8]
      %v3274 = vld [vmem:[%s3266 + $0x38] sm:$0xf]
      %v3275 = vld [vmem:[%s3266 + $0x40] sm:$0xf8]
      %v3276 = vld [vmem:[%s3266 + $0x48] sm:$0xf]
      %v3277 = vld [vmem:[%s3266 + $0x50] sm:$0xf8]
      %v3278 = vld [vmem:[%s3266 + $0x58] sm:$0xf]
      %v3279 = vld [vmem:[%s3266 + $0x60] sm:$0xf8]
      %v3280 = vld [vmem:[%s3266 + $0x68] sm:$0xf]
      %v3281 = vld [vmem:[%s3266 + $0x70] sm:$0xf8]
      %v3282 = vld [vmem:[%s3266 + $0x78] sm:$0xf]
      %v3284 = vshrl.u32 %v3267, 16
      %v3286 = vrot.slane %v3284, 3
      %v3287 = vshll.u32 %v3267, 16
      %v3289 = vrot.slane %v3287, 4
      %v3290 = vor.u32 %v3286, %v3289
      %v3292 = vshrl.u32 %v3268, 16
      %v3294 = vrot.slane %v3292, 3
      %v3295 = vshll.u32 %v3268, 16
      %v3297 = vrot.slane %v3295, 4
      %v3298 = vor.u32 %v3294, %v3297
      %v3299 = vsel %vm529, %v3290, %v3298
      %v3301 = vshrl.u32 %v3269, 16
      %v3303 = vrot.slane %v3301, 3
      %v3304 = vshll.u32 %v3269, 16
      %v3306 = vrot.slane %v3304, 4
      %v3307 = vor.u32 %v3303, %v3306
      %v3309 = vshrl.u32 %v3270, 16
      %v3311 = vrot.slane %v3309, 3
      %v3312 = vshll.u32 %v3270, 16
      %v3314 = vrot.slane %v3312, 4
      %v3315 = vor.u32 %v3311, %v3314
      %v3316 = vsel %vm529, %v3307, %v3315
      %v3318 = vshrl.u32 %v3271, 16
      %v3320 = vrot.slane %v3318, 3
      %v3321 = vshll.u32 %v3271, 16
      %v3323 = vrot.slane %v3321, 4
      %v3324 = vor.u32 %v3320, %v3323
      %v3326 = vshrl.u32 %v3272, 16
      %v3328 = vrot.slane %v3326, 3
      %v3329 = vshll.u32 %v3272, 16
      %v3331 = vrot.slane %v3329, 4
      %v3332 = vor.u32 %v3328, %v3331
      %v3333 = vsel %vm529, %v3324, %v3332
      %v3335 = vshrl.u32 %v3273, 16
      %v3337 = vrot.slane %v3335, 3
      %v3338 = vshll.u32 %v3273, 16
      %v3340 = vrot.slane %v3338, 4
      %v3341 = vor.u32 %v3337, %v3340
      %v3343 = vshrl.u32 %v3274, 16
      %v3345 = vrot.slane %v3343, 3
      %v3346 = vshll.u32 %v3274, 16
      %v3348 = vrot.slane %v3346, 4
      %v3349 = vor.u32 %v3345, %v3348
      %v3350 = vsel %vm529, %v3341, %v3349
      %v3352 = vshrl.u32 %v3275, 16
      %v3354 = vrot.slane %v3352, 3
      %v3355 = vshll.u32 %v3275, 16
      %v3357 = vrot.slane %v3355, 4
      %v3358 = vor.u32 %v3354, %v3357
      %v3360 = vshrl.u32 %v3276, 16
      %v3362 = vrot.slane %v3360, 3
      %v3363 = vshll.u32 %v3276, 16
      %v3365 = vrot.slane %v3363, 4
      %v3366 = vor.u32 %v3362, %v3365
      %v3367 = vsel %vm529, %v3358, %v3366
      %v3369 = vshrl.u32 %v3277, 16
      %v3371 = vrot.slane %v3369, 3
      %v3372 = vshll.u32 %v3277, 16
      %v3374 = vrot.slane %v3372, 4
      %v3375 = vor.u32 %v3371, %v3374
      %v3377 = vshrl.u32 %v3278, 16
      %v3379 = vrot.slane %v3377, 3
      %v3380 = vshll.u32 %v3278, 16
      %v3382 = vrot.slane %v3380, 4
      %v3383 = vor.u32 %v3379, %v3382
      %v3384 = vsel %vm529, %v3375, %v3383
      %v3386 = vshrl.u32 %v3279, 16
      %v3388 = vrot.slane %v3386, 3
      %v3389 = vshll.u32 %v3279, 16
      %v3391 = vrot.slane %v3389, 4
      %v3392 = vor.u32 %v3388, %v3391
      %v3394 = vshrl.u32 %v3280, 16
      %v3396 = vrot.slane %v3394, 3
      %v3397 = vshll.u32 %v3280, 16
      %v3399 = vrot.slane %v3397, 4
      %v3400 = vor.u32 %v3396, %v3399
      %v3401 = vsel %vm529, %v3392, %v3400
      %v3403 = vshrl.u32 %v3281, 16
      %v3405 = vrot.slane %v3403, 3
      %v3406 = vshll.u32 %v3281, 16
      %v3408 = vrot.slane %v3406, 4
      %v3409 = vor.u32 %v3405, %v3408
      %v3411 = vshrl.u32 %v3282, 16
      %v3413 = vrot.slane %v3411, 3
      %v3414 = vshll.u32 %v3282, 16
      %v3416 = vrot.slane %v3414, 4
      %v3417 = vor.u32 %v3413, %v3416
      %v3418 = vsel %vm529, %v3409, %v3417
      %v3427 = vld [vmem:[%s3] sm:$0xf]
      %v3428 = vld [vmem:[%s3 + $0x4] sm:$0xf]
      %v3429 = vld [vmem:[%s3 + $0x8] sm:$0xf]
      %v3430 = vld [vmem:[%s3 + $0xc] sm:$0xf]
      %v3431 = vld [vmem:[%s3 + $0x10] sm:$0xf]
      %v3432 = vld [vmem:[%s3 + $0x14] sm:$0xf]
      %v3433 = vld [vmem:[%s3 + $0x18] sm:$0xf]
      %v3434 = vld [vmem:[%s3 + $0x1c] sm:$0xf]
      %v3435 = vld [vmem:[%s3 + $0x20] sm:$0xf]
      %v3436 = vld [vmem:[%s3 + $0x24] sm:$0xf]
      %v3437 = vld [vmem:[%s3 + $0x28] sm:$0xf]
      %v3438 = vld [vmem:[%s3 + $0x2c] sm:$0xf]
      %v3439 = vld [vmem:[%s3 + $0x30] sm:$0xf]
      %v3440 = vld [vmem:[%s3 + $0x34] sm:$0xf]
      %v3441 = vld [vmem:[%s3 + $0x38] sm:$0xf]
      %v3442 = vld [vmem:[%s3 + $0x3c] sm:$0xf]
      %v3443 = vld [vmem:[%s3266] sm:$0xf0]
      %v3444 = vld [vmem:[%s3266 + $0x10] sm:$0xf0]
      %v3445 = vld [vmem:[%s3266 + $0x20] sm:$0xf0]
      %v3446 = vld [vmem:[%s3266 + $0x30] sm:$0xf0]
      %v3447 = vld [vmem:[%s3266 + $0x40] sm:$0xf0]
      %v3448 = vld [vmem:[%s3266 + $0x50] sm:$0xf0]
      %v3449 = vld [vmem:[%s3266 + $0x60] sm:$0xf0]
      %v3450 = vld [vmem:[%s3266 + $0x70] sm:$0xf0]
      %v3467 = vrot.slane %v3443, 4
      %v3468 = vrot.slane %v3268, 4
      %v3469 = vsel %vm714, %v3467, %v3468
      %v3470 = vrot.slane %v3444, 4
      %v3471 = vrot.slane %v3270, 4
      %v3472 = vsel %vm714, %v3470, %v3471
      %v3473 = vrot.slane %v3445, 4
      %v3474 = vrot.slane %v3272, 4
      %v3475 = vsel %vm714, %v3473, %v3474
      %v3476 = vrot.slane %v3446, 4
      %v3477 = vrot.slane %v3274, 4
      %v3478 = vsel %vm714, %v3476, %v3477
      %v3479 = vrot.slane %v3447, 4
      %v3480 = vrot.slane %v3276, 4
      %v3481 = vsel %vm714, %v3479, %v3480
      %v3482 = vrot.slane %v3448, 4
      %v3483 = vrot.slane %v3278, 4
      %v3484 = vsel %vm714, %v3482, %v3483
      %v3485 = vrot.slane %v3449, 4
      %v3486 = vrot.slane %v3280, 4
      %v3487 = vsel %vm714, %v3485, %v3486
      %v3488 = vrot.slane %v3450, 4
      %v3489 = vrot.slane %v3282, 4
      %v3490 = vsel %vm714, %v3488, %v3489
      %v3499 = vld [vmem:[%s747] sm:$0xf]
      %v3500 = vld [vmem:[%s747 + $0x4] sm:$0xf]
      %v3501 = vld [vmem:[%s747 + $0x8] sm:$0xf]
      %v3502 = vld [vmem:[%s747 + $0xc] sm:$0xf]
      %v3503 = vld [vmem:[%s747 + $0x10] sm:$0xf]
      %v3504 = vld [vmem:[%s747 + $0x14] sm:$0xf]
      %v3505 = vld [vmem:[%s747 + $0x18] sm:$0xf]
      %v3506 = vld [vmem:[%s747 + $0x1c] sm:$0xf]
      %v3507 = vld [vmem:[%s747 + $0x20] sm:$0xf]
      %v3508 = vld [vmem:[%s747 + $0x24] sm:$0xf]
      %v3509 = vld [vmem:[%s747 + $0x28] sm:$0xf]
      %v3510 = vld [vmem:[%s747 + $0x2c] sm:$0xf]
      %v3511 = vld [vmem:[%s747 + $0x30] sm:$0xf]
      %v3512 = vld [vmem:[%s747 + $0x34] sm:$0xf]
      %v3513 = vld [vmem:[%s747 + $0x38] sm:$0xf]
      %v3514 = vld [vmem:[%s747 + $0x3c] sm:$0xf]
      %v3531 = vunpack.c.l.b16 %v3499
      %v3532 = vunpack.c.l.b16 %v3500
      %v3533 = vunpack.c.l.b16 %v3501
      %v3534 = vunpack.c.l.b16 %v3502
      %v3535 = vunpack.c.l.b16 %v3503
      %v3536 = vunpack.c.l.b16 %v3504
      %v3537 = vunpack.c.l.b16 %v3505
      %v3538 = vunpack.c.l.b16 %v3506
      %v3539 = vunpack.c.l.b16 %v3507
      %v3540 = vunpack.c.l.b16 %v3508
      %v3541 = vunpack.c.l.b16 %v3509
      %v3542 = vunpack.c.l.b16 %v3510
      %v3543 = vunpack.c.l.b16 %v3511
      %v3544 = vunpack.c.l.b16 %v3512
      %v3545 = vunpack.c.l.b16 %v3513
      %v3546 = vunpack.c.l.b16 %v3514
      %v3547 = vpack.c.b16 %v3532, %v3531
      %v3548 = vpack.c.b16 %v3534, %v3533
      %v3549 = vpack.c.b16 %v3536, %v3535
      %v3550 = vpack.c.b16 %v3538, %v3537
      %v3551 = vpack.c.b16 %v3540, %v3539
      %v3552 = vpack.c.b16 %v3542, %v3541
      %v3553 = vpack.c.b16 %v3544, %v3543
      %v3554 = vpack.c.b16 %v3546, %v3545
      %3563 = vmatprep.subr.bf16.mxu0 0
      %3564 = vmatpush1.bf16.msra.mxu0 %v3547
      %3565 = vmatprep.subr.bf16.mxu0 0
      %3566 = vmatpush1.bf16.msra.mxu0 %v3548
      %3567 = vmatprep.subr.bf16.mxu0 0
      %3568 = vmatpush1.bf16.msra.mxu0 %v3549
      %3569 = vmatprep.subr.bf16.mxu0 0
      %3570 = vmatpush1.bf16.msra.mxu0 %v3550
      %3571 = vmatprep.subr.bf16.mxu0 0
      %3572 = vmatpush1.bf16.msra.mxu0 %v3551
      %3573 = vmatprep.subr.bf16.mxu0 0
      %3574 = vmatpush1.bf16.msra.mxu0 %v3552
      %3575 = vmatprep.subr.bf16.mxu0 0
      %3576 = vmatpush1.bf16.msra.mxu0 %v3553
      %3577 = vmatprep.subr.bf16.mxu0 0
      %3578 = vmatpush1.bf16.msra.mxu0 %v3554
      %3579 = vmatprep.subr.bf16.mxu0 0
      %3580 = vmatpush1.bf16.msra.mxu0 0
      %3581 = vmatprep.subr.bf16.mxu0 0
      %3582 = vmatpush1.bf16.msra.mxu0 0
      %3583 = vmatprep.subr.bf16.mxu0 0
      %3584 = vmatpush1.bf16.msra.mxu0 0
      %3585 = vmatprep.subr.bf16.mxu0 0
      %3586 = vmatpush1.bf16.msra.mxu0 0
      %3587 = vmatprep.subr.bf16.mxu0 0
      %3588 = vmatpush1.bf16.msra.mxu0 0
      %3589 = vmatprep.subr.bf16.mxu0 0
      %3590 = vmatpush1.bf16.msra.mxu0 0
      %3591 = vmatprep.subr.bf16.mxu0 0
      %3592 = vmatpush1.bf16.msra.mxu0 0
      %3593 = vmatprep.subr.bf16.mxu0 0
      %3594 = vmatpush1.bf16.msra.mxu0 0
      %3595 = vmatprep.mubr.bf16.mxu0 0
      %3596 = vmatmul.mubr.bf16.gmra.mrb[0].mxu0 %v3469
      %v3597 = vpop.f32.mrb[0].mxu0
      %v3598 = vadd.f32 0.0, %v3597
      %v3599 = vpop.f32.mrb[0].mxu0
      %v3600 = vpop.f32.mrb[0].mxu0
      %v3601 = vadd.f32 0.0, %v3600
      %v3602 = vpop.f32.mrb[0].mxu0
      %3603 = vmatprep.mubr.bf16.mxu0 0
      %3604 = vmatmul.mubr.bf16.gmra.mrb[0].mxu0 %v3472
      %v3605 = vpop.f32.mrb[0].mxu0
      %v3606 = vadd.f32 0.0, %v3605
      %v3607 = vpop.f32.mrb[0].mxu0
      %v3608 = vpop.f32.mrb[0].mxu0
      %v3609 = vadd.f32 0.0, %v3608
      %v3610 = vpop.f32.mrb[0].mxu0
      %3611 = vmatprep.mubr.bf16.mxu0 0
      %3612 = vmatmul.mubr.bf16.gmra.mrb[0].mxu0 %v3475
      %v3613 = vpop.f32.mrb[0].mxu0
      %v3614 = vadd.f32 0.0, %v3613
      %v3615 = vpop.f32.mrb[0].mxu0
      %v3616 = vpop.f32.mrb[0].mxu0
      %v3617 = vadd.f32 0.0, %v3616
      %v3618 = vpop.f32.mrb[0].mxu0
      %3619 = vmatprep.mubr.bf16.mxu0 0
      %3620 = vmatmul.mubr.bf16.gmra.mrb[0].mxu0 %v3478
      %v3621 = vpop.f32.mrb[0].mxu0
      %v3622 = vadd.f32 0.0, %v3621
      %v3623 = vpop.f32.mrb[0].mxu0
      %v3624 = vpop.f32.mrb[0].mxu0
      %v3625 = vadd.f32 0.0, %v3624
      %v3626 = vpop.f32.mrb[0].mxu0
      %3627 = vmatprep.mubr.bf16.mxu0 0
      %3628 = vmatmul.mubr.bf16.gmra.mrb[0].mxu0 %v3481
      %v3629 = vpop.f32.mrb[0].mxu0
      %v3630 = vadd.f32 0.0, %v3629
      %v3631 = vpop.f32.mrb[0].mxu0
      %v3632 = vpop.f32.mrb[0].mxu0
      %v3633 = vadd.f32 0.0, %v3632
      %v3634 = vpop.f32.mrb[0].mxu0
      %3635 = vmatprep.mubr.bf16.mxu0 0
      %3636 = vmatmul.mubr.bf16.gmra.mrb[0].mxu0 %v3484
      %v3637 = vpop.f32.mrb[0].mxu0
      %v3638 = vadd.f32 0.0, %v3637
      %v3639 = vpop.f32.mrb[0].mxu0
      %v3640 = vpop.f32.mrb[0].mxu0
      %v3641 = vadd.f32 0.0, %v3640
      %v3642 = vpop.f32.mrb[0].mxu0
      %3643 = vmatprep.mubr.bf16.mxu0 0
      %3644 = vmatmul.mubr.bf16.gmra.mrb[0].mxu0 %v3487
      %v3645 = vpop.f32.mrb[0].mxu0
      %v3646 = vadd.f32 0.0, %v3645
      %v3647 = vpop.f32.mrb[0].mxu0
      %v3648 = vpop.f32.mrb[0].mxu0
      %v3649 = vadd.f32 0.0, %v3648
      %v3650 = vpop.f32.mrb[0].mxu0
      %3651 = vmatprep.mubr.bf16.mxu0 0
      %3652 = vmatmul.mubr.bf16.gmra.mrb[0].mxu0 %v3490
      %v3653 = vpop.f32.mrb[0].mxu0
      %v3654 = vadd.f32 0.0, %v3653
      %v3655 = vpop.f32.mrb[0].mxu0
      %v3656 = vpop.f32.mrb[0].mxu0
      %v3657 = vadd.f32 0.0, %v3656
      %v3658 = vpop.f32.mrb[0].mxu0
      %3659 = vdwg.mxu0
      %v3676 = vunpack.c.l.b16 %v3427
      %v3677 = vunpack.c.l.b16 %v3428
      %v3678 = vunpack.c.l.b16 %v3429
      %v3679 = vunpack.c.l.b16 %v3430
      %v3680 = vunpack.c.l.b16 %v3431
      %v3681 = vunpack.c.l.b16 %v3432
      %v3682 = vunpack.c.l.b16 %v3433
      %v3683 = vunpack.c.l.b16 %v3434
      %v3684 = vunpack.c.l.b16 %v3435
      %v3685 = vunpack.c.l.b16 %v3436
      %v3686 = vunpack.c.l.b16 %v3437
      %v3687 = vunpack.c.l.b16 %v3438
      %v3688 = vunpack.c.l.b16 %v3439
      %v3689 = vunpack.c.l.b16 %v3440
      %v3690 = vunpack.c.l.b16 %v3441
      %v3691 = vunpack.c.l.b16 %v3442
      %v3692 = vpack.c.b16 %v3677, %v3676
      %v3693 = vpack.c.b16 %v3679, %v3678
      %v3694 = vpack.c.b16 %v3681, %v3680
      %v3695 = vpack.c.b16 %v3683, %v3682
      %v3696 = vpack.c.b16 %v3685, %v3684
      %v3697 = vpack.c.b16 %v3687, %v3686
      %v3698 = vpack.c.b16 %v3689, %v3688
      %v3699 = vpack.c.b16 %v3691, %v3690
      %3708 = vmatprep.subr.bf16.mxu0 0
      %3709 = vmatpush1.bf16.msra.mxu0 %v3692
      %3710 = vmatprep.subr.bf16.mxu0 0
      %3711 = vmatpush1.bf16.msra.mxu0 %v3693
      %3712 = vmatprep.subr.bf16.mxu0 0
      %3713 = vmatpush1.bf16.msra.mxu0 %v3694
      %3714 = vmatprep.subr.bf16.mxu0 0
      %3715 = vmatpush1.bf16.msra.mxu0 %v3695
      %3716 = vmatprep.subr.bf16.mxu0 0
      %3717 = vmatpush1.bf16.msra.mxu0 %v3696
      %3718 = vmatprep.subr.bf16.mxu0 0
      %3719 = vmatpush1.bf16.msra.mxu0 %v3697
      %3720 = vmatprep.subr.bf16.mxu0 0
      %3721 = vmatpush1.bf16.msra.mxu0 %v3698
      %3722 = vmatprep.subr.bf16.mxu0 0
      %3723 = vmatpush1.bf16.msra.mxu0 %v3699
      %3724 = vmatprep.subr.bf16.mxu0 0
      %3725 = vmatpush1.bf16.msra.mxu0 0
      %3726 = vmatprep.subr.bf16.mxu0 0
      %3727 = vmatpush1.bf16.msra.mxu0 0
      %3728 = vmatprep.subr.bf16.mxu0 0
      %3729 = vmatpush1.bf16.msra.mxu0 0
      %3730 = vmatprep.subr.bf16.mxu0 0
      %3731 = vmatpush1.bf16.msra.mxu0 0
      %3732 = vmatprep.subr.bf16.mxu0 0
      %3733 = vmatpush1.bf16.msra.mxu0 0
      %3734 = vmatprep.subr.bf16.mxu0 0
      %3735 = vmatpush1.bf16.msra.mxu0 0
      %3736 = vmatprep.subr.bf16.mxu0 0
      %3737 = vmatpush1.bf16.msra.mxu0 0
      %3738 = vmatprep.subr.bf16.mxu0 0
      %3739 = vmatpush1.bf16.msra.mxu0 0
      %3740 = vmatprep.mubr.bf16.mxu0 0
      %3741 = vmatmul.mubr.bf16.gmra.mrb[0].mxu0 %v3299
      %v3742 = vpop.f32.mrb[0].mxu0
      %v3743 = vadd.f32 %v3598, %v3742
      %v3744 = vpop.f32.mrb[0].mxu0
      %v3745 = vpop.f32.mrb[0].mxu0
      %v3746 = vadd.f32 %v3601, %v3745
      %v3747 = vpop.f32.mrb[0].mxu0
      %3748 = vmatprep.mubr.bf16.mxu0 0
      %3749 = vmatmul.mubr.bf16.gmra.mrb[0].mxu0 %v3316
      %v3750 = vpop.f32.mrb[0].mxu0
      %v3751 = vadd.f32 %v3606, %v3750
      %v3752 = vpop.f32.mrb[0].mxu0
      %v3753 = vpop.f32.mrb[0].mxu0
      %v3754 = vadd.f32 %v3609, %v3753
      %v3755 = vpop.f32.mrb[0].mxu0
      %3756 = vmatprep.mubr.bf16.mxu0 0
      %3757 = vmatmul.mubr.bf16.gmra.mrb[0].mxu0 %v3333
      %v3758 = vpop.f32.mrb[0].mxu0
      %v3759 = vadd.f32 %v3614, %v3758
      %v3760 = vpop.f32.mrb[0].mxu0
      %v3761 = vpop.f32.mrb[0].mxu0
      %v3762 = vadd.f32 %v3617, %v3761
      %v3763 = vpop.f32.mrb[0].mxu0
      %3764 = vmatprep.mubr.bf16.mxu0 0
      %3765 = vmatmul.mubr.bf16.gmra.mrb[0].mxu0 %v3350
      %v3766 = vpop.f32.mrb[0].mxu0
      %v3767 = vadd.f32 %v3622, %v3766
      %v3768 = vpop.f32.mrb[0].mxu0
      %v3769 = vpop.f32.mrb[0].mxu0
      %v3770 = vadd.f32 %v3625, %v3769
      %v3771 = vpop.f32.mrb[0].mxu0
      %3772 = vmatprep.mubr.bf16.mxu0 0
      %3773 = vmatmul.mubr.bf16.gmra.mrb[0].mxu0 %v3367
      %v3774 = vpop.f32.mrb[0].mxu0
      %v3775 = vadd.f32 %v3630, %v3774
      %v3776 = vpop.f32.mrb[0].mxu0
      %v3777 = vpop.f32.mrb[0].mxu0
      %v3778 = vadd.f32 %v3633, %v3777
      %v3779 = vpop.f32.mrb[0].mxu0
      %3780 = vmatprep.mubr.bf16.mxu0 0
      %3781 = vmatmul.mubr.bf16.gmra.mrb[0].mxu0 %v3384
      %v3782 = vpop.f32.mrb[0].mxu0
      %v3783 = vadd.f32 %v3638, %v3782
      %v3784 = vpop.f32.mrb[0].mxu0
      %v3785 = vpop.f32.mrb[0].mxu0
      %v3786 = vadd.f32 %v3641, %v3785
      %v3787 = vpop.f32.mrb[0].mxu0
      %3788 = vmatprep.mubr.bf16.mxu0 0
      %3789 = vmatmul.mubr.bf16.gmra.mrb[0].mxu0 %v3401
      %v3790 = vpop.f32.mrb[0].mxu0
      %v3791 = vadd.f32 %v3646, %v3790
      %v3792 = vpop.f32.mrb[0].mxu0
      %v3793 = vpop.f32.mrb[0].mxu0
      %v3794 = vadd.f32 %v3649, %v3793
      %v3795 = vpop.f32.mrb[0].mxu0
      %3796 = vmatprep.mubr.bf16.mxu0 0
      %3797 = vmatmul.mubr.bf16.gmra.mrb[0].mxu0 %v3418
      %v3798 = vpop.f32.mrb[0].mxu0
      %v3799 = vadd.f32 %v3654, %v3798
      %v3800 = vpop.f32.mrb[0].mxu0
      %v3801 = vpop.f32.mrb[0].mxu0
      %v3802 = vadd.f32 %v3657, %v3801
      %v3803 = vpop.f32.mrb[0].mxu0
      %3804 = vdwg.mxu0
      %v3805 = vld [vmem:[%s3266 + $0x8] sm:$0x1f]
      %v3806 = vld [vmem:[%s3266 + $0x18] sm:$0x1f]
      %v3807 = vld [vmem:[%s3266 + $0x28] sm:$0x1f]
      %v3808 = vld [vmem:[%s3266 + $0x38] sm:$0x1f]
      %v3809 = vld [vmem:[%s3266 + $0x48] sm:$0x1f]
      %v3810 = vld [vmem:[%s3266 + $0x58] sm:$0x1f]
      %v3811 = vld [vmem:[%s3266 + $0x68] sm:$0x1f]
      %v3812 = vld [vmem:[%s3266 + $0x78] sm:$0x1f]
      %v3814 = vshrl.u32 %v3443, 16
      %v3816 = vrot.slane %v3814, 4
      %v3817 = vshll.u32 %v3443, 16
      %v3819 = vrot.slane %v3817, 5
      %v3820 = vor.u32 %v3816, %v3819
      %v3822 = vshrl.u32 %v3805, 16
      %v3824 = vrot.slane %v3822, 4
      %v3825 = vshll.u32 %v3805, 16
      %v3827 = vrot.slane %v3825, 5
      %v3828 = vor.u32 %v3824, %v3827
      %v3829 = vsel %vm1062, %v3820, %v3828
      %v3831 = vshrl.u32 %v3444, 16
      %v3833 = vrot.slane %v3831, 4
      %v3834 = vshll.u32 %v3444, 16
      %v3836 = vrot.slane %v3834, 5
      %v3837 = vor.u32 %v3833, %v3836
      %v3839 = vshrl.u32 %v3806, 16
      %v3841 = vrot.slane %v3839, 4
      %v3842 = vshll.u32 %v3806, 16
      %v3844 = vrot.slane %v3842, 5
      %v3845 = vor.u32 %v3841, %v3844
      %v3846 = vsel %vm1062, %v3837, %v3845
      %v3848 = vshrl.u32 %v3445, 16
      %v3850 = vrot.slane %v3848, 4
      %v3851 = vshll.u32 %v3445, 16
      %v3853 = vrot.slane %v3851, 5
      %v3854 = vor.u32 %v3850, %v3853
      %v3856 = vshrl.u32 %v3807, 16
      %v3858 = vrot.slane %v3856, 4
      %v3859 = vshll.u32 %v3807, 16
      %v3861 = vrot.slane %v3859, 5
      %v3862 = vor.u32 %v3858, %v3861
      %v3863 = vsel %vm1062, %v3854, %v3862
      %v3865 = vshrl.u32 %v3446, 16
      %v3867 = vrot.slane %v3865, 4
      %v3868 = vshll.u32 %v3446, 16
      %v3870 = vrot.slane %v3868, 5
      %v3871 = vor.u32 %v3867, %v3870
      %v3873 = vshrl.u32 %v3808, 16
      %v3875 = vrot.slane %v3873, 4
      %v3876 = vshll.u32 %v3808, 16
      %v3878 = vrot.slane %v3876, 5
      %v3879 = vor.u32 %v3875, %v3878
      %v3880 = vsel %vm1062, %v3871, %v3879
      %v3882 = vshrl.u32 %v3447, 16
      %v3884 = vrot.slane %v3882, 4
      %v3885 = vshll.u32 %v3447, 16
      %v3887 = vrot.slane %v3885, 5
      %v3888 = vor.u32 %v3884, %v3887
      %v3890 = vshrl.u32 %v3809, 16
      %v3892 = vrot.slane %v3890, 4
      %v3893 = vshll.u32 %v3809, 16
      %v3895 = vrot.slane %v3893, 5
      %v3896 = vor.u32 %v3892, %v3895
      %v3897 = vsel %vm1062, %v3888, %v3896
      %v3899 = vshrl.u32 %v3448, 16
      %v3901 = vrot.slane %v3899, 4
      %v3902 = vshll.u32 %v3448, 16
      %v3904 = vrot.slane %v3902, 5
      %v3905 = vor.u32 %v3901, %v3904
      %v3907 = vshrl.u32 %v3810, 16
      %v3909 = vrot.slane %v3907, 4
      %v3910 = vshll.u32 %v3810, 16
      %v3912 = vrot.slane %v3910, 5
      %v3913 = vor.u32 %v3909, %v3912
      %v3914 = vsel %vm1062, %v3905, %v3913
      %v3916 = vshrl.u32 %v3449, 16
      %v3918 = vrot.slane %v3916, 4
      %v3919 = vshll.u32 %v3449, 16
      %v3921 = vrot.slane %v3919, 5
      %v3922 = vor.u32 %v3918, %v3921
      %v3924 = vshrl.u32 %v3811, 16
      %v3926 = vrot.slane %v3924, 4
      %v3927 = vshll.u32 %v3811, 16
      %v3929 = vrot.slane %v3927, 5
      %v3930 = vor.u32 %v3926, %v3929
      %v3931 = vsel %vm1062, %v3922, %v3930
      %v3933 = vshrl.u32 %v3450, 16
      %v3935 = vrot.slane %v3933, 4
      %v3936 = vshll.u32 %v3450, 16
      %v3938 = vrot.slane %v3936, 5
      %v3939 = vor.u32 %v3935, %v3938
      %v3941 = vshrl.u32 %v3812, 16
      %v3943 = vrot.slane %v3941, 4
      %v3944 = vshll.u32 %v3812, 16
      %v3946 = vrot.slane %v3944, 5
      %v3947 = vor.u32 %v3943, %v3946
      %v3948 = vsel %vm1062, %v3939, %v3947
      %v3957 = vld [vmem:[%s1207] sm:$0xf]
      %v3958 = vld [vmem:[%s1207 + $0x4] sm:$0xf]
      %v3959 = vld [vmem:[%s1207 + $0x8] sm:$0xf]
      %v3960 = vld [vmem:[%s1207 + $0xc] sm:$0xf]
      %v3961 = vld [vmem:[%s1207 + $0x10] sm:$0xf]
      %v3962 = vld [vmem:[%s1207 + $0x14] sm:$0xf]
      %v3963 = vld [vmem:[%s1207 + $0x18] sm:$0xf]
      %v3964 = vld [vmem:[%s1207 + $0x1c] sm:$0xf]
      %v3965 = vld [vmem:[%s1207 + $0x20] sm:$0xf]
      %v3966 = vld [vmem:[%s1207 + $0x24] sm:$0xf]
      %v3967 = vld [vmem:[%s1207 + $0x28] sm:$0xf]
      %v3968 = vld [vmem:[%s1207 + $0x2c] sm:$0xf]
      %v3969 = vld [vmem:[%s1207 + $0x30] sm:$0xf]
      %v3970 = vld [vmem:[%s1207 + $0x34] sm:$0xf]
      %v3971 = vld [vmem:[%s1207 + $0x38] sm:$0xf]
      %v3972 = vld [vmem:[%s1207 + $0x3c] sm:$0xf]
      %v3989 = vunpack.c.l.b16 %v3957
      %v3990 = vunpack.c.l.b16 %v3958
      %v3991 = vunpack.c.l.b16 %v3959
      %v3992 = vunpack.c.l.b16 %v3960
      %v3993 = vunpack.c.l.b16 %v3961
      %v3994 = vunpack.c.l.b16 %v3962
      %v3995 = vunpack.c.l.b16 %v3963
      %v3996 = vunpack.c.l.b16 %v3964
      %v3997 = vunpack.c.l.b16 %v3965
      %v3998 = vunpack.c.l.b16 %v3966
      %v3999 = vunpack.c.l.b16 %v3967
      %v4000 = vunpack.c.l.b16 %v3968
      %v4001 = vunpack.c.l.b16 %v3969
      %v4002 = vunpack.c.l.b16 %v3970
      %v4003 = vunpack.c.l.b16 %v3971
      %v4004 = vunpack.c.l.b16 %v3972
      %v4005 = vpack.c.b16 %v3990, %v3989
      %v4006 = vpack.c.b16 %v3992, %v3991
      %v4007 = vpack.c.b16 %v3994, %v3993
      %v4008 = vpack.c.b16 %v3996, %v3995
      %v4009 = vpack.c.b16 %v3998, %v3997
      %v4010 = vpack.c.b16 %v4000, %v3999
      %v4011 = vpack.c.b16 %v4002, %v4001
      %v4012 = vpack.c.b16 %v4004, %v4003
      %4021 = vmatprep.subr.bf16.mxu0 0
      %4022 = vmatpush1.bf16.msra.mxu0 %v4005
      %4023 = vmatprep.subr.bf16.mxu0 0
      %4024 = vmatpush1.bf16.msra.mxu0 %v4006
      %4025 = vmatprep.subr.bf16.mxu0 0
      %4026 = vmatpush1.bf16.msra.mxu0 %v4007
      %4027 = vmatprep.subr.bf16.mxu0 0
      %4028 = vmatpush1.bf16.msra.mxu0 %v4008
      %4029 = vmatprep.subr.bf16.mxu0 0
      %4030 = vmatpush1.bf16.msra.mxu0 %v4009
      %4031 = vmatprep.subr.bf16.mxu0 0
      %4032 = vmatpush1.bf16.msra.mxu0 %v4010
      %4033 = vmatprep.subr.bf16.mxu0 0
      %4034 = vmatpush1.bf16.msra.mxu0 %v4011
      %4035 = vmatprep.subr.bf16.mxu0 0
      %4036 = vmatpush1.bf16.msra.mxu0 %v4012
      %4037 = vmatprep.subr.bf16.mxu0 0
      %4038 = vmatpush1.bf16.msra.mxu0 0
      %4039 = vmatprep.subr.bf16.mxu0 0
      %4040 = vmatpush1.bf16.msra.mxu0 0
      %4041 = vmatprep.subr.bf16.mxu0 0
      %4042 = vmatpush1.bf16.msra.mxu0 0
      %4043 = vmatprep.subr.bf16.mxu0 0
      %4044 = vmatpush1.bf16.msra.mxu0 0
      %4045 = vmatprep.subr.bf16.mxu0 0
      %4046 = vmatpush1.bf16.msra.mxu0 0
      %4047 = vmatprep.subr.bf16.mxu0 0
      %4048 = vmatpush1.bf16.msra.mxu0 0
      %4049 = vmatprep.subr.bf16.mxu0 0
      %4050 = vmatpush1.bf16.msra.mxu0 0
      %4051 = vmatprep.subr.bf16.mxu0 0
      %4052 = vmatpush1.bf16.msra.mxu0 0
      %4053 = vmatprep.mubr.bf16.mxu0 0
      %4054 = vmatmul.mubr.bf16.gmra.mrb[0].mxu0 %v3829
      %v4055 = vpop.f32.mrb[0].mxu0
      %v4056 = vadd.f32 0.0, %v4055
      %v4057 = vpop.f32.mrb[0].mxu0
      %v4058 = vpop.f32.mrb[0].mxu0
      %v4059 = vadd.f32 0.0, %v4058
      %v4060 = vpop.f32.mrb[0].mxu0
      %4061 = vmatprep.mubr.bf16.mxu0 0
      %4062 = vmatmul.mubr.bf16.gmra.mrb[0].mxu0 %v3846
      %v4063 = vpop.f32.mrb[0].mxu0
      %v4064 = vadd.f32 0.0, %v4063
      %v4065 = vpop.f32.mrb[0].mxu0
      %v4066 = vpop.f32.mrb[0].mxu0
      %v4067 = vadd.f32 0.0, %v4066
      %v4068 = vpop.f32.mrb[0].mxu0
      %4069 = vmatprep.mubr.bf16.mxu0 0
      %4070 = vmatmul.mubr.bf16.gmra.mrb[0].mxu0 %v3863
      %v4071 = vpop.f32.mrb[0].mxu0
      %v4072 = vadd.f32 0.0, %v4071
      %v4073 = vpop.f32.mrb[0].mxu0
      %v4074 = vpop.f32.mrb[0].mxu0
      %v4075 = vadd.f32 0.0, %v4074
      %v4076 = vpop.f32.mrb[0].mxu0
      %4077 = vmatprep.mubr.bf16.mxu0 0
      %4078 = vmatmul.mubr.bf16.gmra.mrb[0].mxu0 %v3880
      %v4079 = vpop.f32.mrb[0].mxu0
      %v4080 = vadd.f32 0.0, %v4079
      %v4081 = vpop.f32.mrb[0].mxu0
      %v4082 = vpop.f32.mrb[0].mxu0
      %v4083 = vadd.f32 0.0, %v4082
      %v4084 = vpop.f32.mrb[0].mxu0
      %4085 = vmatprep.mubr.bf16.mxu0 0
      %4086 = vmatmul.mubr.bf16.gmra.mrb[0].mxu0 %v3897
      %v4087 = vpop.f32.mrb[0].mxu0
      %v4088 = vadd.f32 0.0, %v4087
      %v4089 = vpop.f32.mrb[0].mxu0
      %v4090 = vpop.f32.mrb[0].mxu0
      %v4091 = vadd.f32 0.0, %v4090
      %v4092 = vpop.f32.mrb[0].mxu0
      %4093 = vmatprep.mubr.bf16.mxu0 0
      %4094 = vmatmul.mubr.bf16.gmra.mrb[0].mxu0 %v3914
      %v4095 = vpop.f32.mrb[0].mxu0
      %v4096 = vadd.f32 0.0, %v4095
      %v4097 = vpop.f32.mrb[0].mxu0
      %v4098 = vpop.f32.mrb[0].mxu0
      %v4099 = vadd.f32 0.0, %v4098
      %v4100 = vpop.f32.mrb[0].mxu0
      %4101 = vmatprep.mubr.bf16.mxu0 0
      %4102 = vmatmul.mubr.bf16.gmra.mrb[0].mxu0 %v3931
      %v4103 = vpop.f32.mrb[0].mxu0
      %v4104 = vadd.f32 0.0, %v4103
      %v4105 = vpop.f32.mrb[0].mxu0
      %v4106 = vpop.f32.mrb[0].mxu0
      %v4107 = vadd.f32 0.0, %v4106
      %v4108 = vpop.f32.mrb[0].mxu0
      %4109 = vmatprep.mubr.bf16.mxu0 0
      %4110 = vmatmul.mubr.bf16.gmra.mrb[0].mxu0 %v3948
      %v4111 = vpop.f32.mrb[0].mxu0
      %v4112 = vadd.f32 0.0, %v4111
      %v4113 = vpop.f32.mrb[0].mxu0
      %v4114 = vpop.f32.mrb[0].mxu0
      %v4115 = vadd.f32 0.0, %v4114
      %v4116 = vpop.f32.mrb[0].mxu0
      %4117 = vdwg.mxu0
      %v4118 = vadd.f32 %v3743, %v4056
      %v4119 = vadd.f32 %v3746, %v4059
      %v4120 = vadd.f32 %v3751, %v4064
      %v4121 = vadd.f32 %v3754, %v4067
      %v4122 = vadd.f32 %v3759, %v4072
      %v4123 = vadd.f32 %v3762, %v4075
      %v4124 = vadd.f32 %v3767, %v4080
      %v4125 = vadd.f32 %v3770, %v4083
      %v4126 = vadd.f32 %v3775, %v4088
      %v4127 = vadd.f32 %v3778, %v4091
      %v4128 = vadd.f32 %v3783, %v4096
      %v4129 = vadd.f32 %v3786, %v4099
      %v4130 = vadd.f32 %v3791, %v4104
      %v4131 = vadd.f32 %v3794, %v4107
      %v4132 = vadd.f32 %v3799, %v4112
      %v4133 = vadd.f32 %v3802, %v4115
      %s4134 = scalar_lea.vmem [#allocation2], 144
      %v4135 = vld [vmem:[%s4134] sm:$0xf8]
      %v4136 = vld [vmem:[%s4134 + $0x8] sm:$0xf]
      %v4137 = vld [vmem:[%s4134 + $0x10] sm:$0xf8]
      %v4138 = vld [vmem:[%s4134 + $0x18] sm:$0xf]
      %v4139 = vld [vmem:[%s4134 + $0x20] sm:$0xf8]
      %v4140 = vld [vmem:[%s4134 + $0x28] sm:$0xf]
      %v4141 = vld [vmem:[%s4134 + $0x30] sm:$0xf8]
      %v4142 = vld [vmem:[%s4134 + $0x38] sm:$0xf]
      %v4143 = vld [vmem:[%s4134 + $0x40] sm:$0xf8]
      %v4144 = vld [vmem:[%s4134 + $0x48] sm:$0xf]
      %v4145 = vld [vmem:[%s4134 + $0x50] sm:$0xf8]
      %v4146 = vld [vmem:[%s4134 + $0x58] sm:$0xf]
      %v4147 = vld [vmem:[%s4134 + $0x60] sm:$0xf8]
      %v4148 = vld [vmem:[%s4134 + $0x68] sm:$0xf]
      %v4149 = vld [vmem:[%s4134 + $0x70] sm:$0xf8]
      %v4150 = vld [vmem:[%s4134 + $0x78] sm:$0xf]
      %v4152 = vshrl.u32 %v4135, 16
      %v4154 = vrot.slane %v4152, 3
      %v4155 = vshll.u32 %v4135, 16
      %v4157 = vrot.slane %v4155, 4
      %v4158 = vor.u32 %v4154, %v4157
      %v4160 = vshrl.u32 %v4136, 16
      %v4162 = vrot.slane %v4160, 3
      %v4163 = vshll.u32 %v4136, 16
      %v4165 = vrot.slane %v4163, 4
      %v4166 = vor.u32 %v4162, %v4165
      %v4167 = vsel %vm529, %v4158, %v4166
      %v4169 = vshrl.u32 %v4137, 16
      %v4171 = vrot.slane %v4169, 3
      %v4172 = vshll.u32 %v4137, 16
      %v4174 = vrot.slane %v4172, 4
      %v4175 = vor.u32 %v4171, %v4174
      %v4177 = vshrl.u32 %v4138, 16
      %v4179 = vrot.slane %v4177, 3
      %v4180 = vshll.u32 %v4138, 16
      %v4182 = vrot.slane %v4180, 4
      %v4183 = vor.u32 %v4179, %v4182
      %v4184 = vsel %vm529, %v4175, %v4183
      %v4186 = vshrl.u32 %v4139, 16
      %v4188 = vrot.slane %v4186, 3
      %v4189 = vshll.u32 %v4139, 16
      %v4191 = vrot.slane %v4189, 4
      %v4192 = vor.u32 %v4188, %v4191
      %v4194 = vshrl.u32 %v4140, 16
      %v4196 = vrot.slane %v4194, 3
      %v4197 = vshll.u32 %v4140, 16
      %v4199 = vrot.slane %v4197, 4
      %v4200 = vor.u32 %v4196, %v4199
      %v4201 = vsel %vm529, %v4192, %v4200
      %v4203 = vshrl.u32 %v4141, 16
      %v4205 = vrot.slane %v4203, 3
      %v4206 = vshll.u32 %v4141, 16
      %v4208 = vrot.slane %v4206, 4
      %v4209 = vor.u32 %v4205, %v4208
      %v4211 = vshrl.u32 %v4142, 16
      %v4213 = vrot.slane %v4211, 3
      %v4214 = vshll.u32 %v4142, 16
      %v4216 = vrot.slane %v4214, 4
      %v4217 = vor.u32 %v4213, %v4216
      %v4218 = vsel %vm529, %v4209, %v4217
      %v4220 = vshrl.u32 %v4143, 16
      %v4222 = vrot.slane %v4220, 3
      %v4223 = vshll.u32 %v4143, 16
      %v4225 = vrot.slane %v4223, 4
      %v4226 = vor.u32 %v4222, %v4225
      %v4228 = vshrl.u32 %v4144, 16
      %v4230 = vrot.slane %v4228, 3
      %v4231 = vshll.u32 %v4144, 16
      %v4233 = vrot.slane %v4231, 4
      %v4234 = vor.u32 %v4230, %v4233
      %v4235 = vsel %vm529, %v4226, %v4234
      %v4237 = vshrl.u32 %v4145, 16
      %v4239 = vrot.slane %v4237, 3
      %v4240 = vshll.u32 %v4145, 16
      %v4242 = vrot.slane %v4240, 4
      %v4243 = vor.u32 %v4239, %v4242
      %v4245 = vshrl.u32 %v4146, 16
      %v4247 = vrot.slane %v4245, 3
      %v4248 = vshll.u32 %v4146, 16
      %v4250 = vrot.slane %v4248, 4
      %v4251 = vor.u32 %v4247, %v4250
      %v4252 = vsel %vm529, %v4243, %v4251
      %v4254 = vshrl.u32 %v4147, 16
      %v4256 = vrot.slane %v4254, 3
      %v4257 = vshll.u32 %v4147, 16
      %v4259 = vrot.slane %v4257, 4
      %v4260 = vor.u32 %v4256, %v4259
      %v4262 = vshrl.u32 %v4148, 16
      %v4264 = vrot.slane %v4262, 3
      %v4265 = vshll.u32 %v4148, 16
      %v4267 = vrot.slane %v4265, 4
      %v4268 = vor.u32 %v4264, %v4267
      %v4269 = vsel %vm529, %v4260, %v4268
      %v4271 = vshrl.u32 %v4149, 16
      %v4273 = vrot.slane %v4271, 3
      %v4274 = vshll.u32 %v4149, 16
      %v4276 = vrot.slane %v4274, 4
      %v4277 = vor.u32 %v4273, %v4276
      %v4279 = vshrl.u32 %v4150, 16
      %v4281 = vrot.slane %v4279, 3
      %v4282 = vshll.u32 %v4150, 16
      %v4284 = vrot.slane %v4282, 4
      %v4285 = vor.u32 %v4281, %v4284
      %v4286 = vsel %vm529, %v4277, %v4285
      %v4295 = vld [vmem:[%s1545] sm:$0xf]
      %v4296 = vld [vmem:[%s1545 + $0x4] sm:$0xf]
      %v4297 = vld [vmem:[%s1545 + $0x8] sm:$0xf]
      %v4298 = vld [vmem:[%s1545 + $0xc] sm:$0xf]
      %v4299 = vld [vmem:[%s1545 + $0x10] sm:$0xf]
      %v4300 = vld [vmem:[%s1545 + $0x14] sm:$0xf]
      %v4301 = vld [vmem:[%s1545 + $0x18] sm:$0xf]
      %v4302 = vld [vmem:[%s1545 + $0x1c] sm:$0xf]
      %v4303 = vld [vmem:[%s1545 + $0x20] sm:$0xf]
      %v4304 = vld [vmem:[%s1545 + $0x24] sm:$0xf]
      %v4305 = vld [vmem:[%s1545 + $0x28] sm:$0xf]
      %v4306 = vld [vmem:[%s1545 + $0x2c] sm:$0xf]
      %v4307 = vld [vmem:[%s1545 + $0x30] sm:$0xf]
      %v4308 = vld [vmem:[%s1545 + $0x34] sm:$0xf]
      %v4309 = vld [vmem:[%s1545 + $0x38] sm:$0xf]
      %v4310 = vld [vmem:[%s1545 + $0x3c] sm:$0xf]
      %v4327 = vunpack.c.l.b16 %v4295
      %v4328 = vunpack.c.l.b16 %v4296
      %v4329 = vunpack.c.l.b16 %v4297
      %v4330 = vunpack.c.l.b16 %v4298
      %v4331 = vunpack.c.l.b16 %v4299
      %v4332 = vunpack.c.l.b16 %v4300
      %v4333 = vunpack.c.l.b16 %v4301
      %v4334 = vunpack.c.l.b16 %v4302
      %v4335 = vunpack.c.l.b16 %v4303
      %v4336 = vunpack.c.l.b16 %v4304
      %v4337 = vunpack.c.l.b16 %v4305
      %v4338 = vunpack.c.l.b16 %v4306
      %v4339 = vunpack.c.l.b16 %v4307
      %v4340 = vunpack.c.l.b16 %v4308
      %v4341 = vunpack.c.l.b16 %v4309
      %v4342 = vunpack.c.l.b16 %v4310
      %v4343 = vpack.c.b16 %v4328, %v4327
      %v4344 = vpack.c.b16 %v4330, %v4329
      %v4345 = vpack.c.b16 %v4332, %v4331
      %v4346 = vpack.c.b16 %v4334, %v4333
      %v4347 = vpack.c.b16 %v4336, %v4335
      %v4348 = vpack.c.b16 %v4338, %v4337
      %v4349 = vpack.c.b16 %v4340, %v4339
      %v4350 = vpack.c.b16 %v4342, %v4341
      %4359 = vmatprep.subr.bf16.mxu0 0
      %4360 = vmatpush1.bf16.msra.mxu0 %v4343
      %4361 = vmatprep.subr.bf16.mxu0 0
      %4362 = vmatpush1.bf16.msra.mxu0 %v4344
      %4363 = vmatprep.subr.bf16.mxu0 0
      %4364 = vmatpush1.bf16.msra.mxu0 %v4345
      %4365 = vmatprep.subr.bf16.mxu0 0
      %4366 = vmatpush1.bf16.msra.mxu0 %v4346
      %4367 = vmatprep.subr.bf16.mxu0 0
      %4368 = vmatpush1.bf16.msra.mxu0 %v4347
      %4369 = vmatprep.subr.bf16.mxu0 0
      %4370 = vmatpush1.bf16.msra.mxu0 %v4348
      %4371 = vmatprep.subr.bf16.mxu0 0
      %4372 = vmatpush1.bf16.msra.mxu0 %v4349
      %4373 = vmatprep.subr.bf16.mxu0 0
      %4374 = vmatpush1.bf16.msra.mxu0 %v4350
      %4375 = vmatprep.subr.bf16.mxu0 0
      %4376 = vmatpush1.bf16.msra.mxu0 0
      %4377 = vmatprep.subr.bf16.mxu0 0
      %4378 = vmatpush1.bf16.msra.mxu0 0
      %4379 = vmatprep.subr.bf16.mxu0 0
      %4380 = vmatpush1.bf16.msra.mxu0 0
      %4381 = vmatprep.subr.bf16.mxu0 0
      %4382 = vmatpush1.bf16.msra.mxu0 0
      %4383 = vmatprep.subr.bf16.mxu0 0
      %4384 = vmatpush1.bf16.msra.mxu0 0
      %4385 = vmatprep.subr.bf16.mxu0 0
      %4386 = vmatpush1.bf16.msra.mxu0 0
      %4387 = vmatprep.subr.bf16.mxu0 0
      %4388 = vmatpush1.bf16.msra.mxu0 0
      %4389 = vmatprep.subr.bf16.mxu0 0
      %4390 = vmatpush1.bf16.msra.mxu0 0
      %4391 = vmatprep.mubr.bf16.mxu0 0
      %4392 = vmatmul.mubr.bf16.gmra.mrb[0].mxu0 %v4167
      %v4393 = vpop.f32.mrb[0].mxu0
      %v4394 = vadd.f32 0.0, %v4393
      %v4395 = vpop.f32.mrb[0].mxu0
      %v4396 = vpop.f32.mrb[0].mxu0
      %v4397 = vadd.f32 0.0, %v4396
      %v4398 = vpop.f32.mrb[0].mxu0
      %4399 = vmatprep.mubr.bf16.mxu0 0
      %4400 = vmatmul.mubr.bf16.gmra.mrb[0].mxu0 %v4184
      %v4401 = vpop.f32.mrb[0].mxu0
      %v4402 = vadd.f32 0.0, %v4401
      %v4403 = vpop.f32.mrb[0].mxu0
      %v4404 = vpop.f32.mrb[0].mxu0
      %v4405 = vadd.f32 0.0, %v4404
      %v4406 = vpop.f32.mrb[0].mxu0
      %4407 = vmatprep.mubr.bf16.mxu0 0
      %4408 = vmatmul.mubr.bf16.gmra.mrb[0].mxu0 %v4201
      %v4409 = vpop.f32.mrb[0].mxu0
      %v4410 = vadd.f32 0.0, %v4409
      %v4411 = vpop.f32.mrb[0].mxu0
      %v4412 = vpop.f32.mrb[0].mxu0
      %v4413 = vadd.f32 0.0, %v4412
      %v4414 = vpop.f32.mrb[0].mxu0
      %4415 = vmatprep.mubr.bf16.mxu0 0
      %4416 = vmatmul.mubr.bf16.gmra.mrb[0].mxu0 %v4218
      %v4417 = vpop.f32.mrb[0].mxu0
      %v4418 = vadd.f32 0.0, %v4417
      %v4419 = vpop.f32.mrb[0].mxu0
      %v4420 = vpop.f32.mrb[0].mxu0
      %v4421 = vadd.f32 0.0, %v4420
      %v4422 = vpop.f32.mrb[0].mxu0
      %4423 = vmatprep.mubr.bf16.mxu0 0
      %4424 = vmatmul.mubr.bf16.gmra.mrb[0].mxu0 %v4235
      %v4425 = vpop.f32.mrb[0].mxu0
      %v4426 = vadd.f32 0.0, %v4425
      %v4427 = vpop.f32.mrb[0].mxu0
      %v4428 = vpop.f32.mrb[0].mxu0
      %v4429 = vadd.f32 0.0, %v4428
      %v4430 = vpop.f32.mrb[0].mxu0
      %4431 = vmatprep.mubr.bf16.mxu0 0
      %4432 = vmatmul.mubr.bf16.gmra.mrb[0].mxu0 %v4252
      %v4433 = vpop.f32.mrb[0].mxu0
      %v4434 = vadd.f32 0.0, %v4433
      %v4435 = vpop.f32.mrb[0].mxu0
      %v4436 = vpop.f32.mrb[0].mxu0
      %v4437 = vadd.f32 0.0, %v4436
      %v4438 = vpop.f32.mrb[0].mxu0
      %4439 = vmatprep.mubr.bf16.mxu0 0
      %4440 = vmatmul.mubr.bf16.gmra.mrb[0].mxu0 %v4269
      %v4441 = vpop.f32.mrb[0].mxu0
      %v4442 = vadd.f32 0.0, %v4441
      %v4443 = vpop.f32.mrb[0].mxu0
      %v4444 = vpop.f32.mrb[0].mxu0
      %v4445 = vadd.f32 0.0, %v4444
      %v4446 = vpop.f32.mrb[0].mxu0
      %4447 = vmatprep.mubr.bf16.mxu0 0
      %4448 = vmatmul.mubr.bf16.gmra.mrb[0].mxu0 %v4286
      %v4449 = vpop.f32.mrb[0].mxu0
      %v4450 = vadd.f32 0.0, %v4449
      %v4451 = vpop.f32.mrb[0].mxu0
      %v4452 = vpop.f32.mrb[0].mxu0
      %v4453 = vadd.f32 0.0, %v4452
      %v4454 = vpop.f32.mrb[0].mxu0
      %4455 = vdwg.mxu0
      %v4456 = vadd.f32 %v4118, %v4394
      %v4457 = vadd.f32 %v4119, %v4397
      %v4458 = vadd.f32 %v4120, %v4402
      %v4459 = vadd.f32 %v4121, %v4405
      %v4460 = vadd.f32 %v4122, %v4410
      %v4461 = vadd.f32 %v4123, %v4413
      %v4462 = vadd.f32 %v4124, %v4418
      %v4463 = vadd.f32 %v4125, %v4421
      %v4464 = vadd.f32 %v4126, %v4426
      %v4465 = vadd.f32 %v4127, %v4429
      %v4466 = vadd.f32 %v4128, %v4434
      %v4467 = vadd.f32 %v4129, %v4437
      %v4468 = vadd.f32 %v4130, %v4442
      %v4469 = vadd.f32 %v4131, %v4445
      %v4470 = vadd.f32 %v4132, %v4450
      %v4471 = vadd.f32 %v4133, %v4453
      %v4472 = vld [vmem:[%s4134] sm:$0xf0]
      %v4473 = vld [vmem:[%s4134 + $0x10] sm:$0xf0]
      %v4474 = vld [vmem:[%s4134 + $0x20] sm:$0xf0]
      %v4475 = vld [vmem:[%s4134 + $0x30] sm:$0xf0]
      %v4476 = vld [vmem:[%s4134 + $0x40] sm:$0xf0]
      %v4477 = vld [vmem:[%s4134 + $0x50] sm:$0xf0]
      %v4478 = vld [vmem:[%s4134 + $0x60] sm:$0xf0]
      %v4479 = vld [vmem:[%s4134 + $0x70] sm:$0xf0]
      %v4496 = vrot.slane %v4472, 4
      %v4497 = vrot.slane %v4136, 4
      %v4498 = vsel %vm714, %v4496, %v4497
      %v4499 = vrot.slane %v4473, 4
      %v4500 = vrot.slane %v4138, 4
      %v4501 = vsel %vm714, %v4499, %v4500
      %v4502 = vrot.slane %v4474, 4
      %v4503 = vrot.slane %v4140, 4
      %v4504 = vsel %vm714, %v4502, %v4503
      %v4505 = vrot.slane %v4475, 4
      %v4506 = vrot.slane %v4142, 4
      %v4507 = vsel %vm714, %v4505, %v4506
      %v4508 = vrot.slane %v4476, 4
      %v4509 = vrot.slane %v4144, 4
      %v4510 = vsel %vm714, %v4508, %v4509
      %v4511 = vrot.slane %v4477, 4
      %v4512 = vrot.slane %v4146, 4
      %v4513 = vsel %vm714, %v4511, %v4512
      %v4514 = vrot.slane %v4478, 4
      %v4515 = vrot.slane %v4148, 4
      %v4516 = vsel %vm714, %v4514, %v4515
      %v4517 = vrot.slane %v4479, 4
      %v4518 = vrot.slane %v4150, 4
      %v4519 = vsel %vm714, %v4517, %v4518
      %v4528 = vld [vmem:[%s1779] sm:$0xf]
      %v4529 = vld [vmem:[%s1779 + $0x4] sm:$0xf]
      %v4530 = vld [vmem:[%s1779 + $0x8] sm:$0xf]
      %v4531 = vld [vmem:[%s1779 + $0xc] sm:$0xf]
      %v4532 = vld [vmem:[%s1779 + $0x10] sm:$0xf]
      %v4533 = vld [vmem:[%s1779 + $0x14] sm:$0xf]
      %v4534 = vld [vmem:[%s1779 + $0x18] sm:$0xf]
      %v4535 = vld [vmem:[%s1779 + $0x1c] sm:$0xf]
      %v4536 = vld [vmem:[%s1779 + $0x20] sm:$0xf]
      %v4537 = vld [vmem:[%s1779 + $0x24] sm:$0xf]
      %v4538 = vld [vmem:[%s1779 + $0x28] sm:$0xf]
      %v4539 = vld [vmem:[%s1779 + $0x2c] sm:$0xf]
      %v4540 = vld [vmem:[%s1779 + $0x30] sm:$0xf]
      %v4541 = vld [vmem:[%s1779 + $0x34] sm:$0xf]
      %v4542 = vld [vmem:[%s1779 + $0x38] sm:$0xf]
      %v4543 = vld [vmem:[%s1779 + $0x3c] sm:$0xf]
      %v4560 = vunpack.c.l.b16 %v4528
      %v4561 = vunpack.c.l.b16 %v4529
      %v4562 = vunpack.c.l.b16 %v4530
      %v4563 = vunpack.c.l.b16 %v4531
      %v4564 = vunpack.c.l.b16 %v4532
      %v4565 = vunpack.c.l.b16 %v4533
      %v4566 = vunpack.c.l.b16 %v4534
      %v4567 = vunpack.c.l.b16 %v4535
      %v4568 = vunpack.c.l.b16 %v4536
      %v4569 = vunpack.c.l.b16 %v4537
      %v4570 = vunpack.c.l.b16 %v4538
      %v4571 = vunpack.c.l.b16 %v4539
      %v4572 = vunpack.c.l.b16 %v4540
      %v4573 = vunpack.c.l.b16 %v4541
      %v4574 = vunpack.c.l.b16 %v4542
      %v4575 = vunpack.c.l.b16 %v4543
      %v4576 = vpack.c.b16 %v4561, %v4560
      %v4577 = vpack.c.b16 %v4563, %v4562
      %v4578 = vpack.c.b16 %v4565, %v4564
      %v4579 = vpack.c.b16 %v4567, %v4566
      %v4580 = vpack.c.b16 %v4569, %v4568
      %v4581 = vpack.c.b16 %v4571, %v4570
      %v4582 = vpack.c.b16 %v4573, %v4572
      %v4583 = vpack.c.b16 %v4575, %v4574
      %4592 = vmatprep.subr.bf16.mxu0 0
      %4593 = vmatpush1.bf16.msra.mxu0 %v4576
      %4594 = vmatprep.subr.bf16.mxu0 0
      %4595 = vmatpush1.bf16.msra.mxu0 %v4577
      %4596 = vmatprep.subr.bf16.mxu0 0
      %4597 = vmatpush1.bf16.msra.mxu0 %v4578
      %4598 = vmatprep.subr.bf16.mxu0 0
      %4599 = vmatpush1.bf16.msra.mxu0 %v4579
      %4600 = vmatprep.subr.bf16.mxu0 0
      %4601 = vmatpush1.bf16.msra.mxu0 %v4580
      %4602 = vmatprep.subr.bf16.mxu0 0
      %4603 = vmatpush1.bf16.msra.mxu0 %v4581
      %4604 = vmatprep.subr.bf16.mxu0 0
      %4605 = vmatpush1.bf16.msra.mxu0 %v4582
      %4606 = vmatprep.subr.bf16.mxu0 0
      %4607 = vmatpush1.bf16.msra.mxu0 %v4583
      %4608 = vmatprep.subr.bf16.mxu0 0
      %4609 = vmatpush1.bf16.msra.mxu0 0
      %4610 = vmatprep.subr.bf16.mxu0 0
      %4611 = vmatpush1.bf16.msra.mxu0 0
      %4612 = vmatprep.subr.bf16.mxu0 0
      %4613 = vmatpush1.bf16.msra.mxu0 0
      %4614 = vmatprep.subr.bf16.mxu0 0
      %4615 = vmatpush1.bf16.msra.mxu0 0
      %4616 = vmatprep.subr.bf16.mxu0 0
      %4617 = vmatpush1.bf16.msra.mxu0 0
      %4618 = vmatprep.subr.bf16.mxu0 0
      %4619 = vmatpush1.bf16.msra.mxu0 0
      %4620 = vmatprep.subr.bf16.mxu0 0
      %4621 = vmatpush1.bf16.msra.mxu0 0
      %4622 = vmatprep.subr.bf16.mxu0 0
      %4623 = vmatpush1.bf16.msra.mxu0 0
      %4624 = vmatprep.mubr.bf16.mxu0 0
      %4625 = vmatmul.mubr.bf16.gmra.mrb[0].mxu0 %v4498
      %v4626 = vpop.f32.mrb[0].mxu0
      %v4627 = vadd.f32 0.0, %v4626
      %v4628 = vpop.f32.mrb[0].mxu0
      %v4629 = vpop.f32.mrb[0].mxu0
      %v4630 = vadd.f32 0.0, %v4629
      %v4631 = vpop.f32.mrb[0].mxu0
      %4632 = vmatprep.mubr.bf16.mxu0 0
      %4633 = vmatmul.mubr.bf16.gmra.mrb[0].mxu0 %v4501
      %v4634 = vpop.f32.mrb[0].mxu0
      %v4635 = vadd.f32 0.0, %v4634
      %v4636 = vpop.f32.mrb[0].mxu0
      %v4637 = vpop.f32.mrb[0].mxu0
      %v4638 = vadd.f32 0.0, %v4637
      %v4639 = vpop.f32.mrb[0].mxu0
      %4640 = vmatprep.mubr.bf16.mxu0 0
      %4641 = vmatmul.mubr.bf16.gmra.mrb[0].mxu0 %v4504
      %v4642 = vpop.f32.mrb[0].mxu0
      %v4643 = vadd.f32 0.0, %v4642
      %v4644 = vpop.f32.mrb[0].mxu0
      %v4645 = vpop.f32.mrb[0].mxu0
      %v4646 = vadd.f32 0.0, %v4645
      %v4647 = vpop.f32.mrb[0].mxu0
      %4648 = vmatprep.mubr.bf16.mxu0 0
      %4649 = vmatmul.mubr.bf16.gmra.mrb[0].mxu0 %v4507
      %v4650 = vpop.f32.mrb[0].mxu0
      %v4651 = vadd.f32 0.0, %v4650
      %v4652 = vpop.f32.mrb[0].mxu0
      %v4653 = vpop.f32.mrb[0].mxu0
      %v4654 = vadd.f32 0.0, %v4653
      %v4655 = vpop.f32.mrb[0].mxu0
      %4656 = vmatprep.mubr.bf16.mxu0 0
      %4657 = vmatmul.mubr.bf16.gmra.mrb[0].mxu0 %v4510
      %v4658 = vpop.f32.mrb[0].mxu0
      %v4659 = vadd.f32 0.0, %v4658
      %v4660 = vpop.f32.mrb[0].mxu0
      %v4661 = vpop.f32.mrb[0].mxu0
      %v4662 = vadd.f32 0.0, %v4661
      %v4663 = vpop.f32.mrb[0].mxu0
      %4664 = vmatprep.mubr.bf16.mxu0 0
      %4665 = vmatmul.mubr.bf16.gmra.mrb[0].mxu0 %v4513
      %v4666 = vpop.f32.mrb[0].mxu0
      %v4667 = vadd.f32 0.0, %v4666
      %v4668 = vpop.f32.mrb[0].mxu0
      %v4669 = vpop.f32.mrb[0].mxu0
      %v4670 = vadd.f32 0.0, %v4669
      %v4671 = vpop.f32.mrb[0].mxu0
      %4672 = vmatprep.mubr.bf16.mxu0 0
      %4673 = vmatmul.mubr.bf16.gmra.mrb[0].mxu0 %v4516
      %v4674 = vpop.f32.mrb[0].mxu0
      %v4675 = vadd.f32 0.0, %v4674
      %v4676 = vpop.f32.mrb[0].mxu0
      %v4677 = vpop.f32.mrb[0].mxu0
      %v4678 = vadd.f32 0.0, %v4677
      %v4679 = vpop.f32.mrb[0].mxu0
      %4680 = vmatprep.mubr.bf16.mxu0 0
      %4681 = vmatmul.mubr.bf16.gmra.mrb[0].mxu0 %v4519
      %v4682 = vpop.f32.mrb[0].mxu0
      %v4683 = vadd.f32 0.0, %v4682
      %v4684 = vpop.f32.mrb[0].mxu0
      %v4685 = vpop.f32.mrb[0].mxu0
      %v4686 = vadd.f32 0.0, %v4685
      %v4687 = vpop.f32.mrb[0].mxu0
      %4688 = vdwg.mxu0
      %v4689 = vadd.f32 %v4456, %v4627
      %v4690 = vadd.f32 %v4457, %v4630
      %v4691 = vadd.f32 %v4458, %v4635
      %v4692 = vadd.f32 %v4459, %v4638
      %v4693 = vadd.f32 %v4460, %v4643
      %v4694 = vadd.f32 %v4461, %v4646
      %v4695 = vadd.f32 %v4462, %v4651
      %v4696 = vadd.f32 %v4463, %v4654
      %v4697 = vadd.f32 %v4464, %v4659
      %v4698 = vadd.f32 %v4465, %v4662
      %v4699 = vadd.f32 %v4466, %v4667
      %v4700 = vadd.f32 %v4467, %v4670
      %v4701 = vadd.f32 %v4468, %v4675
      %v4702 = vadd.f32 %v4469, %v4678
      %v4703 = vadd.f32 %v4470, %v4683
      %v4704 = vadd.f32 %v4471, %v4686
      %v4705 = vld [vmem:[%s4134 + $0x8] sm:$0x1f]
      %v4706 = vld [vmem:[%s4134 + $0x18] sm:$0x1f]
      %v4707 = vld [vmem:[%s4134 + $0x28] sm:$0x1f]
      %v4708 = vld [vmem:[%s4134 + $0x38] sm:$0x1f]
      %v4709 = vld [vmem:[%s4134 + $0x48] sm:$0x1f]
      %v4710 = vld [vmem:[%s4134 + $0x58] sm:$0x1f]
      %v4711 = vld [vmem:[%s4134 + $0x68] sm:$0x1f]
      %v4712 = vld [vmem:[%s4134 + $0x78] sm:$0x1f]
      %v4714 = vshrl.u32 %v4472, 16
      %v4716 = vrot.slane %v4714, 4
      %v4717 = vshll.u32 %v4472, 16
      %v4719 = vrot.slane %v4717, 5
      %v4720 = vor.u32 %v4716, %v4719
      %v4722 = vshrl.u32 %v4705, 16
      %v4724 = vrot.slane %v4722, 4
      %v4725 = vshll.u32 %v4705, 16
      %v4727 = vrot.slane %v4725, 5
      %v4728 = vor.u32 %v4724, %v4727
      %v4729 = vsel %vm1062, %v4720, %v4728
      %v4731 = vshrl.u32 %v4473, 16
      %v4733 = vrot.slane %v4731, 4
      %v4734 = vshll.u32 %v4473, 16
      %v4736 = vrot.slane %v4734, 5
      %v4737 = vor.u32 %v4733, %v4736
      %v4739 = vshrl.u32 %v4706, 16
      %v4741 = vrot.slane %v4739, 4
      %v4742 = vshll.u32 %v4706, 16
      %v4744 = vrot.slane %v4742, 5
      %v4745 = vor.u32 %v4741, %v4744
      %v4746 = vsel %vm1062, %v4737, %v4745
      %v4748 = vshrl.u32 %v4474, 16
      %v4750 = vrot.slane %v4748, 4
      %v4751 = vshll.u32 %v4474, 16
      %v4753 = vrot.slane %v4751, 5
      %v4754 = vor.u32 %v4750, %v4753
      %v4756 = vshrl.u32 %v4707, 16
      %v4758 = vrot.slane %v4756, 4
      %v4759 = vshll.u32 %v4707, 16
      %v4761 = vrot.slane %v4759, 5
      %v4762 = vor.u32 %v4758, %v4761
      %v4763 = vsel %vm1062, %v4754, %v4762
      %v4765 = vshrl.u32 %v4475, 16
      %v4767 = vrot.slane %v4765, 4
      %v4768 = vshll.u32 %v4475, 16
      %v4770 = vrot.slane %v4768, 5
      %v4771 = vor.u32 %v4767, %v4770
      %v4773 = vshrl.u32 %v4708, 16
      %v4775 = vrot.slane %v4773, 4
      %v4776 = vshll.u32 %v4708, 16
      %v4778 = vrot.slane %v4776, 5
      %v4779 = vor.u32 %v4775, %v4778
      %v4780 = vsel %vm1062, %v4771, %v4779
      %v4782 = vshrl.u32 %v4476, 16
      %v4784 = vrot.slane %v4782, 4
      %v4785 = vshll.u32 %v4476, 16
      %v4787 = vrot.slane %v4785, 5
      %v4788 = vor.u32 %v4784, %v4787
      %v4790 = vshrl.u32 %v4709, 16
      %v4792 = vrot.slane %v4790, 4
      %v4793 = vshll.u32 %v4709, 16
      %v4795 = vrot.slane %v4793, 5
      %v4796 = vor.u32 %v4792, %v4795
      %v4797 = vsel %vm1062, %v4788, %v4796
      %v4799 = vshrl.u32 %v4477, 16
      %v4801 = vrot.slane %v4799, 4
      %v4802 = vshll.u32 %v4477, 16
      %v4804 = vrot.slane %v4802, 5
      %v4805 = vor.u32 %v4801, %v4804
      %v4807 = vshrl.u32 %v4710, 16
      %v4809 = vrot.slane %v4807, 4
      %v4810 = vshll.u32 %v4710, 16
      %v4812 = vrot.slane %v4810, 5
      %v4813 = vor.u32 %v4809, %v4812
      %v4814 = vsel %vm1062, %v4805, %v4813
      %v4816 = vshrl.u32 %v4478, 16
      %v4818 = vrot.slane %v4816, 4
      %v4819 = vshll.u32 %v4478, 16
      %v4821 = vrot.slane %v4819, 5
      %v4822 = vor.u32 %v4818, %v4821
      %v4824 = vshrl.u32 %v4711, 16
      %v4826 = vrot.slane %v4824, 4
      %v4827 = vshll.u32 %v4711, 16
      %v4829 = vrot.slane %v4827, 5
      %v4830 = vor.u32 %v4826, %v4829
      %v4831 = vsel %vm1062, %v4822, %v4830
      %v4833 = vshrl.u32 %v4479, 16
      %v4835 = vrot.slane %v4833, 4
      %v4836 = vshll.u32 %v4479, 16
      %v4838 = vrot.slane %v4836, 5
      %v4839 = vor.u32 %v4835, %v4838
      %v4841 = vshrl.u32 %v4712, 16
      %v4843 = vrot.slane %v4841, 4
      %v4844 = vshll.u32 %v4712, 16
      %v4846 = vrot.slane %v4844, 5
      %v4847 = vor.u32 %v4843, %v4846
      %v4848 = vsel %vm1062, %v4839, %v4847
      %v4857 = vld [vmem:[%s2109] sm:$0xf]
      %v4858 = vld [vmem:[%s2109 + $0x4] sm:$0xf]
      %v4859 = vld [vmem:[%s2109 + $0x8] sm:$0xf]
      %v4860 = vld [vmem:[%s2109 + $0xc] sm:$0xf]
      %v4861 = vld [vmem:[%s2109 + $0x10] sm:$0xf]
      %v4862 = vld [vmem:[%s2109 + $0x14] sm:$0xf]
      %v4863 = vld [vmem:[%s2109 + $0x18] sm:$0xf]
      %v4864 = vld [vmem:[%s2109 + $0x1c] sm:$0xf]
      %v4865 = vld [vmem:[%s2109 + $0x20] sm:$0xf]
      %v4866 = vld [vmem:[%s2109 + $0x24] sm:$0xf]
      %v4867 = vld [vmem:[%s2109 + $0x28] sm:$0xf]
      %v4868 = vld [vmem:[%s2109 + $0x2c] sm:$0xf]
      %v4869 = vld [vmem:[%s2109 + $0x30] sm:$0xf]
      %v4870 = vld [vmem:[%s2109 + $0x34] sm:$0xf]
      %v4871 = vld [vmem:[%s2109 + $0x38] sm:$0xf]
      %v4872 = vld [vmem:[%s2109 + $0x3c] sm:$0xf]
      %v4889 = vunpack.c.l.b16 %v4857
      %v4890 = vunpack.c.l.b16 %v4858
      %v4891 = vunpack.c.l.b16 %v4859
      %v4892 = vunpack.c.l.b16 %v4860
      %v4893 = vunpack.c.l.b16 %v4861
      %v4894 = vunpack.c.l.b16 %v4862
      %v4895 = vunpack.c.l.b16 %v4863
      %v4896 = vunpack.c.l.b16 %v4864
      %v4897 = vunpack.c.l.b16 %v4865
      %v4898 = vunpack.c.l.b16 %v4866
      %v4899 = vunpack.c.l.b16 %v4867
      %v4900 = vunpack.c.l.b16 %v4868
      %v4901 = vunpack.c.l.b16 %v4869
      %v4902 = vunpack.c.l.b16 %v4870
      %v4903 = vunpack.c.l.b16 %v4871
      %v4904 = vunpack.c.l.b16 %v4872
      %v4905 = vpack.c.b16 %v4890, %v4889
      %v4906 = vpack.c.b16 %v4892, %v4891
      %v4907 = vpack.c.b16 %v4894, %v4893
      %v4908 = vpack.c.b16 %v4896, %v4895
      %v4909 = vpack.c.b16 %v4898, %v4897
      %v4910 = vpack.c.b16 %v4900, %v4899
      %v4911 = vpack.c.b16 %v4902, %v4901
      %v4912 = vpack.c.b16 %v4904, %v4903
      %4921 = vmatprep.subr.bf16.mxu0 0
      %4922 = vmatpush1.bf16.msra.mxu0 %v4905
      %4923 = vmatprep.subr.bf16.mxu0 0
      %4924 = vmatpush1.bf16.msra.mxu0 %v4906
      %4925 = vmatprep.subr.bf16.mxu0 0
      %4926 = vmatpush1.bf16.msra.mxu0 %v4907
      %4927 = vmatprep.subr.bf16.mxu0 0
      %4928 = vmatpush1.bf16.msra.mxu0 %v4908
      %4929 = vmatprep.subr.bf16.mxu0 0
      %4930 = vmatpush1.bf16.msra.mxu0 %v4909
      %4931 = vmatprep.subr.bf16.mxu0 0
      %4932 = vmatpush1.bf16.msra.mxu0 %v4910
      %4933 = vmatprep.subr.bf16.mxu0 0
      %4934 = vmatpush1.bf16.msra.mxu0 %v4911
      %4935 = vmatprep.subr.bf16.mxu0 0
      %4936 = vmatpush1.bf16.msra.mxu0 %v4912
      %4937 = vmatprep.subr.bf16.mxu0 0
      %4938 = vmatpush1.bf16.msra.mxu0 0
      %4939 = vmatprep.subr.bf16.mxu0 0
      %4940 = vmatpush1.bf16.msra.mxu0 0
      %4941 = vmatprep.subr.bf16.mxu0 0
      %4942 = vmatpush1.bf16.msra.mxu0 0
      %4943 = vmatprep.subr.bf16.mxu0 0
      %4944 = vmatpush1.bf16.msra.mxu0 0
      %4945 = vmatprep.subr.bf16.mxu0 0
      %4946 = vmatpush1.bf16.msra.mxu0 0
      %4947 = vmatprep.subr.bf16.mxu0 0
      %4948 = vmatpush1.bf16.msra.mxu0 0
      %4949 = vmatprep.subr.bf16.mxu0 0
      %4950 = vmatpush1.bf16.msra.mxu0 0
      %4951 = vmatprep.subr.bf16.mxu0 0
      %4952 = vmatpush1.bf16.msra.mxu0 0
      %4953 = vmatprep.mubr.bf16.mxu0 0
      %4954 = vmatmul.mubr.bf16.gmra.mrb[0].mxu0 %v4729
      %v4955 = vpop.f32.mrb[0].mxu0
      %v4956 = vadd.f32 0.0, %v4955
      %v4957 = vpop.f32.mrb[0].mxu0
      %v4958 = vpop.f32.mrb[0].mxu0
      %v4959 = vadd.f32 0.0, %v4958
      %v4960 = vpop.f32.mrb[0].mxu0
      %4961 = vmatprep.mubr.bf16.mxu0 0
      %4962 = vmatmul.mubr.bf16.gmra.mrb[0].mxu0 %v4746
      %v4963 = vpop.f32.mrb[0].mxu0
      %v4964 = vadd.f32 0.0, %v4963
      %v4965 = vpop.f32.mrb[0].mxu0
      %v4966 = vpop.f32.mrb[0].mxu0
      %v4967 = vadd.f32 0.0, %v4966
      %v4968 = vpop.f32.mrb[0].mxu0
      %4969 = vmatprep.mubr.bf16.mxu0 0
      %4970 = vmatmul.mubr.bf16.gmra.mrb[0].mxu0 %v4763
      %v4971 = vpop.f32.mrb[0].mxu0
      %v4972 = vadd.f32 0.0, %v4971
      %v4973 = vpop.f32.mrb[0].mxu0
      %v4974 = vpop.f32.mrb[0].mxu0
      %v4975 = vadd.f32 0.0, %v4974
      %v4976 = vpop.f32.mrb[0].mxu0
      %4977 = vmatprep.mubr.bf16.mxu0 0
      %4978 = vmatmul.mubr.bf16.gmra.mrb[0].mxu0 %v4780
      %v4979 = vpop.f32.mrb[0].mxu0
      %v4980 = vadd.f32 0.0, %v4979
      %v4981 = vpop.f32.mrb[0].mxu0
      %v4982 = vpop.f32.mrb[0].mxu0
      %v4983 = vadd.f32 0.0, %v4982
      %v4984 = vpop.f32.mrb[0].mxu0
      %4985 = vmatprep.mubr.bf16.mxu0 0
      %4986 = vmatmul.mubr.bf16.gmra.mrb[0].mxu0 %v4797
      %v4987 = vpop.f32.mrb[0].mxu0
      %v4988 = vadd.f32 0.0, %v4987
      %v4989 = vpop.f32.mrb[0].mxu0
      %v4990 = vpop.f32.mrb[0].mxu0
      %v4991 = vadd.f32 0.0, %v4990
      %v4992 = vpop.f32.mrb[0].mxu0
      %4993 = vmatprep.mubr.bf16.mxu0 0
      %4994 = vmatmul.mubr.bf16.gmra.mrb[0].mxu0 %v4814
      %v4995 = vpop.f32.mrb[0].mxu0
      %v4996 = vadd.f32 0.0, %v4995
      %v4997 = vpop.f32.mrb[0].mxu0
      %v4998 = vpop.f32.mrb[0].mxu0
      %v4999 = vadd.f32 0.0, %v4998
      %v5000 = vpop.f32.mrb[0].mxu0
      %5001 = vmatprep.mubr.bf16.mxu0 0
      %5002 = vmatmul.mubr.bf16.gmra.mrb[0].mxu0 %v4831
      %v5003 = vpop.f32.mrb[0].mxu0
      %v5004 = vadd.f32 0.0, %v5003
      %v5005 = vpop.f32.mrb[0].mxu0
      %v5006 = vpop.f32.mrb[0].mxu0
      %v5007 = vadd.f32 0.0, %v5006
      %v5008 = vpop.f32.mrb[0].mxu0
      %5009 = vmatprep.mubr.bf16.mxu0 0
      %5010 = vmatmul.mubr.bf16.gmra.mrb[0].mxu0 %v4848
      %v5011 = vpop.f32.mrb[0].mxu0
      %v5012 = vadd.f32 0.0, %v5011
      %v5013 = vpop.f32.mrb[0].mxu0
      %v5014 = vpop.f32.mrb[0].mxu0
      %v5015 = vadd.f32 0.0, %v5014
      %v5016 = vpop.f32.mrb[0].mxu0
      %5017 = vdwg.mxu0
      %v5018 = vadd.f32 %v4689, %v4956
      %v5019 = vadd.f32 %v4690, %v4959
      %v5020 = vadd.f32 %v4691, %v4964
      %v5021 = vadd.f32 %v4692, %v4967
      %v5022 = vadd.f32 %v4693, %v4972
      %v5023 = vadd.f32 %v4694, %v4975
      %v5024 = vadd.f32 %v4695, %v4980
      %v5025 = vadd.f32 %v4696, %v4983
      %v5026 = vadd.f32 %v4697, %v4988
      %v5027 = vadd.f32 %v4698, %v4991
      %v5028 = vadd.f32 %v4699, %v4996
      %v5029 = vadd.f32 %v4700, %v4999
      %v5030 = vadd.f32 %v4701, %v5004
      %v5031 = vadd.f32 %v4702, %v5007
      %v5032 = vadd.f32 %v4703, %v5012
      %v5033 = vadd.f32 %v4704, %v5015
      %s5034 = scalar_lea.vmem [#allocation2], 160
      %v5035 = vld [vmem:[%s5034] sm:$0xf8]
      %v5036 = vld [vmem:[%s5034 + $0x8] sm:$0xf]
      %v5037 = vld [vmem:[%s5034 + $0x10] sm:$0xf8]
      %v5038 = vld [vmem:[%s5034 + $0x18] sm:$0xf]
      %v5039 = vld [vmem:[%s5034 + $0x20] sm:$0xf8]
      %v5040 = vld [vmem:[%s5034 + $0x28] sm:$0xf]
      %v5041 = vld [vmem:[%s5034 + $0x30] sm:$0xf8]
      %v5042 = vld [vmem:[%s5034 + $0x38] sm:$0xf]
      %v5043 = vld [vmem:[%s5034 + $0x40] sm:$0xf8]
      %v5044 = vld [vmem:[%s5034 + $0x48] sm:$0xf]
      %v5045 = vld [vmem:[%s5034 + $0x50] sm:$0xf8]
      %v5046 = vld [vmem:[%s5034 + $0x58] sm:$0xf]
      %v5047 = vld [vmem:[%s5034 + $0x60] sm:$0xf8]
      %v5048 = vld [vmem:[%s5034 + $0x68] sm:$0xf]
      %v5049 = vld [vmem:[%s5034 + $0x70] sm:$0xf8]
      %v5050 = vld [vmem:[%s5034 + $0x78] sm:$0xf]
      %v5052 = vshrl.u32 %v5035, 16
      %v5054 = vrot.slane %v5052, 3
      %v5055 = vshll.u32 %v5035, 16
      %v5057 = vrot.slane %v5055, 4
      %v5058 = vor.u32 %v5054, %v5057
      %v5060 = vshrl.u32 %v5036, 16
      %v5062 = vrot.slane %v5060, 3
      %v5063 = vshll.u32 %v5036, 16
      %v5065 = vrot.slane %v5063, 4
      %v5066 = vor.u32 %v5062, %v5065
      %v5067 = vsel %vm529, %v5058, %v5066
      %v5069 = vshrl.u32 %v5037, 16
      %v5071 = vrot.slane %v5069, 3
      %v5072 = vshll.u32 %v5037, 16
      %v5074 = vrot.slane %v5072, 4
      %v5075 = vor.u32 %v5071, %v5074
      %v5077 = vshrl.u32 %v5038, 16
      %v5079 = vrot.slane %v5077, 3
      %v5080 = vshll.u32 %v5038, 16
      %v5082 = vrot.slane %v5080, 4
      %v5083 = vor.u32 %v5079, %v5082
      %v5084 = vsel %vm529, %v5075, %v5083
      %v5086 = vshrl.u32 %v5039, 16
      %v5088 = vrot.slane %v5086, 3
      %v5089 = vshll.u32 %v5039, 16
      %v5091 = vrot.slane %v5089, 4
      %v5092 = vor.u32 %v5088, %v5091
      %v5094 = vshrl.u32 %v5040, 16
      %v5096 = vrot.slane %v5094, 3
      %v5097 = vshll.u32 %v5040, 16
      %v5099 = vrot.slane %v5097, 4
      %v5100 = vor.u32 %v5096, %v5099
      %v5101 = vsel %vm529, %v5092, %v5100
      %v5103 = vshrl.u32 %v5041, 16
      %v5105 = vrot.slane %v5103, 3
      %v5106 = vshll.u32 %v5041, 16
      %v5108 = vrot.slane %v5106, 4
      %v5109 = vor.u32 %v5105, %v5108
      %v5111 = vshrl.u32 %v5042, 16
      %v5113 = vrot.slane %v5111, 3
      %v5114 = vshll.u32 %v5042, 16
      %v5116 = vrot.slane %v5114, 4
      %v5117 = vor.u32 %v5113, %v5116
      %v5118 = vsel %vm529, %v5109, %v5117
      %v5120 = vshrl.u32 %v5043, 16
      %v5122 = vrot.slane %v5120, 3
      %v5123 = vshll.u32 %v5043, 16
      %v5125 = vrot.slane %v5123, 4
      %v5126 = vor.u32 %v5122, %v5125
      %v5128 = vshrl.u32 %v5044, 16
      %v5130 = vrot.slane %v5128, 3
      %v5131 = vshll.u32 %v5044, 16
      %v5133 = vrot.slane %v5131, 4
      %v5134 = vor.u32 %v5130, %v5133
      %v5135 = vsel %vm529, %v5126, %v5134
      %v5137 = vshrl.u32 %v5045, 16
      %v5139 = vrot.slane %v5137, 3
      %v5140 = vshll.u32 %v5045, 16
      %v5142 = vrot.slane %v5140, 4
      %v5143 = vor.u32 %v5139, %v5142
      %v5145 = vshrl.u32 %v5046, 16
      %v5147 = vrot.slane %v5145, 3
      %v5148 = vshll.u32 %v5046, 16
      %v5150 = vrot.slane %v5148, 4
      %v5151 = vor.u32 %v5147, %v5150
      %v5152 = vsel %vm529, %v5143, %v5151
      %v5154 = vshrl.u32 %v5047, 16
      %v5156 = vrot.slane %v5154, 3
      %v5157 = vshll.u32 %v5047, 16
      %v5159 = vrot.slane %v5157, 4
      %v5160 = vor.u32 %v5156, %v5159
      %v5162 = vshrl.u32 %v5048, 16
      %v5164 = vrot.slane %v5162, 3
      %v5165 = vshll.u32 %v5048, 16
      %v5167 = vrot.slane %v5165, 4
      %v5168 = vor.u32 %v5164, %v5167
      %v5169 = vsel %vm529, %v5160, %v5168
      %v5171 = vshrl.u32 %v5049, 16
      %v5173 = vrot.slane %v5171, 3
      %v5174 = vshll.u32 %v5049, 16
      %v5176 = vrot.slane %v5174, 4
      %v5177 = vor.u32 %v5173, %v5176
      %v5179 = vshrl.u32 %v5050, 16
      %v5181 = vrot.slane %v5179, 3
      %v5182 = vshll.u32 %v5050, 16
      %v5184 = vrot.slane %v5182, 4
      %v5185 = vor.u32 %v5181, %v5184
      %v5186 = vsel %vm529, %v5177, %v5185
      %v5195 = vld [vmem:[%s2448] sm:$0xf]
      %v5196 = vld [vmem:[%s2448 + $0x4] sm:$0xf]
      %v5197 = vld [vmem:[%s2448 + $0x8] sm:$0xf]
      %v5198 = vld [vmem:[%s2448 + $0xc] sm:$0xf]
      %v5199 = vld [vmem:[%s2448 + $0x10] sm:$0xf]
      %v5200 = vld [vmem:[%s2448 + $0x14] sm:$0xf]
      %v5201 = vld [vmem:[%s2448 + $0x18] sm:$0xf]
      %v5202 = vld [vmem:[%s2448 + $0x1c] sm:$0xf]
      %v5203 = vld [vmem:[%s2448 + $0x20] sm:$0xf]
      %v5204 = vld [vmem:[%s2448 + $0x24] sm:$0xf]
      %v5205 = vld [vmem:[%s2448 + $0x28] sm:$0xf]
      %v5206 = vld [vmem:[%s2448 + $0x2c] sm:$0xf]
      %v5207 = vld [vmem:[%s2448 + $0x30] sm:$0xf]
      %v5208 = vld [vmem:[%s2448 + $0x34] sm:$0xf]
      %v5209 = vld [vmem:[%s2448 + $0x38] sm:$0xf]
      %v5210 = vld [vmem:[%s2448 + $0x3c] sm:$0xf]
      %v5227 = vunpack.c.l.b16 %v5195
      %v5228 = vunpack.c.l.b16 %v5196
      %v5229 = vunpack.c.l.b16 %v5197
      %v5230 = vunpack.c.l.b16 %v5198
      %v5231 = vunpack.c.l.b16 %v5199
      %v5232 = vunpack.c.l.b16 %v5200
      %v5233 = vunpack.c.l.b16 %v5201
      %v5234 = vunpack.c.l.b16 %v5202
      %v5235 = vunpack.c.l.b16 %v5203
      %v5236 = vunpack.c.l.b16 %v5204
      %v5237 = vunpack.c.l.b16 %v5205
      %v5238 = vunpack.c.l.b16 %v5206
      %v5239 = vunpack.c.l.b16 %v5207
      %v5240 = vunpack.c.l.b16 %v5208
      %v5241 = vunpack.c.l.b16 %v5209
      %v5242 = vunpack.c.l.b16 %v5210
      %v5243 = vpack.c.b16 %v5228, %v5227
      %v5244 = vpack.c.b16 %v5230, %v5229
      %v5245 = vpack.c.b16 %v5232, %v5231
      %v5246 = vpack.c.b16 %v5234, %v5233
      %v5247 = vpack.c.b16 %v5236, %v5235
      %v5248 = vpack.c.b16 %v5238, %v5237
      %v5249 = vpack.c.b16 %v5240, %v5239
      %v5250 = vpack.c.b16 %v5242, %v5241
      %5259 = vmatprep.subr.bf16.mxu0 0
      %5260 = vmatpush1.bf16.msra.mxu0 %v5243
      %5261 = vmatprep.subr.bf16.mxu0 0
      %5262 = vmatpush1.bf16.msra.mxu0 %v5244
      %5263 = vmatprep.subr.bf16.mxu0 0
      %5264 = vmatpush1.bf16.msra.mxu0 %v5245
      %5265 = vmatprep.subr.bf16.mxu0 0
      %5266 = vmatpush1.bf16.msra.mxu0 %v5246
      %5267 = vmatprep.subr.bf16.mxu0 0
      %5268 = vmatpush1.bf16.msra.mxu0 %v5247
      %5269 = vmatprep.subr.bf16.mxu0 0
      %5270 = vmatpush1.bf16.msra.mxu0 %v5248
      %5271 = vmatprep.subr.bf16.mxu0 0
      %5272 = vmatpush1.bf16.msra.mxu0 %v5249
      %5273 = vmatprep.subr.bf16.mxu0 0
      %5274 = vmatpush1.bf16.msra.mxu0 %v5250
      %5275 = vmatprep.subr.bf16.mxu0 0
      %5276 = vmatpush1.bf16.msra.mxu0 0
      %5277 = vmatprep.subr.bf16.mxu0 0
      %5278 = vmatpush1.bf16.msra.mxu0 0
      %5279 = vmatprep.subr.bf16.mxu0 0
      %5280 = vmatpush1.bf16.msra.mxu0 0
      %5281 = vmatprep.subr.bf16.mxu0 0
      %5282 = vmatpush1.bf16.msra.mxu0 0
      %5283 = vmatprep.subr.bf16.mxu0 0
      %5284 = vmatpush1.bf16.msra.mxu0 0
      %5285 = vmatprep.subr.bf16.mxu0 0
      %5286 = vmatpush1.bf16.msra.mxu0 0
      %5287 = vmatprep.subr.bf16.mxu0 0
      %5288 = vmatpush1.bf16.msra.mxu0 0
      %5289 = vmatprep.subr.bf16.mxu0 0
      %5290 = vmatpush1.bf16.msra.mxu0 0
      %5291 = vmatprep.mubr.bf16.mxu0 0
      %5292 = vmatmul.mubr.bf16.gmra.mrb[0].mxu0 %v5067
      %v5293 = vpop.f32.mrb[0].mxu0
      %v5294 = vadd.f32 0.0, %v5293
      %v5295 = vpop.f32.mrb[0].mxu0
      %v5296 = vpop.f32.mrb[0].mxu0
      %v5297 = vadd.f32 0.0, %v5296
      %v5298 = vpop.f32.mrb[0].mxu0
      %5299 = vmatprep.mubr.bf16.mxu0 0
      %5300 = vmatmul.mubr.bf16.gmra.mrb[0].mxu0 %v5084
      %v5301 = vpop.f32.mrb[0].mxu0
      %v5302 = vadd.f32 0.0, %v5301
      %v5303 = vpop.f32.mrb[0].mxu0
      %v5304 = vpop.f32.mrb[0].mxu0
      %v5305 = vadd.f32 0.0, %v5304
      %v5306 = vpop.f32.mrb[0].mxu0
      %5307 = vmatprep.mubr.bf16.mxu0 0
      %5308 = vmatmul.mubr.bf16.gmra.mrb[0].mxu0 %v5101
      %v5309 = vpop.f32.mrb[0].mxu0
      %v5310 = vadd.f32 0.0, %v5309
      %v5311 = vpop.f32.mrb[0].mxu0
      %v5312 = vpop.f32.mrb[0].mxu0
      %v5313 = vadd.f32 0.0, %v5312
      %v5314 = vpop.f32.mrb[0].mxu0
      %5315 = vmatprep.mubr.bf16.mxu0 0
      %5316 = vmatmul.mubr.bf16.gmra.mrb[0].mxu0 %v5118
      %v5317 = vpop.f32.mrb[0].mxu0
      %v5318 = vadd.f32 0.0, %v5317
      %v5319 = vpop.f32.mrb[0].mxu0
      %v5320 = vpop.f32.mrb[0].mxu0
      %v5321 = vadd.f32 0.0, %v5320
      %v5322 = vpop.f32.mrb[0].mxu0
      %5323 = vmatprep.mubr.bf16.mxu0 0
      %5324 = vmatmul.mubr.bf16.gmra.mrb[0].mxu0 %v5135
      %v5325 = vpop.f32.mrb[0].mxu0
      %v5326 = vadd.f32 0.0, %v5325
      %v5327 = vpop.f32.mrb[0].mxu0
      %v5328 = vpop.f32.mrb[0].mxu0
      %v5329 = vadd.f32 0.0, %v5328
      %v5330 = vpop.f32.mrb[0].mxu0
      %5331 = vmatprep.mubr.bf16.mxu0 0
      %5332 = vmatmul.mubr.bf16.gmra.mrb[0].mxu0 %v5152
      %v5333 = vpop.f32.mrb[0].mxu0
      %v5334 = vadd.f32 0.0, %v5333
      %v5335 = vpop.f32.mrb[0].mxu0
      %v5336 = vpop.f32.mrb[0].mxu0
      %v5337 = vadd.f32 0.0, %v5336
      %v5338 = vpop.f32.mrb[0].mxu0
      %5339 = vmatprep.mubr.bf16.mxu0 0
      %5340 = vmatmul.mubr.bf16.gmra.mrb[0].mxu0 %v5169
      %v5341 = vpop.f32.mrb[0].mxu0
      %v5342 = vadd.f32 0.0, %v5341
      %v5343 = vpop.f32.mrb[0].mxu0
      %v5344 = vpop.f32.mrb[0].mxu0
      %v5345 = vadd.f32 0.0, %v5344
      %v5346 = vpop.f32.mrb[0].mxu0
      %5347 = vmatprep.mubr.bf16.mxu0 0
      %5348 = vmatmul.mubr.bf16.gmra.mrb[0].mxu0 %v5186
      %v5349 = vpop.f32.mrb[0].mxu0
      %v5350 = vadd.f32 0.0, %v5349
      %v5351 = vpop.f32.mrb[0].mxu0
      %v5352 = vpop.f32.mrb[0].mxu0
      %v5353 = vadd.f32 0.0, %v5352
      %v5354 = vpop.f32.mrb[0].mxu0
      %5355 = vdwg.mxu0
      %v5356 = vadd.f32 %v5018, %v5294
      %v5357 = vadd.f32 %v5019, %v5297
      %v5358 = vadd.f32 %v5020, %v5302
      %v5359 = vadd.f32 %v5021, %v5305
      %v5360 = vadd.f32 %v5022, %v5310
      %v5361 = vadd.f32 %v5023, %v5313
      %v5362 = vadd.f32 %v5024, %v5318
      %v5363 = vadd.f32 %v5025, %v5321
      %v5364 = vadd.f32 %v5026, %v5326
      %v5365 = vadd.f32 %v5027, %v5329
      %v5366 = vadd.f32 %v5028, %v5334
      %v5367 = vadd.f32 %v5029, %v5337
      %v5368 = vadd.f32 %v5030, %v5342
      %v5369 = vadd.f32 %v5031, %v5345
      %v5370 = vadd.f32 %v5032, %v5350
      %v5371 = vadd.f32 %v5033, %v5353
      %v5372 = vld [vmem:[%s5034] sm:$0xf0]
      %v5373 = vld [vmem:[%s5034 + $0x10] sm:$0xf0]
      %v5374 = vld [vmem:[%s5034 + $0x20] sm:$0xf0]
      %v5375 = vld [vmem:[%s5034 + $0x30] sm:$0xf0]
      %v5376 = vld [vmem:[%s5034 + $0x40] sm:$0xf0]
      %v5377 = vld [vmem:[%s5034 + $0x50] sm:$0xf0]
      %v5378 = vld [vmem:[%s5034 + $0x60] sm:$0xf0]
      %v5379 = vld [vmem:[%s5034 + $0x70] sm:$0xf0]
      %v5396 = vrot.slane %v5372, 4
      %v5397 = vrot.slane %v5036, 4
      %v5398 = vsel %vm714, %v5396, %v5397
      %v5399 = vrot.slane %v5373, 4
      %v5400 = vrot.slane %v5038, 4
      %v5401 = vsel %vm714, %v5399, %v5400
      %v5402 = vrot.slane %v5374, 4
      %v5403 = vrot.slane %v5040, 4
      %v5404 = vsel %vm714, %v5402, %v5403
      %v5405 = vrot.slane %v5375, 4
      %v5406 = vrot.slane %v5042, 4
      %v5407 = vsel %vm714, %v5405, %v5406
      %v5408 = vrot.slane %v5376, 4
      %v5409 = vrot.slane %v5044, 4
      %v5410 = vsel %vm714, %v5408, %v5409
      %v5411 = vrot.slane %v5377, 4
      %v5412 = vrot.slane %v5046, 4
      %v5413 = vsel %vm714, %v5411, %v5412
      %v5414 = vrot.slane %v5378, 4
      %v5415 = vrot.slane %v5048, 4
      %v5416 = vsel %vm714, %v5414, %v5415
      %v5417 = vrot.slane %v5379, 4
      %v5418 = vrot.slane %v5050, 4
      %v5419 = vsel %vm714, %v5417, %v5418
      %v5428 = vld [vmem:[%s2682] sm:$0xf]
      %v5429 = vld [vmem:[%s2682 + $0x4] sm:$0xf]
      %v5430 = vld [vmem:[%s2682 + $0x8] sm:$0xf]
      %v5431 = vld [vmem:[%s2682 + $0xc] sm:$0xf]
      %v5432 = vld [vmem:[%s2682 + $0x10] sm:$0xf]
      %v5433 = vld [vmem:[%s2682 + $0x14] sm:$0xf]
      %v5434 = vld [vmem:[%s2682 + $0x18] sm:$0xf]
      %v5435 = vld [vmem:[%s2682 + $0x1c] sm:$0xf]
      %v5436 = vld [vmem:[%s2682 + $0x20] sm:$0xf]
      %v5437 = vld [vmem:[%s2682 + $0x24] sm:$0xf]
      %v5438 = vld [vmem:[%s2682 + $0x28] sm:$0xf]
      %v5439 = vld [vmem:[%s2682 + $0x2c] sm:$0xf]
      %v5440 = vld [vmem:[%s2682 + $0x30] sm:$0xf]
      %v5441 = vld [vmem:[%s2682 + $0x34] sm:$0xf]
      %v5442 = vld [vmem:[%s2682 + $0x38] sm:$0xf]
      %v5443 = vld [vmem:[%s2682 + $0x3c] sm:$0xf]
      %v5460 = vunpack.c.l.b16 %v5428
      %v5461 = vunpack.c.l.b16 %v5429
      %v5462 = vunpack.c.l.b16 %v5430
      %v5463 = vunpack.c.l.b16 %v5431
      %v5464 = vunpack.c.l.b16 %v5432
      %v5465 = vunpack.c.l.b16 %v5433
      %v5466 = vunpack.c.l.b16 %v5434
      %v5467 = vunpack.c.l.b16 %v5435
      %v5468 = vunpack.c.l.b16 %v5436
      %v5469 = vunpack.c.l.b16 %v5437
      %v5470 = vunpack.c.l.b16 %v5438
      %v5471 = vunpack.c.l.b16 %v5439
      %v5472 = vunpack.c.l.b16 %v5440
      %v5473 = vunpack.c.l.b16 %v5441
      %v5474 = vunpack.c.l.b16 %v5442
      %v5475 = vunpack.c.l.b16 %v5443
      %v5476 = vpack.c.b16 %v5461, %v5460
      %v5477 = vpack.c.b16 %v5463, %v5462
      %v5478 = vpack.c.b16 %v5465, %v5464
      %v5479 = vpack.c.b16 %v5467, %v5466
      %v5480 = vpack.c.b16 %v5469, %v5468
      %v5481 = vpack.c.b16 %v5471, %v5470
      %v5482 = vpack.c.b16 %v5473, %v5472
      %v5483 = vpack.c.b16 %v5475, %v5474
      %5492 = vmatprep.subr.bf16.mxu0 0
      %5493 = vmatpush1.bf16.msra.mxu0 %v5476
      %5494 = vmatprep.subr.bf16.mxu0 0
      %5495 = vmatpush1.bf16.msra.mxu0 %v5477
      %5496 = vmatprep.subr.bf16.mxu0 0
      %5497 = vmatpush1.bf16.msra.mxu0 %v5478
      %5498 = vmatprep.subr.bf16.mxu0 0
      %5499 = vmatpush1.bf16.msra.mxu0 %v5479
      %5500 = vmatprep.subr.bf16.mxu0 0
      %5501 = vmatpush1.bf16.msra.mxu0 %v5480
      %5502 = vmatprep.subr.bf16.mxu0 0
      %5503 = vmatpush1.bf16.msra.mxu0 %v5481
      %5504 = vmatprep.subr.bf16.mxu0 0
      %5505 = vmatpush1.bf16.msra.mxu0 %v5482
      %5506 = vmatprep.subr.bf16.mxu0 0
      %5507 = vmatpush1.bf16.msra.mxu0 %v5483
      %5508 = vmatprep.subr.bf16.mxu0 0
      %5509 = vmatpush1.bf16.msra.mxu0 0
      %5510 = vmatprep.subr.bf16.mxu0 0
      %5511 = vmatpush1.bf16.msra.mxu0 0
      %5512 = vmatprep.subr.bf16.mxu0 0
      %5513 = vmatpush1.bf16.msra.mxu0 0
      %5514 = vmatprep.subr.bf16.mxu0 0
      %5515 = vmatpush1.bf16.msra.mxu0 0
      %5516 = vmatprep.subr.bf16.mxu0 0
      %5517 = vmatpush1.bf16.msra.mxu0 0
      %5518 = vmatprep.subr.bf16.mxu0 0
      %5519 = vmatpush1.bf16.msra.mxu0 0
      %5520 = vmatprep.subr.bf16.mxu0 0
      %5521 = vmatpush1.bf16.msra.mxu0 0
      %5522 = vmatprep.subr.bf16.mxu0 0
      %5523 = vmatpush1.bf16.msra.mxu0 0
      %5524 = vmatprep.mubr.bf16.mxu0 0
      %5525 = vmatmul.mubr.bf16.gmra.mrb[0].mxu0 %v5398
      %v5526 = vpop.f32.mrb[0].mxu0
      %v5527 = vadd.f32 0.0, %v5526
      %v5528 = vpop.f32.mrb[0].mxu0
      %v5529 = vpop.f32.mrb[0].mxu0
      %v5530 = vadd.f32 0.0, %v5529
      %v5531 = vpop.f32.mrb[0].mxu0
      %5532 = vmatprep.mubr.bf16.mxu0 0
      %5533 = vmatmul.mubr.bf16.gmra.mrb[0].mxu0 %v5401
      %v5534 = vpop.f32.mrb[0].mxu0
      %v5535 = vadd.f32 0.0, %v5534
      %v5536 = vpop.f32.mrb[0].mxu0
      %v5537 = vpop.f32.mrb[0].mxu0
      %v5538 = vadd.f32 0.0, %v5537
      %v5539 = vpop.f32.mrb[0].mxu0
      %5540 = vmatprep.mubr.bf16.mxu0 0
      %5541 = vmatmul.mubr.bf16.gmra.mrb[0].mxu0 %v5404
      %v5542 = vpop.f32.mrb[0].mxu0
      %v5543 = vadd.f32 0.0, %v5542
      %v5544 = vpop.f32.mrb[0].mxu0
      %v5545 = vpop.f32.mrb[0].mxu0
      %v5546 = vadd.f32 0.0, %v5545
      %v5547 = vpop.f32.mrb[0].mxu0
      %5548 = vmatprep.mubr.bf16.mxu0 0
      %5549 = vmatmul.mubr.bf16.gmra.mrb[0].mxu0 %v5407
      %v5550 = vpop.f32.mrb[0].mxu0
      %v5551 = vadd.f32 0.0, %v5550
      %v5552 = vpop.f32.mrb[0].mxu0
      %v5553 = vpop.f32.mrb[0].mxu0
      %v5554 = vadd.f32 0.0, %v5553
      %v5555 = vpop.f32.mrb[0].mxu0
      %5556 = vmatprep.mubr.bf16.mxu0 0
      %5557 = vmatmul.mubr.bf16.gmra.mrb[0].mxu0 %v5410
      %v5558 = vpop.f32.mrb[0].mxu0
      %v5559 = vadd.f32 0.0, %v5558
      %v5560 = vpop.f32.mrb[0].mxu0
      %v5561 = vpop.f32.mrb[0].mxu0
      %v5562 = vadd.f32 0.0, %v5561
      %v5563 = vpop.f32.mrb[0].mxu0
      %5564 = vmatprep.mubr.bf16.mxu0 0
      %5565 = vmatmul.mubr.bf16.gmra.mrb[0].mxu0 %v5413
      %v5566 = vpop.f32.mrb[0].mxu0
      %v5567 = vadd.f32 0.0, %v5566
      %v5568 = vpop.f32.mrb[0].mxu0
      %v5569 = vpop.f32.mrb[0].mxu0
      %v5570 = vadd.f32 0.0, %v5569
      %v5571 = vpop.f32.mrb[0].mxu0
      %5572 = vmatprep.mubr.bf16.mxu0 0
      %5573 = vmatmul.mubr.bf16.gmra.mrb[0].mxu0 %v5416
      %v5574 = vpop.f32.mrb[0].mxu0
      %v5575 = vadd.f32 0.0, %v5574
      %v5576 = vpop.f32.mrb[0].mxu0
      %v5577 = vpop.f32.mrb[0].mxu0
      %v5578 = vadd.f32 0.0, %v5577
      %v5579 = vpop.f32.mrb[0].mxu0
      %5580 = vmatprep.mubr.bf16.mxu0 0
      %5581 = vmatmul.mubr.bf16.gmra.mrb[0].mxu0 %v5419
      %v5582 = vpop.f32.mrb[0].mxu0
      %v5583 = vadd.f32 0.0, %v5582
      %v5584 = vpop.f32.mrb[0].mxu0
      %v5585 = vpop.f32.mrb[0].mxu0
      %v5586 = vadd.f32 0.0, %v5585
      %v5587 = vpop.f32.mrb[0].mxu0
      %5588 = vdwg.mxu0
      %v5589 = vadd.f32 %v5356, %v5527
      %v5590 = vadd.f32 %v5357, %v5530
      %v5591 = vadd.f32 %v5358, %v5535
      %v5592 = vadd.f32 %v5359, %v5538
      %v5593 = vadd.f32 %v5360, %v5543
      %v5594 = vadd.f32 %v5361, %v5546
      %v5595 = vadd.f32 %v5362, %v5551
      %v5596 = vadd.f32 %v5363, %v5554
      %v5597 = vadd.f32 %v5364, %v5559
      %v5598 = vadd.f32 %v5365, %v5562
      %v5599 = vadd.f32 %v5366, %v5567
      %v5600 = vadd.f32 %v5367, %v5570
      %v5601 = vadd.f32 %v5368, %v5575
      %v5602 = vadd.f32 %v5369, %v5578
      %v5603 = vadd.f32 %v5370, %v5583
      %v5604 = vadd.f32 %v5371, %v5586
      %v5605 = vld [vmem:[%s5034 + $0x8] sm:$0x1f]
      %v5606 = vld [vmem:[%s5034 + $0x18] sm:$0x1f]
      %v5607 = vld [vmem:[%s5034 + $0x28] sm:$0x1f]
      %v5608 = vld [vmem:[%s5034 + $0x38] sm:$0x1f]
      %v5609 = vld [vmem:[%s5034 + $0x48] sm:$0x1f]
      %v5610 = vld [vmem:[%s5034 + $0x58] sm:$0x1f]
      %v5611 = vld [vmem:[%s5034 + $0x68] sm:$0x1f]
      %v5612 = vld [vmem:[%s5034 + $0x78] sm:$0x1f]
      %v5614 = vshrl.u32 %v5372, 16
      %v5616 = vrot.slane %v5614, 4
      %v5617 = vshll.u32 %v5372, 16
      %v5619 = vrot.slane %v5617, 5
      %v5620 = vor.u32 %v5616, %v5619
      %v5622 = vshrl.u32 %v5605, 16
      %v5624 = vrot.slane %v5622, 4
      %v5625 = vshll.u32 %v5605, 16
      %v5627 = vrot.slane %v5625, 5
      %v5628 = vor.u32 %v5624, %v5627
      %v5629 = vsel %vm1062, %v5620, %v5628
      %v5631 = vshrl.u32 %v5373, 16
      %v5633 = vrot.slane %v5631, 4
      %v5634 = vshll.u32 %v5373, 16
      %v5636 = vrot.slane %v5634, 5
      %v5637 = vor.u32 %v5633, %v5636
      %v5639 = vshrl.u32 %v5606, 16
      %v5641 = vrot.slane %v5639, 4
      %v5642 = vshll.u32 %v5606, 16
      %v5644 = vrot.slane %v5642, 5
      %v5645 = vor.u32 %v5641, %v5644
      %v5646 = vsel %vm1062, %v5637, %v5645
      %v5648 = vshrl.u32 %v5374, 16
      %v5650 = vrot.slane %v5648, 4
      %v5651 = vshll.u32 %v5374, 16
      %v5653 = vrot.slane %v5651, 5
      %v5654 = vor.u32 %v5650, %v5653
      %v5656 = vshrl.u32 %v5607, 16
      %v5658 = vrot.slane %v5656, 4
      %v5659 = vshll.u32 %v5607, 16
      %v5661 = vrot.slane %v5659, 5
      %v5662 = vor.u32 %v5658, %v5661
      %v5663 = vsel %vm1062, %v5654, %v5662
      %v5665 = vshrl.u32 %v5375, 16
      %v5667 = vrot.slane %v5665, 4
      %v5668 = vshll.u32 %v5375, 16
      %v5670 = vrot.slane %v5668, 5
      %v5671 = vor.u32 %v5667, %v5670
      %v5673 = vshrl.u32 %v5608, 16
      %v5675 = vrot.slane %v5673, 4
      %v5676 = vshll.u32 %v5608, 16
      %v5678 = vrot.slane %v5676, 5
      %v5679 = vor.u32 %v5675, %v5678
      %v5680 = vsel %vm1062, %v5671, %v5679
      %v5682 = vshrl.u32 %v5376, 16
      %v5684 = vrot.slane %v5682, 4
      %v5685 = vshll.u32 %v5376, 16
      %v5687 = vrot.slane %v5685, 5
      %v5688 = vor.u32 %v5684, %v5687
      %v5690 = vshrl.u32 %v5609, 16
      %v5692 = vrot.slane %v5690, 4
      %v5693 = vshll.u32 %v5609, 16
      %v5695 = vrot.slane %v5693, 5
      %v5696 = vor.u32 %v5692, %v5695
      %v5697 = vsel %vm1062, %v5688, %v5696
      %v5699 = vshrl.u32 %v5377, 16
      %v5701 = vrot.slane %v5699, 4
      %v5702 = vshll.u32 %v5377, 16
      %v5704 = vrot.slane %v5702, 5
      %v5705 = vor.u32 %v5701, %v5704
      %v5707 = vshrl.u32 %v5610, 16
      %v5709 = vrot.slane %v5707, 4
      %v5710 = vshll.u32 %v5610, 16
      %v5712 = vrot.slane %v5710, 5
      %v5713 = vor.u32 %v5709, %v5712
      %v5714 = vsel %vm1062, %v5705, %v5713
      %v5716 = vshrl.u32 %v5378, 16
      %v5718 = vrot.slane %v5716, 4
      %v5719 = vshll.u32 %v5378, 16
      %v5721 = vrot.slane %v5719, 5
      %v5722 = vor.u32 %v5718, %v5721
      %v5724 = vshrl.u32 %v5611, 16
      %v5726 = vrot.slane %v5724, 4
      %v5727 = vshll.u32 %v5611, 16
      %v5729 = vrot.slane %v5727, 5
      %v5730 = vor.u32 %v5726, %v5729
      %v5731 = vsel %vm1062, %v5722, %v5730
      %v5733 = vshrl.u32 %v5379, 16
      %v5735 = vrot.slane %v5733, 4
      %v5736 = vshll.u32 %v5379, 16
      %v5738 = vrot.slane %v5736, 5
      %v5739 = vor.u32 %v5735, %v5738
      %v5741 = vshrl.u32 %v5612, 16
      %v5743 = vrot.slane %v5741, 4
      %v5744 = vshll.u32 %v5612, 16
      %v5746 = vrot.slane %v5744, 5
      %v5747 = vor.u32 %v5743, %v5746
      %v5748 = vsel %vm1062, %v5739, %v5747
      %v5757 = vld [vmem:[%s3012] sm:$0xf]
      %v5758 = vld [vmem:[%s3012 + $0x4] sm:$0xf]
      %v5759 = vld [vmem:[%s3012 + $0x8] sm:$0xf]
      %v5760 = vld [vmem:[%s3012 + $0xc] sm:$0xf]
      %v5761 = vld [vmem:[%s3012 + $0x10] sm:$0xf]
      %v5762 = vld [vmem:[%s3012 + $0x14] sm:$0xf]
      %v5763 = vld [vmem:[%s3012 + $0x18] sm:$0xf]
      %v5764 = vld [vmem:[%s3012 + $0x1c] sm:$0xf]
      %v5765 = vld [vmem:[%s3012 + $0x20] sm:$0xf]
      %v5766 = vld [vmem:[%s3012 + $0x24] sm:$0xf]
      %v5767 = vld [vmem:[%s3012 + $0x28] sm:$0xf]
      %v5768 = vld [vmem:[%s3012 + $0x2c] sm:$0xf]
      %v5769 = vld [vmem:[%s3012 + $0x30] sm:$0xf]
      %v5770 = vld [vmem:[%s3012 + $0x34] sm:$0xf]
      %v5771 = vld [vmem:[%s3012 + $0x38] sm:$0xf]
      %v5772 = vld [vmem:[%s3012 + $0x3c] sm:$0xf]
      %v5789 = vunpack.c.l.b16 %v5757
      %v5790 = vunpack.c.l.b16 %v5758
      %v5791 = vunpack.c.l.b16 %v5759
      %v5792 = vunpack.c.l.b16 %v5760
      %v5793 = vunpack.c.l.b16 %v5761
      %v5794 = vunpack.c.l.b16 %v5762
      %v5795 = vunpack.c.l.b16 %v5763
      %v5796 = vunpack.c.l.b16 %v5764
      %v5797 = vunpack.c.l.b16 %v5765
      %v5798 = vunpack.c.l.b16 %v5766
      %v5799 = vunpack.c.l.b16 %v5767
      %v5800 = vunpack.c.l.b16 %v5768
      %v5801 = vunpack.c.l.b16 %v5769
      %v5802 = vunpack.c.l.b16 %v5770
      %v5803 = vunpack.c.l.b16 %v5771
      %v5804 = vunpack.c.l.b16 %v5772
      %v5805 = vpack.c.b16 %v5790, %v5789
      %v5806 = vpack.c.b16 %v5792, %v5791
      %v5807 = vpack.c.b16 %v5794, %v5793
      %v5808 = vpack.c.b16 %v5796, %v5795
      %v5809 = vpack.c.b16 %v5798, %v5797
      %v5810 = vpack.c.b16 %v5800, %v5799
      %v5811 = vpack.c.b16 %v5802, %v5801
      %v5812 = vpack.c.b16 %v5804, %v5803
      %5821 = vmatprep.subr.bf16.mxu0 0
      %5822 = vmatpush1.bf16.msra.mxu0 %v5805
      %5823 = vmatprep.subr.bf16.mxu0 0
      %5824 = vmatpush1.bf16.msra.mxu0 %v5806
      %5825 = vmatprep.subr.bf16.mxu0 0
      %5826 = vmatpush1.bf16.msra.mxu0 %v5807
      %5827 = vmatprep.subr.bf16.mxu0 0
      %5828 = vmatpush1.bf16.msra.mxu0 %v5808
      %5829 = vmatprep.subr.bf16.mxu0 0
      %5830 = vmatpush1.bf16.msra.mxu0 %v5809
      %5831 = vmatprep.subr.bf16.mxu0 0
      %5832 = vmatpush1.bf16.msra.mxu0 %v5810
      %5833 = vmatprep.subr.bf16.mxu0 0
      %5834 = vmatpush1.bf16.msra.mxu0 %v5811
      %5835 = vmatprep.subr.bf16.mxu0 0
      %5836 = vmatpush1.bf16.msra.mxu0 %v5812
      %5837 = vmatprep.subr.bf16.mxu0 0
      %5838 = vmatpush1.bf16.msra.mxu0 0
      %5839 = vmatprep.subr.bf16.mxu0 0
      %5840 = vmatpush1.bf16.msra.mxu0 0
      %5841 = vmatprep.subr.bf16.mxu0 0
      %5842 = vmatpush1.bf16.msra.mxu0 0
      %5843 = vmatprep.subr.bf16.mxu0 0
      %5844 = vmatpush1.bf16.msra.mxu0 0
      %5845 = vmatprep.subr.bf16.mxu0 0
      %5846 = vmatpush1.bf16.msra.mxu0 0
      %5847 = vmatprep.subr.bf16.mxu0 0
      %5848 = vmatpush1.bf16.msra.mxu0 0
      %5849 = vmatprep.subr.bf16.mxu0 0
      %5850 = vmatpush1.bf16.msra.mxu0 0
      %5851 = vmatprep.subr.bf16.mxu0 0
      %5852 = vmatpush1.bf16.msra.mxu0 0
      %5853 = vmatprep.mubr.bf16.mxu0 0
      %5854 = vmatmul.mubr.bf16.gmra.mrb[0].mxu0 %v5629
      %v5855 = vpop.f32.mrb[0].mxu0
      %v5856 = vadd.f32 0.0, %v5855
      %v5857 = vpop.f32.mrb[0].mxu0
      %v5858 = vpop.f32.mrb[0].mxu0
      %v5859 = vadd.f32 0.0, %v5858
      %v5860 = vpop.f32.mrb[0].mxu0
      %5861 = vmatprep.mubr.bf16.mxu0 0
      %5862 = vmatmul.mubr.bf16.gmra.mrb[0].mxu0 %v5646
      %v5863 = vpop.f32.mrb[0].mxu0
      %v5864 = vadd.f32 0.0, %v5863
      %v5865 = vpop.f32.mrb[0].mxu0
      %v5866 = vpop.f32.mrb[0].mxu0
      %v5867 = vadd.f32 0.0, %v5866
      %v5868 = vpop.f32.mrb[0].mxu0
      %5869 = vmatprep.mubr.bf16.mxu0 0
      %5870 = vmatmul.mubr.bf16.gmra.mrb[0].mxu0 %v5663
      %v5871 = vpop.f32.mrb[0].mxu0
      %v5872 = vadd.f32 0.0, %v5871
      %v5873 = vpop.f32.mrb[0].mxu0
      %v5874 = vpop.f32.mrb[0].mxu0
      %v5875 = vadd.f32 0.0, %v5874
      %v5876 = vpop.f32.mrb[0].mxu0
      %5877 = vmatprep.mubr.bf16.mxu0 0
      %5878 = vmatmul.mubr.bf16.gmra.mrb[0].mxu0 %v5680
      %v5879 = vpop.f32.mrb[0].mxu0
      %v5880 = vadd.f32 0.0, %v5879
      %v5881 = vpop.f32.mrb[0].mxu0
      %v5882 = vpop.f32.mrb[0].mxu0
      %v5883 = vadd.f32 0.0, %v5882
      %v5884 = vpop.f32.mrb[0].mxu0
      %5885 = vmatprep.mubr.bf16.mxu0 0
      %5886 = vmatmul.mubr.bf16.gmra.mrb[0].mxu0 %v5697
      %v5887 = vpop.f32.mrb[0].mxu0
      %v5888 = vadd.f32 0.0, %v5887
      %v5889 = vpop.f32.mrb[0].mxu0
      %v5890 = vpop.f32.mrb[0].mxu0
      %v5891 = vadd.f32 0.0, %v5890
      %v5892 = vpop.f32.mrb[0].mxu0
      %5893 = vmatprep.mubr.bf16.mxu0 0
      %5894 = vmatmul.mubr.bf16.gmra.mrb[0].mxu0 %v5714
      %v5895 = vpop.f32.mrb[0].mxu0
      %v5896 = vadd.f32 0.0, %v5895
      %v5897 = vpop.f32.mrb[0].mxu0
      %v5898 = vpop.f32.mrb[0].mxu0
      %v5899 = vadd.f32 0.0, %v5898
      %v5900 = vpop.f32.mrb[0].mxu0
      %5901 = vmatprep.mubr.bf16.mxu0 0
      %5902 = vmatmul.mubr.bf16.gmra.mrb[0].mxu0 %v5731
      %v5903 = vpop.f32.mrb[0].mxu0
      %v5904 = vadd.f32 0.0, %v5903
      %v5905 = vpop.f32.mrb[0].mxu0
      %v5906 = vpop.f32.mrb[0].mxu0
      %v5907 = vadd.f32 0.0, %v5906
      %v5908 = vpop.f32.mrb[0].mxu0
      %5909 = vmatprep.mubr.bf16.mxu0 0
      %5910 = vmatmul.mubr.bf16.gmra.mrb[0].mxu0 %v5748
      %v5911 = vpop.f32.mrb[0].mxu0
      %v5912 = vadd.f32 0.0, %v5911
      %v5913 = vpop.f32.mrb[0].mxu0
      %v5914 = vpop.f32.mrb[0].mxu0
      %v5915 = vadd.f32 0.0, %v5914
      %v5916 = vpop.f32.mrb[0].mxu0
      %5917 = vdwg.mxu0
      %v5918 = vadd.f32 %v5589, %v5856
      %v5919 = vadd.f32 %v5590, %v5859
      %v5920 = vadd.f32 %v5591, %v5864
      %v5921 = vadd.f32 %v5592, %v5867
      %v5922 = vadd.f32 %v5593, %v5872
      %v5923 = vadd.f32 %v5594, %v5875
      %v5924 = vadd.f32 %v5595, %v5880
      %v5925 = vadd.f32 %v5596, %v5883
      %v5926 = vadd.f32 %v5597, %v5888
      %v5927 = vadd.f32 %v5598, %v5891
      %v5928 = vadd.f32 %v5599, %v5896
      %v5929 = vadd.f32 %v5600, %v5899
      %v5930 = vadd.f32 %v5601, %v5904
      %v5931 = vadd.f32 %v5602, %v5907
      %v5932 = vadd.f32 %v5603, %v5912
      %v5933 = vadd.f32 %v5604, %v5915
      %s5934 = scalar_lea.vmem %s231, 128
      %5935 = vst [vmem:[%s5934] sm:$0xff] %v5918
      %5936 = vst [vmem:[%s5934 + $0x8] sm:$0xff] %v5919
      %5937 = vst [vmem:[%s5934 + $0x10] sm:$0xff] %v5920
      %5938 = vst [vmem:[%s5934 + $0x18] sm:$0xff] %v5921
      %5939 = vst [vmem:[%s5934 + $0x20] sm:$0xff] %v5922
      %5940 = vst [vmem:[%s5934 + $0x28] sm:$0xff] %v5923
      %5941 = vst [vmem:[%s5934 + $0x30] sm:$0xff] %v5924
      %5942 = vst [vmem:[%s5934 + $0x38] sm:$0xff] %v5925
      %5943 = vst [vmem:[%s5934 + $0x40] sm:$0xff] %v5926
      %5944 = vst [vmem:[%s5934 + $0x48] sm:$0xff] %v5927
      %5945 = vst [vmem:[%s5934 + $0x50] sm:$0xff] %v5928
      %5946 = vst [vmem:[%s5934 + $0x58] sm:$0xff] %v5929
      %5947 = vst [vmem:[%s5934 + $0x60] sm:$0xff] %v5930
      %5948 = vst [vmem:[%s5934 + $0x68] sm:$0xff] %v5931
      %5949 = vst [vmem:[%s5934 + $0x70] sm:$0xff] %v5932
      %5950 = vst [vmem:[%s5934 + $0x78] sm:$0xff] %v5933
      %v5951 = vadd.f32 %v5918, %v5919
      %v5952 = vadd.f32 %v5951, %v5920
      %v5953 = vadd.f32 %v5952, %v5921
      %v5954 = vadd.f32 %v5953, %v5922
      %v5955 = vadd.f32 %v5954, %v5923
      %v5956 = vadd.f32 %v5955, %v5924
      %v5957 = vadd.f32 %v5956, %v5925
      %v5958 = vadd.f32 %v5957, %v5926
      %v5959 = vadd.f32 %v5958, %v5927
      %v5960 = vadd.f32 %v5959, %v5928
      %v5961 = vadd.f32 %v5960, %v5929
      %v5962 = vadd.f32 %v5961, %v5930
      %v5963 = vadd.f32 %v5962, %v5931
      %v5964 = vadd.f32 %v5963, %v5932
      %v5965 = vadd.f32 %v5964, %v5933
      %v5966 = vrot.slane %v5965, 4
      %v5967 = vadd.f32 %v5965, %v5966
      %v5968 = vrot.slane %v5967, 2
      %v5969 = vadd.f32 %v5967, %v5968
      %v5970 = vrot.slane %v5969, 1
      %v5971 = vadd.f32 %v5969, %v5970
      %v5972 = vadd.f32 %v3227, %v5971
      %v5973 = vmul.f32 %v5918, %v5918
      %v5974 = vmul.f32 %v5919, %v5919
      %v5975 = vmul.f32 %v5920, %v5920
      %v5976 = vmul.f32 %v5921, %v5921
      %v5977 = vmul.f32 %v5922, %v5922
      %v5978 = vmul.f32 %v5923, %v5923
      %v5979 = vmul.f32 %v5924, %v5924
      %v5980 = vmul.f32 %v5925, %v5925
      %v5981 = vmul.f32 %v5926, %v5926
      %v5982 = vmul.f32 %v5927, %v5927
      %v5983 = vmul.f32 %v5928, %v5928
      %v5984 = vmul.f32 %v5929, %v5929
      %v5985 = vmul.f32 %v5930, %v5930
      %v5986 = vmul.f32 %v5931, %v5931
      %v5987 = vmul.f32 %v5932, %v5932
      %v5988 = vmul.f32 %v5933, %v5933
      %v5989 = vadd.f32 %v5973, %v5974
      %v5990 = vadd.f32 %v5989, %v5975
      %v5991 = vadd.f32 %v5990, %v5976
      %v5992 = vadd.f32 %v5991, %v5977
      %v5993 = vadd.f32 %v5992, %v5978
      %v5994 = vadd.f32 %v5993, %v5979
      %v5995 = vadd.f32 %v5994, %v5980
      %v5996 = vadd.f32 %v5995, %v5981
      %v5997 = vadd.f32 %v5996, %v5982
      %v5998 = vadd.f32 %v5997, %v5983
      %v5999 = vadd.f32 %v5998, %v5984
      %v6000 = vadd.f32 %v5999, %v5985
      %v6001 = vadd.f32 %v6000, %v5986
      %v6002 = vadd.f32 %v6001, %v5987
      %v6003 = vadd.f32 %v6002, %v5988
      %v6004 = vrot.slane %v6003, 4
      %v6005 = vadd.f32 %v6003, %v6004
      %v6006 = vrot.slane %v6005, 2
      %v6007 = vadd.f32 %v6005, %v6006
      %v6008 = vrot.slane %v6007, 1
      %v6009 = vadd.f32 %v6007, %v6008
      %v6010 = vadd.f32 %v3265, %v6009
      %v6011 = vlaneseq
      %v6012 = vshrl.u32 %v6011, 7
      %vm6013 = vcmp.eq.s32.totalorder %v6012, 0
      %vm6014 = vcmp.eq.s32.totalorder %v6012, 1
      %v6015 = vsel %vm6014, %v6010, 0.0
      %v6016 = vsel %vm6013, %v5972, %v6015
      %6017 = vst [vmem:[%s235] sm:$0xff] %v6016
      %p6018 = scmp.lt.s32.totalorder %s17, 1
      %s6019 = scalar_select %p6018, %s17, 1
      %s6020 = smul.addr %s6019, 32
      %s6021 = smul.addr %s6020, 8
      %s6022 = scalar_lea.vmem %s4, %s6021
      %p6023 = scmp.lt.s32.totalorder %s17, 1
      %s6024 = scalar_select %p6023, %s17, 1
      %s6025 = smul.addr %s6024, 8
      %s6026 = scalar_lea.vmem %s5, %s6025
      // Predicated region
      $region37: #{sepconv_forward.2} parent=35 // pred_check
        %p6027 = pneg %p124
      $region38: #{sepconv_forward.2} parent=35 // pred_check_branch
        %6029 = sbr.rel (%p6027) target = $region40
      $region39: #{sepconv_forward.2} parent=35 // pred_region
        _
      $region40: #{sepconv_forward.2} parent=35 // pred_fallthru
        _
      // Predicated region
      $region41: #{sepconv_forward.2} parent=35 // pred_check
        %p6030 = pneg %p150
      $region42: #{sepconv_forward.2} parent=35 // pred_check_branch
        %6032 = sbr.rel (%p6030) target = $region44
      $region43: #{sepconv_forward.2} parent=35 // pred_region
        _
      $region44: #{sepconv_forward.2} parent=35 // pred_fallthru
        _
    $region36: #{sepconv_forward.2} parent=5 // pred_fallthru
      _
    %p6033 = scmp.le.s32.totalorder 2, %s12
    // Predicated region
    $region45: #{sepconv_forward.2} parent=5 // pred_check
      %p6034 = pneg %p6033
    $region46: #{sepconv_forward.2} parent=5 // pred_check_branch
      %6036 = sbr.rel (%p6034) target = $region48
    $region47: #{sepconv_forward.2} parent=5 // pred_region
      %s6037 = ssub.s32 %s12, 2
      // Predicated region
      $region49: #{sepconv_forward.2} parent=47 // pred_check
        %p6038 = pneg %p130
      $region50: #{sepconv_forward.2} parent=47 // pred_check_branch
        %6040 = sbr.rel (%p6038) target = $region52
      $region51: #{sepconv_forward.2} parent=47 // pred_region
        %p6041 = scmp.lt.s32.totalorder %s18, 1
        %s6042 = scalar_select %p6041, %s18, 1
        %s6043 = smul.addr %s6042, 32
        %s6044 = smul.addr %s6043, 8
        %s6045 = scalar_lea.vmem %s4, %s6044
      $region52: #{sepconv_forward.2} parent=47 // pred_fallthru
        _
      // Predicated region
      $region53: #{sepconv_forward.2} parent=47 // pred_check
        %p6046 = pneg %p156
      $region54: #{sepconv_forward.2} parent=47 // pred_check_branch
        %6048 = sbr.rel (%p6046) target = $region56
      $region55: #{sepconv_forward.2} parent=47 // pred_region
        %p6049 = scmp.lt.s32.totalorder %s18, 1
        %s6050 = scalar_select %p6049, %s18, 1
        %s6051 = smul.addr %s6050, 8
        %s6052 = scalar_lea.vmem %s5, %s6051
      $region56: #{sepconv_forward.2} parent=47 // pred_fallthru
        _
    $region48: #{sepconv_forward.2} parent=5 // pred_fallthru
      _
  $region6: #{sepconv_forward.2} parent=0 // loop_footer
    %s16 = sadd.s32 1, %s12
  $region7: #{sepconv_forward.2} parent=0 // loop_footer_branch
    %11 = sbr.rel target = $region3
  $region8: #{sepconv_forward.2} parent=0 // loop_exit
    _

</llo_original>
